<compile_context>
chip_gen: v7x
topology: tpu7x:2x2x1
jax: 0.10.0
libtpu: 0.0.40
codegen_flags: <defaults>
</compile_context>

<pallas_src>
import numpy as np
import jax
import jax.numpy as jnp
from jax.experimental import pallas as pl
from jax.experimental.pallas import tpu as pltpu


# ----------------------------------------------------------------------------
# Kernel 1: one bidirectional LSTM layer, both directions fused.
#
#   x_ref   : (T, B, Din)    time-major input
#   wih_ref : (Din, 8H)      fused input->gates, cols = [i_f i_b f_f f_b g_f g_b o_f o_b]
#   whh_ref : (2H, 8H)       fused hidden->gates (block structured: rows 0:H
#                            feed only *_f columns, rows H:2H only *_b columns)
#   b_ref   : (1, 8H)        fused (b_ih + b_hh) per direction
#   out_ref : (T, B, 2H)     bi-LSTM output at TRUE time positions
#   gx_sc   : (T, B, 8H)     precomputed input projection (+bias)
#   h_sc/c_sc : (B, 2H)      lane-concatenated [fwd | bwd] state
# ----------------------------------------------------------------------------
def _bilstm_layer_kernel(x_ref, wih_ref, whh_ref, b_ref, out_ref,
                         gx_sc, h_sc, c_sc):
    T, B, _ = x_ref.shape
    H2 = h_sc.shape[-1]          # 2*H  (=128)
    H = H2 // 2                  # per-direction hidden (=64)
    G = 4 * H2                   # total gate width (=512)
    unroll = min(T, 8)

    # ---- Phase 1: input projection for all timesteps (bias folded in). ----
    # Independent per-t matmuls -> MXU pipelines them; off the serial chain.
    def proj(t, carry):
        gx_sc[t] = (jnp.dot(x_ref[t], wih_ref[...],
                            preferred_element_type=jnp.float32)
                    + b_ref[...])
        return carry

    jax.lax.fori_loop(0, T, proj, 0, unroll=unroll)

    # ---- Phase 2: the recurrence. ----
    h_sc[...] = jnp.zeros_like(h_sc)
    c_sc[...] = jnp.zeros_like(c_sc)

    # Within each 128-lane gate block, lanes [0,64) belong to the forward
    # direction and lanes [64,128) to the backward direction.
    lane = jax.lax.broadcasted_iota(jnp.int32, (B, G), 1)
    fwd_mask = (lane % H2) < H

    def step(t, carry):
        # fwd direction consumes x[t]; bwd direction consumes x[T-1-t].
        gx = jnp.where(fwd_mask, gx_sc[t], gx_sc[T - 1 - t])       # (B, 8H)
        gates = gx + jnp.dot(h_sc[...], whh_ref[...],
                             preferred_element_type=jnp.float32)   # (B, 8H)
        # 128-lane (vreg-aligned) gate slices: i, f, g, o  (PyTorch order).
        i_g = jax.nn.sigmoid(gates[:, 0 * H2:1 * H2])
        f_g = jax.nn.sigmoid(gates[:, 1 * H2:2 * H2])
        g_g = jnp.tanh(gates[:, 2 * H2:3 * H2])
        o_g = jax.nn.sigmoid(gates[:, 3 * H2:4 * H2])
        c_new = f_g * c_sc[...] + i_g * g_g
        h_new = o_g * jnp.tanh(c_new)
        c_sc[...] = c_new
        h_sc[...] = h_new
        # fwd half belongs to time t, bwd half to time T-1-t.
        out_ref[t, :, 0:H] = h_new[:, 0:H]
        out_ref[T - 1 - t, :, H:H2] = h_new[:, H:H2]
        return carry

    jax.lax.fori_loop(0, T, step, 0, unroll=unroll)


def bilstm_layer(x_tm, wih_fused, whh_fused, b_fused):
    """x_tm: (T, B, Din) time-major.  Returns (T, B, 2H) time-major."""
    T, B, _ = x_tm.shape
    H2 = whh_fused.shape[0]            # 2H
    G = whh_fused.shape[1]             # 8H
    vmem = pl.BlockSpec(memory_space=pltpu.MemorySpace.VMEM)
    return pl.pallas_call(
        _bilstm_layer_kernel,
        out_shape=jax.ShapeDtypeStruct((T, B, H2), jnp.float32),
        in_specs=[vmem, vmem, vmem, vmem],
        out_specs=vmem,
        scratch_shapes=[pltpu.VMEM((T, B, G), jnp.float32),
                        pltpu.VMEM((B, H2), jnp.float32),
                        pltpu.VMEM((B, H2), jnp.float32)],
    )(x_tm, wih_fused, whh_fused, b_fused)


# ----------------------------------------------------------------------------
# Kernel 2: fused head, time-tiled with an accumulator.
#   acc += y1 + y2 + relu(y1 @ W1^T + b1) + relu(y2 @ W2^T + b2)   per time step
#   out  = acc / T                                                 at last step
# ----------------------------------------------------------------------------
def combine(y1_tm, y2_tm, w1, b1, w2, b2):
    """y1_tm, y2_tm: (T, B, 128) time-major.  Returns (B, 128)."""
    T, B, D = y1_tm.shape
    inv_t = 1.0 / float(T)

    def kernel(y1_ref, y2_ref, w1_ref, b1_ref, w2_ref, b2_ref, o_ref, acc_sc):
        t = pl.program_id(0)

        @pl.when(t == 0)
        def _():
            acc_sc[...] = jnp.zeros_like(acc_sc)

        y1 = y1_ref[0]                                    # (B, 128)
        y2 = y2_ref[0]                                    # (B, 128)
        h1 = jax.nn.relu(
            jnp.dot(y1, w1_ref[...], preferred_element_type=jnp.float32)
            + b1_ref[...])
        h2 = jax.nn.relu(
            jnp.dot(y2, w2_ref[...], preferred_element_type=jnp.float32)
            + b2_ref[...])
        acc_sc[...] = acc_sc[...] + y1 + y2 + h1 + h2

        @pl.when(t == T - 1)
        def _():
            o_ref[...] = acc_sc[...] * inv_t

    return pl.pallas_call(
        kernel,
        out_shape=jax.ShapeDtypeStruct((B, D), jnp.float32),
        grid=(T,),
        in_specs=[pl.BlockSpec((1, B, D), lambda t: (t, 0, 0)),
                  pl.BlockSpec((1, B, D), lambda t: (t, 0, 0)),
                  pl.BlockSpec((D, D), lambda t: (0, 0)),
                  pl.BlockSpec((1, D), lambda t: (0, 0)),
                  pl.BlockSpec((D, D), lambda t: (0, 0)),
                  pl.BlockSpec((1, D), lambda t: (0, 0))],
        out_specs=pl.BlockSpec((B, D), lambda t: (0, 0)),
        scratch_shapes=[pltpu.VMEM((B, D), jnp.float32)],
        compiler_params=pltpu.CompilerParams(
            dimension_semantics=("arbitrary",)),
    )(y1_tm, y2_tm, w1.T, b1[None, :], w2.T, b2[None, :])


# ----------------------------------------------------------------------------
# Weight fusion (wrapper-side, once): pack fwd+bwd direction weights so the
# kernel sees one (Din, 8H) input projection, one block-structured (2H, 8H)
# recurrent matrix, and one (1, 8H) bias.  Gate/column layout:
#   [i_f i_b | f_f f_b | g_f g_b | o_f o_b]  (each sub-block 64 lanes wide).
# ----------------------------------------------------------------------------
def fuse_direction_params(p_fwd, p_bwd, hidden):
    w_ih_f, w_hh_f, b_ih_f, b_hh_f = p_fwd       # PyTorch layouts
    w_ih_b, w_hh_b, b_ih_b, b_hh_b = p_bwd
    H = hidden
    din = w_ih_f.shape[1]

    wih_f = w_ih_f.T.reshape(din, 4, H)
    wih_b = w_ih_b.T.reshape(din, 4, H)
    wih_fused = jnp.stack([wih_f, wih_b], axis=2).reshape(din, 8 * H)

    whh_f = w_hh_f.T.reshape(H, 4, H)
    whh_b = w_hh_b.T.reshape(H, 4, H)
    zero = jnp.zeros_like(whh_f)
    top = jnp.stack([whh_f, zero], axis=2).reshape(H, 8 * H)   # rows for h_fwd
    bot = jnp.stack([zero, whh_b], axis=2).reshape(H, 8 * H)   # rows for h_bwd
    whh_fused = jnp.concatenate([top, bot], axis=0)            # (2H, 8H)

    b_f = (b_ih_f + b_hh_f).reshape(4, H)
    b_b = (b_ih_b + b_hh_b).reshape(4, H)
    b_fused = jnp.stack([b_f, b_b], axis=1).reshape(1, 8 * H)
    return wih_fused, whh_fused, b_fused


# ----------------------------------------------------------------------------
# Full forward (Lisa.forward): two stacked bi-LSTMs + fused linear/relu/sum/mean
# ----------------------------------------------------------------------------
def lisa_forward(x, lstm1_fused_layers, lstm2_fused_layers, w1, b1, w2, b2):
    y = jnp.transpose(x, (1, 0, 2))              # (T, B, N_MFCC) time-major
    for lp in lstm1_fused_layers:
        y = bilstm_layer(y, *lp)
    y1 = y                                       # (T, B, 128)
    for lp in lstm2_fused_layers:
        y = bilstm_layer(y, *lp)
    y2 = y                                       # (T, B, 128)
    return combine(y1, y2, w1, b1, w2, b2)       # (B, 128)
    # TODO(synk): linear_pe is defined in __init__ but unused in forward(); omitted.


# ----------------------------------------------------------------------------
# Pure-JAX reference (same math, PyTorch-layout weights) for correctness check.
# ----------------------------------------------------------------------------
def _lstm_dir_ref(x_tm, w_ih, w_hh, b_ih, b_hh):
    T, B, _ = x_tm.shape
    H = w_hh.shape[1]
    wih_t, whh_t = w_ih.T, w_hh.T
    b = (b_ih + b_hh)[None, :]

    def step(carry, x_t):
        h, c = carry
        g = x_t @ wih_t + h @ whh_t + b
        i = jax.nn.sigmoid(g[:, :H])
        f = jax.nn.sigmoid(g[:, H:2 * H])
        gg = jnp.tanh(g[:, 2 * H:3 * H])
        o = jax.nn.sigmoid(g[:, 3 * H:])
        c = f * c + i * gg
        h = o * jnp.tanh(c)
        return (h, c), h

    init = (jnp.zeros((B, H), jnp.float32), jnp.zeros((B, H), jnp.float32))
    _, ys = jax.lax.scan(step, init, x_tm)
    return ys


def _bilstm_ref(x_tm, layers_raw):
    inp = x_tm
    for lp in layers_raw:
        of = _lstm_dir_ref(inp, *lp["fwd"])
        ob = jnp.flip(_lstm_dir_ref(jnp.flip(inp, axis=0), *lp["bwd"]), axis=0)
        inp = jnp.concatenate([of, ob], axis=-1)
    return inp


def lisa_forward_ref(x, l1_raw, l2_raw, w1, b1, w2, b2):
    x_tm = jnp.transpose(x, (1, 0, 2))
    y1 = _bilstm_ref(x_tm, l1_raw)
    y2 = _bilstm_ref(y1, l2_raw)
    h1 = jax.nn.relu(y1 @ w1.T + b1)
    h2 = jax.nn.relu(y2 @ w2.T + b2)
    y = y1 + y2 + h1 + h2                        # (T, B, 128)
    return jnp.mean(y, axis=0)                   # mean over time -> (B, 128)


# ----------------------------------------------------------------------------
# Deterministic parameter init (PyTorch-style uniform(-1/sqrt(H), 1/sqrt(H)))
# ----------------------------------------------------------------------------
def _uniform(key, shape, k):
    return jax.random.uniform(key, shape, jnp.float32, -k, k)


def init_lstm_params(key, input_size, hidden, num_layers):
    k = 1.0 / np.sqrt(hidden)
    layers = []
    for l in range(num_layers):
        din = input_size if l == 0 else 2 * hidden
        dp = {}
        for d in ("fwd", "bwd"):
            key, k1, k2, k3, k4 = jax.random.split(key, 5)
            w_ih = _uniform(k1, (4 * hidden, din), k)      # PyTorch layout
            w_hh = _uniform(k2, (4 * hidden, hidden), k)
            b_ih = _uniform(k3, (4 * hidden,), k)
            b_hh = _uniform(k4, (4 * hidden,), k)
            dp[d] = (w_ih, w_hh, b_ih, b_hh)
        layers.append(dp)
    return key, layers


if __name__ == "__main__":
    # small shapes: batch=2, seq=8, N_MFCC=16, LSTM hidden=64 (bi -> 128)
    B, T = 2, 8
    N_MFCC, H, L = 16, 64, 1

    key = jax.random.PRNGKey(0)
    key, kx = jax.random.split(key)
    x = jax.random.normal(kx, (B, T, N_MFCC), jnp.float32)

    key, l1_raw = init_lstm_params(key, N_MFCC, H, L)
    key, l2_raw = init_lstm_params(key, 2 * H, H, L)

    kl = 1.0 / np.sqrt(128.0)
    key, k1, k2, k3, k4 = jax.random.split(key, 5)
    w1 = _uniform(k1, (128, 128), kl)
    b1 = _uniform(k2, (128,), kl)
    w2 = _uniform(k3, (128, 128), kl)
    b2 = _uniform(k4, (128,), kl)

    l1_fused = [fuse_direction_params(lp["fwd"], lp["bwd"], H) for lp in l1_raw]
    l2_fused = [fuse_direction_params(lp["fwd"], lp["bwd"], H) for lp in l2_raw]

    out = jax.block_until_ready(
        lisa_forward(x, l1_fused, l2_fused, w1, b1, w2, b2))
    assert out.shape == (B, 128) and out.dtype == jnp.float32

    ref = jax.block_until_ready(
        lisa_forward_ref(x, l1_raw, l2_raw, w1, b1, w2, b2))
    np.testing.assert_allclose(np.asarray(out), np.asarray(ref),
                               rtol=1e-4, atol=1e-4)

    print("KERNEL_OK")
</pallas_src>

<mosaic_0001>
module attributes {stable_mosaic.version = 11 : i64} {
  func.func @_bilstm_layer_kernel(%arg0: memref<8x2x16xf32, #tpu.memory_space<vmem>>, %arg1: memref<16x512xf32, #tpu.memory_space<vmem>>, %arg2: memref<128x512xf32, #tpu.memory_space<vmem>>, %arg3: memref<1x512xf32, #tpu.memory_space<vmem>>, %arg4: memref<8x2x128xf32, #tpu.memory_space<vmem>>, %arg5: memref<8x2x512xf32, #tpu.memory_space<vmem>>, %arg6: memref<2x128xf32, #tpu.memory_space<vmem>>, %arg7: memref<2x128xf32, #tpu.memory_space<vmem>>) attributes {dimension_semantics = [], scalar_prefetch = 0 : i64, scratch_operands = 3 : i64, tpu.core_type = #tpu.core_type<tc>} {
    %c0_i32 = arith.constant 0 : i32
    %0 = arith.index_cast %c0_i32 : i32 to index
    %c0 = arith.constant 0 : index
    %c0_0 = arith.constant 0 : index
    %1 = vector.load %arg0[%0, %c0, %c0_0] : memref<8x2x16xf32, #tpu.memory_space<vmem>>, vector<1x2x16xf32>
    %2 = vector.shape_cast %1 : vector<1x2x16xf32> to vector<2x16xf32>
    %c0_1 = arith.constant 0 : index
    %c0_2 = arith.constant 0 : index
    %3 = vector.load %arg1[%c0_1, %c0_2] : memref<16x512xf32, #tpu.memory_space<vmem>>, vector<16x512xf32>
    %cst = arith.constant dense<0.000000e+00> : vector<2x512xf32>
    %4 = tpu.matmul %2, %3, %cst {dimension_numbers = #tpu.dot_dimension_numbers<[1], [0], [0], [1], [0, 0, 1, 1], [], []>} : vector<2x16xf32>, vector<16x512xf32>, vector<2x512xf32> -> vector<2x512xf32>
    %c0_3 = arith.constant 0 : index
    %c0_4 = arith.constant 0 : index
    %5 = vector.load %arg3[%c0_3, %c0_4] : memref<1x512xf32, #tpu.memory_space<vmem>>, vector<1x512xf32>
    %6 = vector.broadcast %5 : vector<1x512xf32> to vector<2x512xf32>
    %7 = arith.addf %4, %6 : vector<2x512xf32>
    %8 = arith.index_cast %c0_i32 : i32 to index
    %c0_5 = arith.constant 0 : index
    %c0_6 = arith.constant 0 : index
    %9 = vector.load %arg5[%8, %c0_5, %c0_6] : memref<8x2x512xf32, #tpu.memory_space<vmem>>, vector<1x2x512xf32>
    %10 = vector.shape_cast %9 : vector<1x2x512xf32> to vector<2x512xf32>
    %11 = vector.shape_cast %7 : vector<2x512xf32> to vector<1x2x512xf32>
    tpu.vector_store %arg5[%8, %c0_5, %c0_6], %11 {strides = array<i32>} : memref<8x2x512xf32, #tpu.memory_space<vmem>>, vector<1x2x512xf32>,
    %c1_i32 = arith.constant 1 : i32
    %12 = arith.index_cast %c1_i32 : i32 to index
    %c0_7 = arith.constant 0 : index
    %c0_8 = arith.constant 0 : index
    %13 = vector.load %arg0[%12, %c0_7, %c0_8] : memref<8x2x16xf32, #tpu.memory_space<vmem>>, vector<1x2x16xf32>
    %14 = vector.shape_cast %13 : vector<1x2x16xf32> to vector<2x16xf32>
    %c0_9 = arith.constant 0 : index
    %c0_10 = arith.constant 0 : index
    %15 = vector.load %arg1[%c0_9, %c0_10] : memref<16x512xf32, #tpu.memory_space<vmem>>, vector<16x512xf32>
    %cst_11 = arith.constant dense<0.000000e+00> : vector<2x512xf32>
    %16 = tpu.matmul %14, %15, %cst_11 {dimension_numbers = #tpu.dot_dimension_numbers<[1], [0], [0], [1], [0, 0, 1, 1], [], []>} : vector<2x16xf32>, vector<16x512xf32>, vector<2x512xf32> -> vector<2x512xf32>
    %c0_12 = arith.constant 0 : index
    %c0_13 = arith.constant 0 : index
    %17 = vector.load %arg3[%c0_12, %c0_13] : memref<1x512xf32, #tpu.memory_space<vmem>>, vector<1x512xf32>
    %18 = vector.broadcast %17 : vector<1x512xf32> to vector<2x512xf32>
    %19 = arith.addf %16, %18 : vector<2x512xf32>
    %20 = arith.index_cast %c1_i32 : i32 to index
    %c0_14 = arith.constant 0 : index
    %c0_15 = arith.constant 0 : index
    %21 = vector.load %arg5[%20, %c0_14, %c0_15] : memref<8x2x512xf32, #tpu.memory_space<vmem>>, vector<1x2x512xf32>
    %22 = vector.shape_cast %21 : vector<1x2x512xf32> to vector<2x512xf32>
    %23 = vector.shape_cast %19 : vector<2x512xf32> to vector<1x2x512xf32>
    tpu.vector_store %arg5[%20, %c0_14, %c0_15], %23 {strides = array<i32>} : memref<8x2x512xf32, #tpu.memory_space<vmem>>, vector<1x2x512xf32>,
    %c2_i32 = arith.constant 2 : i32
    %24 = arith.index_cast %c2_i32 : i32 to index
    %c0_16 = arith.constant 0 : index
    %c0_17 = arith.constant 0 : index
    %25 = vector.load %arg0[%24, %c0_16, %c0_17] : memref<8x2x16xf32, #tpu.memory_space<vmem>>, vector<1x2x16xf32>
    %26 = vector.shape_cast %25 : vector<1x2x16xf32> to vector<2x16xf32>
    %c0_18 = arith.constant 0 : index
    %c0_19 = arith.constant 0 : index
    %27 = vector.load %arg1[%c0_18, %c0_19] : memref<16x512xf32, #tpu.memory_space<vmem>>, vector<16x512xf32>
    %cst_20 = arith.constant dense<0.000000e+00> : vector<2x512xf32>
    %28 = tpu.matmul %26, %27, %cst_20 {dimension_numbers = #tpu.dot_dimension_numbers<[1], [0], [0], [1], [0, 0, 1, 1], [], []>} : vector<2x16xf32>, vector<16x512xf32>, vector<2x512xf32> -> vector<2x512xf32>
    %c0_21 = arith.constant 0 : index
    %c0_22 = arith.constant 0 : index
    %29 = vector.load %arg3[%c0_21, %c0_22] : memref<1x512xf32, #tpu.memory_space<vmem>>, vector<1x512xf32>
    %30 = vector.broadcast %29 : vector<1x512xf32> to vector<2x512xf32>
    %31 = arith.addf %28, %30 : vector<2x512xf32>
    %32 = arith.index_cast %c2_i32 : i32 to index
    %c0_23 = arith.constant 0 : index
    %c0_24 = arith.constant 0 : index
    %33 = vector.load %arg5[%32, %c0_23, %c0_24] : memref<8x2x512xf32, #tpu.memory_space<vmem>>, vector<1x2x512xf32>
    %34 = vector.shape_cast %33 : vector<1x2x512xf32> to vector<2x512xf32>
    %35 = vector.shape_cast %31 : vector<2x512xf32> to vector<1x2x512xf32>
    tpu.vector_store %arg5[%32, %c0_23, %c0_24], %35 {strides = array<i32>} : memref<8x2x512xf32, #tpu.memory_space<vmem>>, vector<1x2x512xf32>,
    %c3_i32 = arith.constant 3 : i32
    %36 = arith.index_cast %c3_i32 : i32 to index
    %c0_25 = arith.constant 0 : index
    %c0_26 = arith.constant 0 : index
    %37 = vector.load %arg0[%36, %c0_25, %c0_26] : memref<8x2x16xf32, #tpu.memory_space<vmem>>, vector<1x2x16xf32>
    %38 = vector.shape_cast %37 : vector<1x2x16xf32> to vector<2x16xf32>
    %c0_27 = arith.constant 0 : index
    %c0_28 = arith.constant 0 : index
    %39 = vector.load %arg1[%c0_27, %c0_28] : memref<16x512xf32, #tpu.memory_space<vmem>>, vector<16x512xf32>
    %cst_29 = arith.constant dense<0.000000e+00> : vector<2x512xf32>
    %40 = tpu.matmul %38, %39, %cst_29 {dimension_numbers = #tpu.dot_dimension_numbers<[1], [0], [0], [1], [0, 0, 1, 1], [], []>} : vector<2x16xf32>, vector<16x512xf32>, vector<2x512xf32> -> vector<2x512xf32>
    %c0_30 = arith.constant 0 : index
    %c0_31 = arith.constant 0 : index
    %41 = vector.load %arg3[%c0_30, %c0_31] : memref<1x512xf32, #tpu.memory_space<vmem>>, vector<1x512xf32>
    %42 = vector.broadcast %41 : vector<1x512xf32> to vector<2x512xf32>
    %43 = arith.addf %40, %42 : vector<2x512xf32>
    %44 = arith.index_cast %c3_i32 : i32 to index
    %c0_32 = arith.constant 0 : index
    %c0_33 = arith.constant 0 : index
    %45 = vector.load %arg5[%44, %c0_32, %c0_33] : memref<8x2x512xf32, #tpu.memory_space<vmem>>, vector<1x2x512xf32>
    %46 = vector.shape_cast %45 : vector<1x2x512xf32> to vector<2x512xf32>
    %47 = vector.shape_cast %43 : vector<2x512xf32> to vector<1x2x512xf32>
    tpu.vector_store %arg5[%44, %c0_32, %c0_33], %47 {strides = array<i32>} : memref<8x2x512xf32, #tpu.memory_space<vmem>>, vector<1x2x512xf32>,
    %c4_i32 = arith.constant 4 : i32
    %48 = arith.index_cast %c4_i32 : i32 to index
    %c0_34 = arith.constant 0 : index
    %c0_35 = arith.constant 0 : index
    %49 = vector.load %arg0[%48, %c0_34, %c0_35] : memref<8x2x16xf32, #tpu.memory_space<vmem>>, vector<1x2x16xf32>
    %50 = vector.shape_cast %49 : vector<1x2x16xf32> to vector<2x16xf32>
    %c0_36 = arith.constant 0 : index
    %c0_37 = arith.constant 0 : index
    %51 = vector.load %arg1[%c0_36, %c0_37] : memref<16x512xf32, #tpu.memory_space<vmem>>, vector<16x512xf32>
    %cst_38 = arith.constant dense<0.000000e+00> : vector<2x512xf32>
    %52 = tpu.matmul %50, %51, %cst_38 {dimension_numbers = #tpu.dot_dimension_numbers<[1], [0], [0], [1], [0, 0, 1, 1], [], []>} : vector<2x16xf32>, vector<16x512xf32>, vector<2x512xf32> -> vector<2x512xf32>
    %c0_39 = arith.constant 0 : index
    %c0_40 = arith.constant 0 : index
    %53 = vector.load %arg3[%c0_39, %c0_40] : memref<1x512xf32, #tpu.memory_space<vmem>>, vector<1x512xf32>
    %54 = vector.broadcast %53 : vector<1x512xf32> to vector<2x512xf32>
    %55 = arith.addf %52, %54 : vector<2x512xf32>
    %56 = arith.index_cast %c4_i32 : i32 to index
    %c0_41 = arith.constant 0 : index
    %c0_42 = arith.constant 0 : index
    %57 = vector.load %arg5[%56, %c0_41, %c0_42] : memref<8x2x512xf32, #tpu.memory_space<vmem>>, vector<1x2x512xf32>
    %58 = vector.shape_cast %57 : vector<1x2x512xf32> to vector<2x512xf32>
    %59 = vector.shape_cast %55 : vector<2x512xf32> to vector<1x2x512xf32>
    tpu.vector_store %arg5[%56, %c0_41, %c0_42], %59 {strides = array<i32>} : memref<8x2x512xf32, #tpu.memory_space<vmem>>, vector<1x2x512xf32>,
    %c5_i32 = arith.constant 5 : i32
    %60 = arith.index_cast %c5_i32 : i32 to index
    %c0_43 = arith.constant 0 : index
    %c0_44 = arith.constant 0 : index
    %61 = vector.load %arg0[%60, %c0_43, %c0_44] : memref<8x2x16xf32, #tpu.memory_space<vmem>>, vector<1x2x16xf32>
    %62 = vector.shape_cast %61 : vector<1x2x16xf32> to vector<2x16xf32>
    %c0_45 = arith.constant 0 : index
    %c0_46 = arith.constant 0 : index
    %63 = vector.load %arg1[%c0_45, %c0_46] : memref<16x512xf32, #tpu.memory_space<vmem>>, vector<16x512xf32>
    %cst_47 = arith.constant dense<0.000000e+00> : vector<2x512xf32>
    %64 = tpu.matmul %62, %63, %cst_47 {dimension_numbers = #tpu.dot_dimension_numbers<[1], [0], [0], [1], [0, 0, 1, 1], [], []>} : vector<2x16xf32>, vector<16x512xf32>, vector<2x512xf32> -> vector<2x512xf32>
    %c0_48 = arith.constant 0 : index
    %c0_49 = arith.constant 0 : index
    %65 = vector.load %arg3[%c0_48, %c0_49] : memref<1x512xf32, #tpu.memory_space<vmem>>, vector<1x512xf32>
    %66 = vector.broadcast %65 : vector<1x512xf32> to vector<2x512xf32>
    %67 = arith.addf %64, %66 : vector<2x512xf32>
    %68 = arith.index_cast %c5_i32 : i32 to index
    %c0_50 = arith.constant 0 : index
    %c0_51 = arith.constant 0 : index
    %69 = vector.load %arg5[%68, %c0_50, %c0_51] : memref<8x2x512xf32, #tpu.memory_space<vmem>>, vector<1x2x512xf32>
    %70 = vector.shape_cast %69 : vector<1x2x512xf32> to vector<2x512xf32>
    %71 = vector.shape_cast %67 : vector<2x512xf32> to vector<1x2x512xf32>
    tpu.vector_store %arg5[%68, %c0_50, %c0_51], %71 {strides = array<i32>} : memref<8x2x512xf32, #tpu.memory_space<vmem>>, vector<1x2x512xf32>,
    %c6_i32 = arith.constant 6 : i32
    %72 = arith.index_cast %c6_i32 : i32 to index
    %c0_52 = arith.constant 0 : index
    %c0_53 = arith.constant 0 : index
    %73 = vector.load %arg0[%72, %c0_52, %c0_53] : memref<8x2x16xf32, #tpu.memory_space<vmem>>, vector<1x2x16xf32>
    %74 = vector.shape_cast %73 : vector<1x2x16xf32> to vector<2x16xf32>
    %c0_54 = arith.constant 0 : index
    %c0_55 = arith.constant 0 : index
    %75 = vector.load %arg1[%c0_54, %c0_55] : memref<16x512xf32, #tpu.memory_space<vmem>>, vector<16x512xf32>
    %cst_56 = arith.constant dense<0.000000e+00> : vector<2x512xf32>
    %76 = tpu.matmul %74, %75, %cst_56 {dimension_numbers = #tpu.dot_dimension_numbers<[1], [0], [0], [1], [0, 0, 1, 1], [], []>} : vector<2x16xf32>, vector<16x512xf32>, vector<2x512xf32> -> vector<2x512xf32>
    %c0_57 = arith.constant 0 : index
    %c0_58 = arith.constant 0 : index
    %77 = vector.load %arg3[%c0_57, %c0_58] : memref<1x512xf32, #tpu.memory_space<vmem>>, vector<1x512xf32>
    %78 = vector.broadcast %77 : vector<1x512xf32> to vector<2x512xf32>
    %79 = arith.addf %76, %78 : vector<2x512xf32>
    %80 = arith.index_cast %c6_i32 : i32 to index
    %c0_59 = arith.constant 0 : index
    %c0_60 = arith.constant 0 : index
    %81 = vector.load %arg5[%80, %c0_59, %c0_60] : memref<8x2x512xf32, #tpu.memory_space<vmem>>, vector<1x2x512xf32>
    %82 = vector.shape_cast %81 : vector<1x2x512xf32> to vector<2x512xf32>
    %83 = vector.shape_cast %79 : vector<2x512xf32> to vector<1x2x512xf32>
    tpu.vector_store %arg5[%80, %c0_59, %c0_60], %83 {strides = array<i32>} : memref<8x2x512xf32, #tpu.memory_space<vmem>>, vector<1x2x512xf32>,
    %c7_i32 = arith.constant 7 : i32
    %84 = arith.index_cast %c7_i32 : i32 to index
    %c0_61 = arith.constant 0 : index
    %c0_62 = arith.constant 0 : index
    %85 = vector.load %arg0[%84, %c0_61, %c0_62] : memref<8x2x16xf32, #tpu.memory_space<vmem>>, vector<1x2x16xf32>
    %86 = vector.shape_cast %85 : vector<1x2x16xf32> to vector<2x16xf32>
    %c0_63 = arith.constant 0 : index
    %c0_64 = arith.constant 0 : index
    %87 = vector.load %arg1[%c0_63, %c0_64] : memref<16x512xf32, #tpu.memory_space<vmem>>, vector<16x512xf32>
    %cst_65 = arith.constant dense<0.000000e+00> : vector<2x512xf32>
    %88 = tpu.matmul %86, %87, %cst_65 {dimension_numbers = #tpu.dot_dimension_numbers<[1], [0], [0], [1], [0, 0, 1, 1], [], []>} : vector<2x16xf32>, vector<16x512xf32>, vector<2x512xf32> -> vector<2x512xf32>
    %c0_66 = arith.constant 0 : index
    %c0_67 = arith.constant 0 : index
    %89 = vector.load %arg3[%c0_66, %c0_67] : memref<1x512xf32, #tpu.memory_space<vmem>>, vector<1x512xf32>
    %90 = vector.broadcast %89 : vector<1x512xf32> to vector<2x512xf32>
    %91 = arith.addf %88, %90 : vector<2x512xf32>
    %92 = arith.index_cast %c7_i32 : i32 to index
    %c0_68 = arith.constant 0 : index
    %c0_69 = arith.constant 0 : index
    %93 = vector.load %arg5[%92, %c0_68, %c0_69] : memref<8x2x512xf32, #tpu.memory_space<vmem>>, vector<1x2x512xf32>
    %94 = vector.shape_cast %93 : vector<1x2x512xf32> to vector<2x512xf32>
    %95 = vector.shape_cast %91 : vector<2x512xf32> to vector<1x2x512xf32>
    tpu.vector_store %arg5[%92, %c0_68, %c0_69], %95 {strides = array<i32>} : memref<8x2x512xf32, #tpu.memory_space<vmem>>, vector<1x2x512xf32>,
    %c8_i32 = arith.constant 8 : i32
    %cst_70 = arith.constant 0.000000e+00 : f32
    %96 = vector.broadcast %cst_70 : f32 to vector<2x128xf32>
    %c0_71 = arith.constant 0 : index
    %c0_72 = arith.constant 0 : index
    %97 = vector.load %arg6[%c0_71, %c0_72] : memref<2x128xf32, #tpu.memory_space<vmem>>, vector<2x128xf32>
    tpu.vector_store %arg6[%c0_71, %c0_72], %96 {strides = array<i32>} : memref<2x128xf32, #tpu.memory_space<vmem>>, vector<2x128xf32>,
    %cst_73 = arith.constant 0.000000e+00 : f32
    %98 = vector.broadcast %cst_73 : f32 to vector<2x128xf32>
    %c0_74 = arith.constant 0 : index
    %c0_75 = arith.constant 0 : index
    %99 = vector.load %arg7[%c0_74, %c0_75] : memref<2x128xf32, #tpu.memory_space<vmem>>, vector<2x128xf32>
    tpu.vector_store %arg7[%c0_74, %c0_75], %98 {strides = array<i32>} : memref<2x128xf32, #tpu.memory_space<vmem>>, vector<2x128xf32>,
    %100 = tpu.iota {dimensions = array<i32: 1>} : vector<2x512xi32>
    %c128_i32 = arith.constant 128 : i32
    %c0_i32_76 = arith.constant 0 : i32
    %101 = arith.cmpi eq, %c128_i32, %c0_i32_76 : i32
    %c1_i32_77 = arith.constant 1 : i32
    %102 = arith.select %101, %c1_i32_77, %c128_i32 : i32
    %103 = vector.broadcast %102 : i32 to vector<2x512xi32>
    %104 = arith.remsi %100, %103 : vector<2x512xi32>
    %c0_i32_78 = arith.constant 0 : i32
    %105 = vector.broadcast %c0_i32_78 : i32 to vector<2x512xi32>
    %106 = arith.cmpi ne, %104, %105 : vector<2x512xi32>
    %c0_i32_79 = arith.constant 0 : i32
    %107 = vector.broadcast %c0_i32_79 : i32 to vector<2x512xi32>
    %108 = arith.cmpi slt, %104, %107 : vector<2x512xi32>
    %c0_i32_80 = arith.constant 0 : i32
    %109 = arith.cmpi slt, %102, %c0_i32_80 : i32
    %110 = vector.broadcast %109 : i1 to vector<2x512xi1>
    %111 = vector.broadcast %110 : vector<2x512xi1> to vector<2x512xi1>
    %112 = arith.xori %108, %111 : vector<2x512xi1>
    %113 = arith.andi %112, %106 : vector<2x512xi1>
    %114 = vector.broadcast %102 : i32 to vector<2x512xi32>
    %115 = arith.addi %104, %114 : vector<2x512xi32>
    %116 = arith.select %113, %115, %104 : vector<2x512xi1>, vector<2x512xi32>
    %c64_i32 = arith.constant 64 : i32
    %117 = vector.broadcast %c64_i32 : i32 to vector<2x512xi32>
    %118 = arith.cmpi slt, %116, %117 : vector<2x512xi32>
    %c0_i32_81 = arith.constant 0 : i32
    %119 = arith.index_cast %c0_i32_81 : i32 to index
    %c0_82 = arith.constant 0 : index
    %c0_83 = arith.constant 0 : index
    %120 = vector.load %arg5[%119, %c0_82, %c0_83] : memref<8x2x512xf32, #tpu.memory_space<vmem>>, vector<1x2x512xf32>
    %121 = vector.shape_cast %120 : vector<1x2x512xf32> to vector<2x512xf32>
    %c7_i32_84 = arith.constant 7 : i32
    %122 = arith.subi %c7_i32_84, %c0_i32_81 : i32
    %123 = arith.index_cast %122 : i32 to index
    %c0_85 = arith.constant 0 : index
    %c0_86 = arith.constant 0 : index
    %124 = vector.load %arg5[%123, %c0_85, %c0_86] : memref<8x2x512xf32, #tpu.memory_space<vmem>>, vector<1x2x512xf32>
    %125 = vector.shape_cast %124 : vector<1x2x512xf32> to vector<2x512xf32>
    %126 = arith.select %118, %121, %125 : vector<2x512xi1>, vector<2x512xf32>
    %c0_87 = arith.constant 0 : index
    %c0_88 = arith.constant 0 : index
    %127 = vector.load %arg6[%c0_87, %c0_88] : memref<2x128xf32, #tpu.memory_space<vmem>>, vector<2x128xf32>
    %c0_89 = arith.constant 0 : index
    %c0_90 = arith.constant 0 : index
    %128 = vector.load %arg2[%c0_89, %c0_90] : memref<128x512xf32, #tpu.memory_space<vmem>>, vector<128x512xf32>
    %cst_91 = arith.constant dense<0.000000e+00> : vector<2x512xf32>
    %129 = tpu.matmul %127, %128, %cst_91 {dimension_numbers = #tpu.dot_dimension_numbers<[1], [0], [0], [1], [0, 0, 1, 1], [], []>} : vector<2x128xf32>, vector<128x512xf32>, vector<2x512xf32> -> vector<2x512xf32>
    %130 = arith.addf %126, %129 : vector<2x512xf32>
    %131 = vector.extract_strided_slice %130 {offsets = [0, 0], sizes = [2, 128], strides = [1, 1]} : vector<2x512xf32> to vector<2x128xf32>
    %132 = arith.negf %131 : vector<2x128xf32>
    %133 = math.exp %132 : vector<2x128xf32>
    %cst_92 = arith.constant 1.000000e+00 : f32
    %134 = vector.broadcast %cst_92 : f32 to vector<2x128xf32>
    %135 = arith.addf %134, %133 : vector<2x128xf32>
    %136 = arith.divf %134, %135 : vector<2x128xf32>
    %137 = vector.extract_strided_slice %130 {offsets = [0, 128], sizes = [2, 128], strides = [1, 1]} : vector<2x512xf32> to vector<2x128xf32>
    %138 = arith.negf %137 : vector<2x128xf32>
    %139 = math.exp %138 : vector<2x128xf32>
    %cst_93 = arith.constant 1.000000e+00 : f32
    %140 = vector.broadcast %cst_93 : f32 to vector<2x128xf32>
    %141 = arith.addf %140, %139 : vector<2x128xf32>
    %142 = arith.divf %140, %141 : vector<2x128xf32>
    %143 = vector.extract_strided_slice %130 {offsets = [0, 256], sizes = [2, 128], strides = [1, 1]} : vector<2x512xf32> to vector<2x128xf32>
    %144 = math.tanh %143 : vector<2x128xf32>
    %145 = vector.extract_strided_slice %130 {offsets = [0, 384], sizes = [2, 128], strides = [1, 1]} : vector<2x512xf32> to vector<2x128xf32>
    %146 = arith.negf %145 : vector<2x128xf32>
    %147 = math.exp %146 : vector<2x128xf32>
    %cst_94 = arith.constant 1.000000e+00 : f32
    %148 = vector.broadcast %cst_94 : f32 to vector<2x128xf32>
    %149 = arith.addf %148, %147 : vector<2x128xf32>
    %150 = arith.divf %148, %149 : vector<2x128xf32>
    %c0_95 = arith.constant 0 : index
    %c0_96 = arith.constant 0 : index
    %151 = vector.load %arg7[%c0_95, %c0_96] : memref<2x128xf32, #tpu.memory_space<vmem>>, vector<2x128xf32>
    %152 = arith.mulf %142, %151 : vector<2x128xf32>
    %153 = arith.mulf %136, %144 : vector<2x128xf32>
    %154 = arith.addf %152, %153 : vector<2x128xf32>
    %155 = math.tanh %154 : vector<2x128xf32>
    %156 = arith.mulf %150, %155 : vector<2x128xf32>
    %c0_97 = arith.constant 0 : index
    %c0_98 = arith.constant 0 : index
    %157 = vector.load %arg7[%c0_97, %c0_98] : memref<2x128xf32, #tpu.memory_space<vmem>>, vector<2x128xf32>
    tpu.vector_store %arg7[%c0_97, %c0_98], %154 {strides = array<i32>} : memref<2x128xf32, #tpu.memory_space<vmem>>, vector<2x128xf32>,
    %c0_99 = arith.constant 0 : index
    %c0_100 = arith.constant 0 : index
    %158 = vector.load %arg6[%c0_99, %c0_100] : memref<2x128xf32, #tpu.memory_space<vmem>>, vector<2x128xf32>
    tpu.vector_store %arg6[%c0_99, %c0_100], %156 {strides = array<i32>} : memref<2x128xf32, #tpu.memory_space<vmem>>, vector<2x128xf32>,
    %159 = vector.extract_strided_slice %156 {offsets = [0, 0], sizes = [2, 64], strides = [1, 1]} : vector<2x128xf32> to vector<2x64xf32>
    %160 = arith.index_cast %c0_i32_81 : i32 to index
    %c0_101 = arith.constant 0 : index
    %c0_102 = arith.constant 0 : index
    %161 = vector.load %arg4[%160, %c0_101, %c0_102] : memref<8x2x128xf32, #tpu.memory_space<vmem>>, vector<1x2x64xf32>
    %162 = vector.shape_cast %161 : vector<1x2x64xf32> to vector<2x64xf32>
    %163 = vector.shape_cast %159 : vector<2x64xf32> to vector<1x2x64xf32>
    tpu.vector_store %arg4[%160, %c0_101, %c0_102], %163 {strides = array<i32>} : memref<8x2x128xf32, #tpu.memory_space<vmem>>, vector<1x2x64xf32>,
    %164 = vector.extract_strided_slice %156 {offsets = [0, 64], sizes = [2, 64], strides = [1, 1]} : vector<2x128xf32> to vector<2x64xf32>
    %c7_i32_103 = arith.constant 7 : i32
    %165 = arith.subi %c7_i32_103, %c0_i32_81 : i32
    %166 = arith.index_cast %165 : i32 to index
    %c0_104 = arith.constant 0 : index
    %c64 = arith.constant 64 : index
    %167 = vector.load %arg4[%166, %c0_104, %c64] : memref<8x2x128xf32, #tpu.memory_space<vmem>>, vector<1x2x64xf32>
    %168 = vector.shape_cast %167 : vector<1x2x64xf32> to vector<2x64xf32>
    %169 = vector.shape_cast %164 : vector<2x64xf32> to vector<1x2x64xf32>
    tpu.vector_store %arg4[%166, %c0_104, %c64], %169 {strides = array<i32>} : memref<8x2x128xf32, #tpu.memory_space<vmem>>, vector<1x2x64xf32>,
    %c1_i32_105 = arith.constant 1 : i32
    %170 = arith.index_cast %c1_i32_105 : i32 to index
    %c0_106 = arith.constant 0 : index
    %c0_107 = arith.constant 0 : index
    %171 = vector.load %arg5[%170, %c0_106, %c0_107] : memref<8x2x512xf32, #tpu.memory_space<vmem>>, vector<1x2x512xf32>
    %172 = vector.shape_cast %171 : vector<1x2x512xf32> to vector<2x512xf32>
    %c7_i32_108 = arith.constant 7 : i32
    %173 = arith.subi %c7_i32_108, %c1_i32_105 : i32
    %174 = arith.index_cast %173 : i32 to index
    %c0_109 = arith.constant 0 : index
    %c0_110 = arith.constant 0 : index
    %175 = vector.load %arg5[%174, %c0_109, %c0_110] : memref<8x2x512xf32, #tpu.memory_space<vmem>>, vector<1x2x512xf32>
    %176 = vector.shape_cast %175 : vector<1x2x512xf32> to vector<2x512xf32>
    %177 = arith.select %118, %172, %176 : vector<2x512xi1>, vector<2x512xf32>
    %c0_111 = arith.constant 0 : index
    %c0_112 = arith.constant 0 : index
    %178 = vector.load %arg6[%c0_111, %c0_112] : memref<2x128xf32, #tpu.memory_space<vmem>>, vector<2x128xf32>
    %c0_113 = arith.constant 0 : index
    %c0_114 = arith.constant 0 : index
    %179 = vector.load %arg2[%c0_113, %c0_114] : memref<128x512xf32, #tpu.memory_space<vmem>>, vector<128x512xf32>
    %cst_115 = arith.constant dense<0.000000e+00> : vector<2x512xf32>
    %180 = tpu.matmul %178, %179, %cst_115 {dimension_numbers = #tpu.dot_dimension_numbers<[1], [0], [0], [1], [0, 0, 1, 1], [], []>} : vector<2x128xf32>, vector<128x512xf32>, vector<2x512xf32> -> vector<2x512xf32>
    %181 = arith.addf %177, %180 : vector<2x512xf32>
    %182 = vector.extract_strided_slice %181 {offsets = [0, 0], sizes = [2, 128], strides = [1, 1]} : vector<2x512xf32> to vector<2x128xf32>
    %183 = arith.negf %182 : vector<2x128xf32>
    %184 = math.exp %183 : vector<2x128xf32>
    %cst_116 = arith.constant 1.000000e+00 : f32
    %185 = vector.broadcast %cst_116 : f32 to vector<2x128xf32>
    %186 = arith.addf %185, %184 : vector<2x128xf32>
    %187 = arith.divf %185, %186 : vector<2x128xf32>
    %188 = vector.extract_strided_slice %181 {offsets = [0, 128], sizes = [2, 128], strides = [1, 1]} : vector<2x512xf32> to vector<2x128xf32>
    %189 = arith.negf %188 : vector<2x128xf32>
    %190 = math.exp %189 : vector<2x128xf32>
    %cst_117 = arith.constant 1.000000e+00 : f32
    %191 = vector.broadcast %cst_117 : f32 to vector<2x128xf32>
    %192 = arith.addf %191, %190 : vector<2x128xf32>
    %193 = arith.divf %191, %192 : vector<2x128xf32>
    %194 = vector.extract_strided_slice %181 {offsets = [0, 256], sizes = [2, 128], strides = [1, 1]} : vector<2x512xf32> to vector<2x128xf32>
    %195 = math.tanh %194 : vector<2x128xf32>
    %196 = vector.extract_strided_slice %181 {offsets = [0, 384], sizes = [2, 128], strides = [1, 1]} : vector<2x512xf32> to vector<2x128xf32>
    %197 = arith.negf %196 : vector<2x128xf32>
    %198 = math.exp %197 : vector<2x128xf32>
    %cst_118 = arith.constant 1.000000e+00 : f32
    %199 = vector.broadcast %cst_118 : f32 to vector<2x128xf32>
    %200 = arith.addf %199, %198 : vector<2x128xf32>
    %201 = arith.divf %199, %200 : vector<2x128xf32>
    %c0_119 = arith.constant 0 : index
    %c0_120 = arith.constant 0 : index
    %202 = vector.load %arg7[%c0_119, %c0_120] : memref<2x128xf32, #tpu.memory_space<vmem>>, vector<2x128xf32>
    %203 = arith.mulf %193, %202 : vector<2x128xf32>
    %204 = arith.mulf %187, %195 : vector<2x128xf32>
    %205 = arith.addf %203, %204 : vector<2x128xf32>
    %206 = math.tanh %205 : vector<2x128xf32>
    %207 = arith.mulf %201, %206 : vector<2x128xf32>
    %c0_121 = arith.constant 0 : index
    %c0_122 = arith.constant 0 : index
    %208 = vector.load %arg7[%c0_121, %c0_122] : memref<2x128xf32, #tpu.memory_space<vmem>>, vector<2x128xf32>
    tpu.vector_store %arg7[%c0_121, %c0_122], %205 {strides = array<i32>} : memref<2x128xf32, #tpu.memory_space<vmem>>, vector<2x128xf32>,
    %c0_123 = arith.constant 0 : index
    %c0_124 = arith.constant 0 : index
    %209 = vector.load %arg6[%c0_123, %c0_124] : memref<2x128xf32, #tpu.memory_space<vmem>>, vector<2x128xf32>
    tpu.vector_store %arg6[%c0_123, %c0_124], %207 {strides = array<i32>} : memref<2x128xf32, #tpu.memory_space<vmem>>, vector<2x128xf32>,
    %210 = vector.extract_strided_slice %207 {offsets = [0, 0], sizes = [2, 64], strides = [1, 1]} : vector<2x128xf32> to vector<2x64xf32>
    %211 = arith.index_cast %c1_i32_105 : i32 to index
    %c0_125 = arith.constant 0 : index
    %c0_126 = arith.constant 0 : index
    %212 = vector.load %arg4[%211, %c0_125, %c0_126] : memref<8x2x128xf32, #tpu.memory_space<vmem>>, vector<1x2x64xf32>
    %213 = vector.shape_cast %212 : vector<1x2x64xf32> to vector<2x64xf32>
    %214 = vector.shape_cast %210 : vector<2x64xf32> to vector<1x2x64xf32>
    tpu.vector_store %arg4[%211, %c0_125, %c0_126], %214 {strides = array<i32>} : memref<8x2x128xf32, #tpu.memory_space<vmem>>, vector<1x2x64xf32>,
    %215 = vector.extract_strided_slice %207 {offsets = [0, 64], sizes = [2, 64], strides = [1, 1]} : vector<2x128xf32> to vector<2x64xf32>
    %c7_i32_127 = arith.constant 7 : i32
    %216 = arith.subi %c7_i32_127, %c1_i32_105 : i32
    %217 = arith.index_cast %216 : i32 to index
    %c0_128 = arith.constant 0 : index
    %c64_129 = arith.constant 64 : index
    %218 = vector.load %arg4[%217, %c0_128, %c64_129] : memref<8x2x128xf32, #tpu.memory_space<vmem>>, vector<1x2x64xf32>
    %219 = vector.shape_cast %218 : vector<1x2x64xf32> to vector<2x64xf32>
    %220 = vector.shape_cast %215 : vector<2x64xf32> to vector<1x2x64xf32>
    tpu.vector_store %arg4[%217, %c0_128, %c64_129], %220 {strides = array<i32>} : memref<8x2x128xf32, #tpu.memory_space<vmem>>, vector<1x2x64xf32>,
    %c2_i32_130 = arith.constant 2 : i32
    %221 = arith.index_cast %c2_i32_130 : i32 to index
    %c0_131 = arith.constant 0 : index
    %c0_132 = arith.constant 0 : index
    %222 = vector.load %arg5[%221, %c0_131, %c0_132] : memref<8x2x512xf32, #tpu.memory_space<vmem>>, vector<1x2x512xf32>
    %223 = vector.shape_cast %222 : vector<1x2x512xf32> to vector<2x512xf32>
    %c7_i32_133 = arith.constant 7 : i32
    %224 = arith.subi %c7_i32_133, %c2_i32_130 : i32
    %225 = arith.index_cast %224 : i32 to index
    %c0_134 = arith.constant 0 : index
    %c0_135 = arith.constant 0 : index
    %226 = vector.load %arg5[%225, %c0_134, %c0_135] : memref<8x2x512xf32, #tpu.memory_space<vmem>>, vector<1x2x512xf32>
    %227 = vector.shape_cast %226 : vector<1x2x512xf32> to vector<2x512xf32>
    %228 = arith.select %118, %223, %227 : vector<2x512xi1>, vector<2x512xf32>
    %c0_136 = arith.constant 0 : index
    %c0_137 = arith.constant 0 : index
    %229 = vector.load %arg6[%c0_136, %c0_137] : memref<2x128xf32, #tpu.memory_space<vmem>>, vector<2x128xf32>
    %c0_138 = arith.constant 0 : index
    %c0_139 = arith.constant 0 : index
    %230 = vector.load %arg2[%c0_138, %c0_139] : memref<128x512xf32, #tpu.memory_space<vmem>>, vector<128x512xf32>
    %cst_140 = arith.constant dense<0.000000e+00> : vector<2x512xf32>
    %231 = tpu.matmul %229, %230, %cst_140 {dimension_numbers = #tpu.dot_dimension_numbers<[1], [0], [0], [1], [0, 0, 1, 1], [], []>} : vector<2x128xf32>, vector<128x512xf32>, vector<2x512xf32> -> vector<2x512xf32>
    %232 = arith.addf %228, %231 : vector<2x512xf32>
    %233 = vector.extract_strided_slice %232 {offsets = [0, 0], sizes = [2, 128], strides = [1, 1]} : vector<2x512xf32> to vector<2x128xf32>
    %234 = arith.negf %233 : vector<2x128xf32>
    %235 = math.exp %234 : vector<2x128xf32>
    %cst_141 = arith.constant 1.000000e+00 : f32
    %236 = vector.broadcast %cst_141 : f32 to vector<2x128xf32>
    %237 = arith.addf %236, %235 : vector<2x128xf32>
    %238 = arith.divf %236, %237 : vector<2x128xf32>
    %239 = vector.extract_strided_slice %232 {offsets = [0, 128], sizes = [2, 128], strides = [1, 1]} : vector<2x512xf32> to vector<2x128xf32>
    %240 = arith.negf %239 : vector<2x128xf32>
    %241 = math.exp %240 : vector<2x128xf32>
    %cst_142 = arith.constant 1.000000e+00 : f32
    %242 = vector.broadcast %cst_142 : f32 to vector<2x128xf32>
    %243 = arith.addf %242, %241 : vector<2x128xf32>
    %244 = arith.divf %242, %243 : vector<2x128xf32>
    %245 = vector.extract_strided_slice %232 {offsets = [0, 256], sizes = [2, 128], strides = [1, 1]} : vector<2x512xf32> to vector<2x128xf32>
    %246 = math.tanh %245 : vector<2x128xf32>
    %247 = vector.extract_strided_slice %232 {offsets = [0, 384], sizes = [2, 128], strides = [1, 1]} : vector<2x512xf32> to vector<2x128xf32>
    %248 = arith.negf %247 : vector<2x128xf32>
    %249 = math.exp %248 : vector<2x128xf32>
    %cst_143 = arith.constant 1.000000e+00 : f32
    %250 = vector.broadcast %cst_143 : f32 to vector<2x128xf32>
    %251 = arith.addf %250, %249 : vector<2x128xf32>
    %252 = arith.divf %250, %251 : vector<2x128xf32>
    %c0_144 = arith.constant 0 : index
    %c0_145 = arith.constant 0 : index
    %253 = vector.load %arg7[%c0_144, %c0_145] : memref<2x128xf32, #tpu.memory_space<vmem>>, vector<2x128xf32>
    %254 = arith.mulf %244, %253 : vector<2x128xf32>
    %255 = arith.mulf %238, %246 : vector<2x128xf32>
    %256 = arith.addf %254, %255 : vector<2x128xf32>
    %257 = math.tanh %256 : vector<2x128xf32>
    %258 = arith.mulf %252, %257 : vector<2x128xf32>
    %c0_146 = arith.constant 0 : index
    %c0_147 = arith.constant 0 : index
    %259 = vector.load %arg7[%c0_146, %c0_147] : memref<2x128xf32, #tpu.memory_space<vmem>>, vector<2x128xf32>
    tpu.vector_store %arg7[%c0_146, %c0_147], %256 {strides = array<i32>} : memref<2x128xf32, #tpu.memory_space<vmem>>, vector<2x128xf32>,
    %c0_148 = arith.constant 0 : index
    %c0_149 = arith.constant 0 : index
    %260 = vector.load %arg6[%c0_148, %c0_149] : memref<2x128xf32, #tpu.memory_space<vmem>>, vector<2x128xf32>
    tpu.vector_store %arg6[%c0_148, %c0_149], %258 {strides = array<i32>} : memref<2x128xf32, #tpu.memory_space<vmem>>, vector<2x128xf32>,
    %261 = vector.extract_strided_slice %258 {offsets = [0, 0], sizes = [2, 64], strides = [1, 1]} : vector<2x128xf32> to vector<2x64xf32>
    %262 = arith.index_cast %c2_i32_130 : i32 to index
    %c0_150 = arith.constant 0 : index
    %c0_151 = arith.constant 0 : index
    %263 = vector.load %arg4[%262, %c0_150, %c0_151] : memref<8x2x128xf32, #tpu.memory_space<vmem>>, vector<1x2x64xf32>
    %264 = vector.shape_cast %263 : vector<1x2x64xf32> to vector<2x64xf32>
    %265 = vector.shape_cast %261 : vector<2x64xf32> to vector<1x2x64xf32>
    tpu.vector_store %arg4[%262, %c0_150, %c0_151], %265 {strides = array<i32>} : memref<8x2x128xf32, #tpu.memory_space<vmem>>, vector<1x2x64xf32>,
    %266 = vector.extract_strided_slice %258 {offsets = [0, 64], sizes = [2, 64], strides = [1, 1]} : vector<2x128xf32> to vector<2x64xf32>
    %c7_i32_152 = arith.constant 7 : i32
    %267 = arith.subi %c7_i32_152, %c2_i32_130 : i32
    %268 = arith.index_cast %267 : i32 to index
    %c0_153 = arith.constant 0 : index
    %c64_154 = arith.constant 64 : index
    %269 = vector.load %arg4[%268, %c0_153, %c64_154] : memref<8x2x128xf32, #tpu.memory_space<vmem>>, vector<1x2x64xf32>
    %270 = vector.shape_cast %269 : vector<1x2x64xf32> to vector<2x64xf32>
    %271 = vector.shape_cast %266 : vector<2x64xf32> to vector<1x2x64xf32>
    tpu.vector_store %arg4[%268, %c0_153, %c64_154], %271 {strides = array<i32>} : memref<8x2x128xf32, #tpu.memory_space<vmem>>, vector<1x2x64xf32>,
    %c3_i32_155 = arith.constant 3 : i32
    %272 = arith.index_cast %c3_i32_155 : i32 to index
    %c0_156 = arith.constant 0 : index
    %c0_157 = arith.constant 0 : index
    %273 = vector.load %arg5[%272, %c0_156, %c0_157] : memref<8x2x512xf32, #tpu.memory_space<vmem>>, vector<1x2x512xf32>
    %274 = vector.shape_cast %273 : vector<1x2x512xf32> to vector<2x512xf32>
    %c7_i32_158 = arith.constant 7 : i32
    %275 = arith.subi %c7_i32_158, %c3_i32_155 : i32
    %276 = arith.index_cast %275 : i32 to index
    %c0_159 = arith.constant 0 : index
    %c0_160 = arith.constant 0 : index
    %277 = vector.load %arg5[%276, %c0_159, %c0_160] : memref<8x2x512xf32, #tpu.memory_space<vmem>>, vector<1x2x512xf32>
    %278 = vector.shape_cast %277 : vector<1x2x512xf32> to vector<2x512xf32>
    %279 = arith.select %118, %274, %278 : vector<2x512xi1>, vector<2x512xf32>
    %c0_161 = arith.constant 0 : index
    %c0_162 = arith.constant 0 : index
    %280 = vector.load %arg6[%c0_161, %c0_162] : memref<2x128xf32, #tpu.memory_space<vmem>>, vector<2x128xf32>
    %c0_163 = arith.constant 0 : index
    %c0_164 = arith.constant 0 : index
    %281 = vector.load %arg2[%c0_163, %c0_164] : memref<128x512xf32, #tpu.memory_space<vmem>>, vector<128x512xf32>
    %cst_165 = arith.constant dense<0.000000e+00> : vector<2x512xf32>
    %282 = tpu.matmul %280, %281, %cst_165 {dimension_numbers = #tpu.dot_dimension_numbers<[1], [0], [0], [1], [0, 0, 1, 1], [], []>} : vector<2x128xf32>, vector<128x512xf32>, vector<2x512xf32> -> vector<2x512xf32>
    %283 = arith.addf %279, %282 : vector<2x512xf32>
    %284 = vector.extract_strided_slice %283 {offsets = [0, 0], sizes = [2, 128], strides = [1, 1]} : vector<2x512xf32> to vector<2x128xf32>
    %285 = arith.negf %284 : vector<2x128xf32>
    %286 = math.exp %285 : vector<2x128xf32>
    %cst_166 = arith.constant 1.000000e+00 : f32
    %287 = vector.broadcast %cst_166 : f32 to vector<2x128xf32>
    %288 = arith.addf %287, %286 : vector<2x128xf32>
    %289 = arith.divf %287, %288 : vector<2x128xf32>
    %290 = vector.extract_strided_slice %283 {offsets = [0, 128], sizes = [2, 128], strides = [1, 1]} : vector<2x512xf32> to vector<2x128xf32>
    %291 = arith.negf %290 : vector<2x128xf32>
    %292 = math.exp %291 : vector<2x128xf32>
    %cst_167 = arith.constant 1.000000e+00 : f32
    %293 = vector.broadcast %cst_167 : f32 to vector<2x128xf32>
    %294 = arith.addf %293, %292 : vector<2x128xf32>
    %295 = arith.divf %293, %294 : vector<2x128xf32>
    %296 = vector.extract_strided_slice %283 {offsets = [0, 256], sizes = [2, 128], strides = [1, 1]} : vector<2x512xf32> to vector<2x128xf32>
    %297 = math.tanh %296 : vector<2x128xf32>
    %298 = vector.extract_strided_slice %283 {offsets = [0, 384], sizes = [2, 128], strides = [1, 1]} : vector<2x512xf32> to vector<2x128xf32>
    %299 = arith.negf %298 : vector<2x128xf32>
    %300 = math.exp %299 : vector<2x128xf32>
    %cst_168 = arith.constant 1.000000e+00 : f32
    %301 = vector.broadcast %cst_168 : f32 to vector<2x128xf32>
    %302 = arith.addf %301, %300 : vector<2x128xf32>
    %303 = arith.divf %301, %302 : vector<2x128xf32>
    %c0_169 = arith.constant 0 : index
    %c0_170 = arith.constant 0 : index
    %304 = vector.load %arg7[%c0_169, %c0_170] : memref<2x128xf32, #tpu.memory_space<vmem>>, vector<2x128xf32>
    %305 = arith.mulf %295, %304 : vector<2x128xf32>
    %306 = arith.mulf %289, %297 : vector<2x128xf32>
    %307 = arith.addf %305, %306 : vector<2x128xf32>
    %308 = math.tanh %307 : vector<2x128xf32>
    %309 = arith.mulf %303, %308 : vector<2x128xf32>
    %c0_171 = arith.constant 0 : index
    %c0_172 = arith.constant 0 : index
    %310 = vector.load %arg7[%c0_171, %c0_172] : memref<2x128xf32, #tpu.memory_space<vmem>>, vector<2x128xf32>
    tpu.vector_store %arg7[%c0_171, %c0_172], %307 {strides = array<i32>} : memref<2x128xf32, #tpu.memory_space<vmem>>, vector<2x128xf32>,
    %c0_173 = arith.constant 0 : index
    %c0_174 = arith.constant 0 : index
    %311 = vector.load %arg6[%c0_173, %c0_174] : memref<2x128xf32, #tpu.memory_space<vmem>>, vector<2x128xf32>
    tpu.vector_store %arg6[%c0_173, %c0_174], %309 {strides = array<i32>} : memref<2x128xf32, #tpu.memory_space<vmem>>, vector<2x128xf32>,
    %312 = vector.extract_strided_slice %309 {offsets = [0, 0], sizes = [2, 64], strides = [1, 1]} : vector<2x128xf32> to vector<2x64xf32>
    %313 = arith.index_cast %c3_i32_155 : i32 to index
    %c0_175 = arith.constant 0 : index
    %c0_176 = arith.constant 0 : index
    %314 = vector.load %arg4[%313, %c0_175, %c0_176] : memref<8x2x128xf32, #tpu.memory_space<vmem>>, vector<1x2x64xf32>
    %315 = vector.shape_cast %314 : vector<1x2x64xf32> to vector<2x64xf32>
    %316 = vector.shape_cast %312 : vector<2x64xf32> to vector<1x2x64xf32>
    tpu.vector_store %arg4[%313, %c0_175, %c0_176], %316 {strides = array<i32>} : memref<8x2x128xf32, #tpu.memory_space<vmem>>, vector<1x2x64xf32>,
    %317 = vector.extract_strided_slice %309 {offsets = [0, 64], sizes = [2, 64], strides = [1, 1]} : vector<2x128xf32> to vector<2x64xf32>
    %c7_i32_177 = arith.constant 7 : i32
    %318 = arith.subi %c7_i32_177, %c3_i32_155 : i32
    %319 = arith.index_cast %318 : i32 to index
    %c0_178 = arith.constant 0 : index
    %c64_179 = arith.constant 64 : index
    %320 = vector.load %arg4[%319, %c0_178, %c64_179] : memref<8x2x128xf32, #tpu.memory_space<vmem>>, vector<1x2x64xf32>
    %321 = vector.shape_cast %320 : vector<1x2x64xf32> to vector<2x64xf32>
    %322 = vector.shape_cast %317 : vector<2x64xf32> to vector<1x2x64xf32>
    tpu.vector_store %arg4[%319, %c0_178, %c64_179], %322 {strides = array<i32>} : memref<8x2x128xf32, #tpu.memory_space<vmem>>, vector<1x2x64xf32>,
    %c4_i32_180 = arith.constant 4 : i32
    %323 = arith.index_cast %c4_i32_180 : i32 to index
    %c0_181 = arith.constant 0 : index
    %c0_182 = arith.constant 0 : index
    %324 = vector.load %arg5[%323, %c0_181, %c0_182] : memref<8x2x512xf32, #tpu.memory_space<vmem>>, vector<1x2x512xf32>
    %325 = vector.shape_cast %324 : vector<1x2x512xf32> to vector<2x512xf32>
    %c7_i32_183 = arith.constant 7 : i32
    %326 = arith.subi %c7_i32_183, %c4_i32_180 : i32
    %327 = arith.index_cast %326 : i32 to index
    %c0_184 = arith.constant 0 : index
    %c0_185 = arith.constant 0 : index
    %328 = vector.load %arg5[%327, %c0_184, %c0_185] : memref<8x2x512xf32, #tpu.memory_space<vmem>>, vector<1x2x512xf32>
    %329 = vector.shape_cast %328 : vector<1x2x512xf32> to vector<2x512xf32>
    %330 = arith.select %118, %325, %329 : vector<2x512xi1>, vector<2x512xf32>
    %c0_186 = arith.constant 0 : index
    %c0_187 = arith.constant 0 : index
    %331 = vector.load %arg6[%c0_186, %c0_187] : memref<2x128xf32, #tpu.memory_space<vmem>>, vector<2x128xf32>
    %c0_188 = arith.constant 0 : index
    %c0_189 = arith.constant 0 : index
    %332 = vector.load %arg2[%c0_188, %c0_189] : memref<128x512xf32, #tpu.memory_space<vmem>>, vector<128x512xf32>
    %cst_190 = arith.constant dense<0.000000e+00> : vector<2x512xf32>
    %333 = tpu.matmul %331, %332, %cst_190 {dimension_numbers = #tpu.dot_dimension_numbers<[1], [0], [0], [1], [0, 0, 1, 1], [], []>} : vector<2x128xf32>, vector<128x512xf32>, vector<2x512xf32> -> vector<2x512xf32>
    %334 = arith.addf %330, %333 : vector<2x512xf32>
    %335 = vector.extract_strided_slice %334 {offsets = [0, 0], sizes = [2, 128], strides = [1, 1]} : vector<2x512xf32> to vector<2x128xf32>
    %336 = arith.negf %335 : vector<2x128xf32>
    %337 = math.exp %336 : vector<2x128xf32>
    %cst_191 = arith.constant 1.000000e+00 : f32
    %338 = vector.broadcast %cst_191 : f32 to vector<2x128xf32>
    %339 = arith.addf %338, %337 : vector<2x128xf32>
    %340 = arith.divf %338, %339 : vector<2x128xf32>
    %341 = vector.extract_strided_slice %334 {offsets = [0, 128], sizes = [2, 128], strides = [1, 1]} : vector<2x512xf32> to vector<2x128xf32>
    %342 = arith.negf %341 : vector<2x128xf32>
    %343 = math.exp %342 : vector<2x128xf32>
    %cst_192 = arith.constant 1.000000e+00 : f32
    %344 = vector.broadcast %cst_192 : f32 to vector<2x128xf32>
    %345 = arith.addf %344, %343 : vector<2x128xf32>
    %346 = arith.divf %344, %345 : vector<2x128xf32>
    %347 = vector.extract_strided_slice %334 {offsets = [0, 256], sizes = [2, 128], strides = [1, 1]} : vector<2x512xf32> to vector<2x128xf32>
    %348 = math.tanh %347 : vector<2x128xf32>
    %349 = vector.extract_strided_slice %334 {offsets = [0, 384], sizes = [2, 128], strides = [1, 1]} : vector<2x512xf32> to vector<2x128xf32>
    %350 = arith.negf %349 : vector<2x128xf32>
    %351 = math.exp %350 : vector<2x128xf32>
    %cst_193 = arith.constant 1.000000e+00 : f32
    %352 = vector.broadcast %cst_193 : f32 to vector<2x128xf32>
    %353 = arith.addf %352, %351 : vector<2x128xf32>
    %354 = arith.divf %352, %353 : vector<2x128xf32>
    %c0_194 = arith.constant 0 : index
    %c0_195 = arith.constant 0 : index
    %355 = vector.load %arg7[%c0_194, %c0_195] : memref<2x128xf32, #tpu.memory_space<vmem>>, vector<2x128xf32>
    %356 = arith.mulf %346, %355 : vector<2x128xf32>
    %357 = arith.mulf %340, %348 : vector<2x128xf32>
    %358 = arith.addf %356, %357 : vector<2x128xf32>
    %359 = math.tanh %358 : vector<2x128xf32>
    %360 = arith.mulf %354, %359 : vector<2x128xf32>
    %c0_196 = arith.constant 0 : index
    %c0_197 = arith.constant 0 : index
    %361 = vector.load %arg7[%c0_196, %c0_197] : memref<2x128xf32, #tpu.memory_space<vmem>>, vector<2x128xf32>
    tpu.vector_store %arg7[%c0_196, %c0_197], %358 {strides = array<i32>} : memref<2x128xf32, #tpu.memory_space<vmem>>, vector<2x128xf32>,
    %c0_198 = arith.constant 0 : index
    %c0_199 = arith.constant 0 : index
    %362 = vector.load %arg6[%c0_198, %c0_199] : memref<2x128xf32, #tpu.memory_space<vmem>>, vector<2x128xf32>
    tpu.vector_store %arg6[%c0_198, %c0_199], %360 {strides = array<i32>} : memref<2x128xf32, #tpu.memory_space<vmem>>, vector<2x128xf32>,
    %363 = vector.extract_strided_slice %360 {offsets = [0, 0], sizes = [2, 64], strides = [1, 1]} : vector<2x128xf32> to vector<2x64xf32>
    %364 = arith.index_cast %c4_i32_180 : i32 to index
    %c0_200 = arith.constant 0 : index
    %c0_201 = arith.constant 0 : index
    %365 = vector.load %arg4[%364, %c0_200, %c0_201] : memref<8x2x128xf32, #tpu.memory_space<vmem>>, vector<1x2x64xf32>
    %366 = vector.shape_cast %365 : vector<1x2x64xf32> to vector<2x64xf32>
    %367 = vector.shape_cast %363 : vector<2x64xf32> to vector<1x2x64xf32>
    tpu.vector_store %arg4[%364, %c0_200, %c0_201], %367 {strides = array<i32>} : memref<8x2x128xf32, #tpu.memory_space<vmem>>, vector<1x2x64xf32>,
    %368 = vector.extract_strided_slice %360 {offsets = [0, 64], sizes = [2, 64], strides = [1, 1]} : vector<2x128xf32> to vector<2x64xf32>
    %c7_i32_202 = arith.constant 7 : i32
    %369 = arith.subi %c7_i32_202, %c4_i32_180 : i32
    %370 = arith.index_cast %369 : i32 to index
    %c0_203 = arith.constant 0 : index
    %c64_204 = arith.constant 64 : index
    %371 = vector.load %arg4[%370, %c0_203, %c64_204] : memref<8x2x128xf32, #tpu.memory_space<vmem>>, vector<1x2x64xf32>
    %372 = vector.shape_cast %371 : vector<1x2x64xf32> to vector<2x64xf32>
    %373 = vector.shape_cast %368 : vector<2x64xf32> to vector<1x2x64xf32>
    tpu.vector_store %arg4[%370, %c0_203, %c64_204], %373 {strides = array<i32>} : memref<8x2x128xf32, #tpu.memory_space<vmem>>, vector<1x2x64xf32>,
    %c5_i32_205 = arith.constant 5 : i32
    %374 = arith.index_cast %c5_i32_205 : i32 to index
    %c0_206 = arith.constant 0 : index
    %c0_207 = arith.constant 0 : index
    %375 = vector.load %arg5[%374, %c0_206, %c0_207] : memref<8x2x512xf32, #tpu.memory_space<vmem>>, vector<1x2x512xf32>
    %376 = vector.shape_cast %375 : vector<1x2x512xf32> to vector<2x512xf32>
    %c7_i32_208 = arith.constant 7 : i32
    %377 = arith.subi %c7_i32_208, %c5_i32_205 : i32
    %378 = arith.index_cast %377 : i32 to index
    %c0_209 = arith.constant 0 : index
    %c0_210 = arith.constant 0 : index
    %379 = vector.load %arg5[%378, %c0_209, %c0_210] : memref<8x2x512xf32, #tpu.memory_space<vmem>>, vector<1x2x512xf32>
    %380 = vector.shape_cast %379 : vector<1x2x512xf32> to vector<2x512xf32>
    %381 = arith.select %118, %376, %380 : vector<2x512xi1>, vector<2x512xf32>
    %c0_211 = arith.constant 0 : index
    %c0_212 = arith.constant 0 : index
    %382 = vector.load %arg6[%c0_211, %c0_212] : memref<2x128xf32, #tpu.memory_space<vmem>>, vector<2x128xf32>
    %c0_213 = arith.constant 0 : index
    %c0_214 = arith.constant 0 : index
    %383 = vector.load %arg2[%c0_213, %c0_214] : memref<128x512xf32, #tpu.memory_space<vmem>>, vector<128x512xf32>
    %cst_215 = arith.constant dense<0.000000e+00> : vector<2x512xf32>
    %384 = tpu.matmul %382, %383, %cst_215 {dimension_numbers = #tpu.dot_dimension_numbers<[1], [0], [0], [1], [0, 0, 1, 1], [], []>} : vector<2x128xf32>, vector<128x512xf32>, vector<2x512xf32> -> vector<2x512xf32>
    %385 = arith.addf %381, %384 : vector<2x512xf32>
    %386 = vector.extract_strided_slice %385 {offsets = [0, 0], sizes = [2, 128], strides = [1, 1]} : vector<2x512xf32> to vector<2x128xf32>
    %387 = arith.negf %386 : vector<2x128xf32>
    %388 = math.exp %387 : vector<2x128xf32>
    %cst_216 = arith.constant 1.000000e+00 : f32
    %389 = vector.broadcast %cst_216 : f32 to vector<2x128xf32>
    %390 = arith.addf %389, %388 : vector<2x128xf32>
    %391 = arith.divf %389, %390 : vector<2x128xf32>
    %392 = vector.extract_strided_slice %385 {offsets = [0, 128], sizes = [2, 128], strides = [1, 1]} : vector<2x512xf32> to vector<2x128xf32>
    %393 = arith.negf %392 : vector<2x128xf32>
    %394 = math.exp %393 : vector<2x128xf32>
    %cst_217 = arith.constant 1.000000e+00 : f32
    %395 = vector.broadcast %cst_217 : f32 to vector<2x128xf32>
    %396 = arith.addf %395, %394 : vector<2x128xf32>
    %397 = arith.divf %395, %396 : vector<2x128xf32>
    %398 = vector.extract_strided_slice %385 {offsets = [0, 256], sizes = [2, 128], strides = [1, 1]} : vector<2x512xf32> to vector<2x128xf32>
    %399 = math.tanh %398 : vector<2x128xf32>
    %400 = vector.extract_strided_slice %385 {offsets = [0, 384], sizes = [2, 128], strides = [1, 1]} : vector<2x512xf32> to vector<2x128xf32>
    %401 = arith.negf %400 : vector<2x128xf32>
    %402 = math.exp %401 : vector<2x128xf32>
    %cst_218 = arith.constant 1.000000e+00 : f32
    %403 = vector.broadcast %cst_218 : f32 to vector<2x128xf32>
    %404 = arith.addf %403, %402 : vector<2x128xf32>
    %405 = arith.divf %403, %404 : vector<2x128xf32>
    %c0_219 = arith.constant 0 : index
    %c0_220 = arith.constant 0 : index
    %406 = vector.load %arg7[%c0_219, %c0_220] : memref<2x128xf32, #tpu.memory_space<vmem>>, vector<2x128xf32>
    %407 = arith.mulf %397, %406 : vector<2x128xf32>
    %408 = arith.mulf %391, %399 : vector<2x128xf32>
    %409 = arith.addf %407, %408 : vector<2x128xf32>
    %410 = math.tanh %409 : vector<2x128xf32>
    %411 = arith.mulf %405, %410 : vector<2x128xf32>
    %c0_221 = arith.constant 0 : index
    %c0_222 = arith.constant 0 : index
    %412 = vector.load %arg7[%c0_221, %c0_222] : memref<2x128xf32, #tpu.memory_space<vmem>>, vector<2x128xf32>
    tpu.vector_store %arg7[%c0_221, %c0_222], %409 {strides = array<i32>} : memref<2x128xf32, #tpu.memory_space<vmem>>, vector<2x128xf32>,
    %c0_223 = arith.constant 0 : index
    %c0_224 = arith.constant 0 : index
    %413 = vector.load %arg6[%c0_223, %c0_224] : memref<2x128xf32, #tpu.memory_space<vmem>>, vector<2x128xf32>
    tpu.vector_store %arg6[%c0_223, %c0_224], %411 {strides = array<i32>} : memref<2x128xf32, #tpu.memory_space<vmem>>, vector<2x128xf32>,
    %414 = vector.extract_strided_slice %411 {offsets = [0, 0], sizes = [2, 64], strides = [1, 1]} : vector<2x128xf32> to vector<2x64xf32>
    %415 = arith.index_cast %c5_i32_205 : i32 to index
    %c0_225 = arith.constant 0 : index
    %c0_226 = arith.constant 0 : index
    %416 = vector.load %arg4[%415, %c0_225, %c0_226] : memref<8x2x128xf32, #tpu.memory_space<vmem>>, vector<1x2x64xf32>
    %417 = vector.shape_cast %416 : vector<1x2x64xf32> to vector<2x64xf32>
    %418 = vector.shape_cast %414 : vector<2x64xf32> to vector<1x2x64xf32>
    tpu.vector_store %arg4[%415, %c0_225, %c0_226], %418 {strides = array<i32>} : memref<8x2x128xf32, #tpu.memory_space<vmem>>, vector<1x2x64xf32>,
    %419 = vector.extract_strided_slice %411 {offsets = [0, 64], sizes = [2, 64], strides = [1, 1]} : vector<2x128xf32> to vector<2x64xf32>
    %c7_i32_227 = arith.constant 7 : i32
    %420 = arith.subi %c7_i32_227, %c5_i32_205 : i32
    %421 = arith.index_cast %420 : i32 to index
    %c0_228 = arith.constant 0 : index
    %c64_229 = arith.constant 64 : index
    %422 = vector.load %arg4[%421, %c0_228, %c64_229] : memref<8x2x128xf32, #tpu.memory_space<vmem>>, vector<1x2x64xf32>
    %423 = vector.shape_cast %422 : vector<1x2x64xf32> to vector<2x64xf32>
    %424 = vector.shape_cast %419 : vector<2x64xf32> to vector<1x2x64xf32>
    tpu.vector_store %arg4[%421, %c0_228, %c64_229], %424 {strides = array<i32>} : memref<8x2x128xf32, #tpu.memory_space<vmem>>, vector<1x2x64xf32>,
    %c6_i32_230 = arith.constant 6 : i32
    %425 = arith.index_cast %c6_i32_230 : i32 to index
    %c0_231 = arith.constant 0 : index
    %c0_232 = arith.constant 0 : index
    %426 = vector.load %arg5[%425, %c0_231, %c0_232] : memref<8x2x512xf32, #tpu.memory_space<vmem>>, vector<1x2x512xf32>
    %427 = vector.shape_cast %426 : vector<1x2x512xf32> to vector<2x512xf32>
    %c7_i32_233 = arith.constant 7 : i32
    %428 = arith.subi %c7_i32_233, %c6_i32_230 : i32
    %429 = arith.index_cast %428 : i32 to index
    %c0_234 = arith.constant 0 : index
    %c0_235 = arith.constant 0 : index
    %430 = vector.load %arg5[%429, %c0_234, %c0_235] : memref<8x2x512xf32, #tpu.memory_space<vmem>>, vector<1x2x512xf32>
    %431 = vector.shape_cast %430 : vector<1x2x512xf32> to vector<2x512xf32>
    %432 = arith.select %118, %427, %431 : vector<2x512xi1>, vector<2x512xf32>
    %c0_236 = arith.constant 0 : index
    %c0_237 = arith.constant 0 : index
    %433 = vector.load %arg6[%c0_236, %c0_237] : memref<2x128xf32, #tpu.memory_space<vmem>>, vector<2x128xf32>
    %c0_238 = arith.constant 0 : index
    %c0_239 = arith.constant 0 : index
    %434 = vector.load %arg2[%c0_238, %c0_239] : memref<128x512xf32, #tpu.memory_space<vmem>>, vector<128x512xf32>
    %cst_240 = arith.constant dense<0.000000e+00> : vector<2x512xf32>
    %435 = tpu.matmul %433, %434, %cst_240 {dimension_numbers = #tpu.dot_dimension_numbers<[1], [0], [0], [1], [0, 0, 1, 1], [], []>} : vector<2x128xf32>, vector<128x512xf32>, vector<2x512xf32> -> vector<2x512xf32>
    %436 = arith.addf %432, %435 : vector<2x512xf32>
    %437 = vector.extract_strided_slice %436 {offsets = [0, 0], sizes = [2, 128], strides = [1, 1]} : vector<2x512xf32> to vector<2x128xf32>
    %438 = arith.negf %437 : vector<2x128xf32>
    %439 = math.exp %438 : vector<2x128xf32>
    %cst_241 = arith.constant 1.000000e+00 : f32
    %440 = vector.broadcast %cst_241 : f32 to vector<2x128xf32>
    %441 = arith.addf %440, %439 : vector<2x128xf32>
    %442 = arith.divf %440, %441 : vector<2x128xf32>
    %443 = vector.extract_strided_slice %436 {offsets = [0, 128], sizes = [2, 128], strides = [1, 1]} : vector<2x512xf32> to vector<2x128xf32>
    %444 = arith.negf %443 : vector<2x128xf32>
    %445 = math.exp %444 : vector<2x128xf32>
    %cst_242 = arith.constant 1.000000e+00 : f32
    %446 = vector.broadcast %cst_242 : f32 to vector<2x128xf32>
    %447 = arith.addf %446, %445 : vector<2x128xf32>
    %448 = arith.divf %446, %447 : vector<2x128xf32>
    %449 = vector.extract_strided_slice %436 {offsets = [0, 256], sizes = [2, 128], strides = [1, 1]} : vector<2x512xf32> to vector<2x128xf32>
    %450 = math.tanh %449 : vector<2x128xf32>
    %451 = vector.extract_strided_slice %436 {offsets = [0, 384], sizes = [2, 128], strides = [1, 1]} : vector<2x512xf32> to vector<2x128xf32>
    %452 = arith.negf %451 : vector<2x128xf32>
    %453 = math.exp %452 : vector<2x128xf32>
    %cst_243 = arith.constant 1.000000e+00 : f32
    %454 = vector.broadcast %cst_243 : f32 to vector<2x128xf32>
    %455 = arith.addf %454, %453 : vector<2x128xf32>
    %456 = arith.divf %454, %455 : vector<2x128xf32>
    %c0_244 = arith.constant 0 : index
    %c0_245 = arith.constant 0 : index
    %457 = vector.load %arg7[%c0_244, %c0_245] : memref<2x128xf32, #tpu.memory_space<vmem>>, vector<2x128xf32>
    %458 = arith.mulf %448, %457 : vector<2x128xf32>
    %459 = arith.mulf %442, %450 : vector<2x128xf32>
    %460 = arith.addf %458, %459 : vector<2x128xf32>
    %461 = math.tanh %460 : vector<2x128xf32>
    %462 = arith.mulf %456, %461 : vector<2x128xf32>
    %c0_246 = arith.constant 0 : index
    %c0_247 = arith.constant 0 : index
    %463 = vector.load %arg7[%c0_246, %c0_247] : memref<2x128xf32, #tpu.memory_space<vmem>>, vector<2x128xf32>
    tpu.vector_store %arg7[%c0_246, %c0_247], %460 {strides = array<i32>} : memref<2x128xf32, #tpu.memory_space<vmem>>, vector<2x128xf32>,
    %c0_248 = arith.constant 0 : index
    %c0_249 = arith.constant 0 : index
    %464 = vector.load %arg6[%c0_248, %c0_249] : memref<2x128xf32, #tpu.memory_space<vmem>>, vector<2x128xf32>
    tpu.vector_store %arg6[%c0_248, %c0_249], %462 {strides = array<i32>} : memref<2x128xf32, #tpu.memory_space<vmem>>, vector<2x128xf32>,
    %465 = vector.extract_strided_slice %462 {offsets = [0, 0], sizes = [2, 64], strides = [1, 1]} : vector<2x128xf32> to vector<2x64xf32>
    %466 = arith.index_cast %c6_i32_230 : i32 to index
    %c0_250 = arith.constant 0 : index
    %c0_251 = arith.constant 0 : index
    %467 = vector.load %arg4[%466, %c0_250, %c0_251] : memref<8x2x128xf32, #tpu.memory_space<vmem>>, vector<1x2x64xf32>
    %468 = vector.shape_cast %467 : vector<1x2x64xf32> to vector<2x64xf32>
    %469 = vector.shape_cast %465 : vector<2x64xf32> to vector<1x2x64xf32>
    tpu.vector_store %arg4[%466, %c0_250, %c0_251], %469 {strides = array<i32>} : memref<8x2x128xf32, #tpu.memory_space<vmem>>, vector<1x2x64xf32>,
    %470 = vector.extract_strided_slice %462 {offsets = [0, 64], sizes = [2, 64], strides = [1, 1]} : vector<2x128xf32> to vector<2x64xf32>
    %c7_i32_252 = arith.constant 7 : i32
    %471 = arith.subi %c7_i32_252, %c6_i32_230 : i32
    %472 = arith.index_cast %471 : i32 to index
    %c0_253 = arith.constant 0 : index
    %c64_254 = arith.constant 64 : index
    %473 = vector.load %arg4[%472, %c0_253, %c64_254] : memref<8x2x128xf32, #tpu.memory_space<vmem>>, vector<1x2x64xf32>
    %474 = vector.shape_cast %473 : vector<1x2x64xf32> to vector<2x64xf32>
    %475 = vector.shape_cast %470 : vector<2x64xf32> to vector<1x2x64xf32>
    tpu.vector_store %arg4[%472, %c0_253, %c64_254], %475 {strides = array<i32>} : memref<8x2x128xf32, #tpu.memory_space<vmem>>, vector<1x2x64xf32>,
    %c7_i32_255 = arith.constant 7 : i32
    %476 = arith.index_cast %c7_i32_255 : i32 to index
    %c0_256 = arith.constant 0 : index
    %c0_257 = arith.constant 0 : index
    %477 = vector.load %arg5[%476, %c0_256, %c0_257] : memref<8x2x512xf32, #tpu.memory_space<vmem>>, vector<1x2x512xf32>
    %478 = vector.shape_cast %477 : vector<1x2x512xf32> to vector<2x512xf32>
    %c7_i32_258 = arith.constant 7 : i32
    %479 = arith.subi %c7_i32_258, %c7_i32_255 : i32
    %480 = arith.index_cast %479 : i32 to index
    %c0_259 = arith.constant 0 : index
    %c0_260 = arith.constant 0 : index
    %481 = vector.load %arg5[%480, %c0_259, %c0_260] : memref<8x2x512xf32, #tpu.memory_space<vmem>>, vector<1x2x512xf32>
    %482 = vector.shape_cast %481 : vector<1x2x512xf32> to vector<2x512xf32>
    %483 = arith.select %118, %478, %482 : vector<2x512xi1>, vector<2x512xf32>
    %c0_261 = arith.constant 0 : index
    %c0_262 = arith.constant 0 : index
    %484 = vector.load %arg6[%c0_261, %c0_262] : memref<2x128xf32, #tpu.memory_space<vmem>>, vector<2x128xf32>
    %c0_263 = arith.constant 0 : index
    %c0_264 = arith.constant 0 : index
    %485 = vector.load %arg2[%c0_263, %c0_264] : memref<128x512xf32, #tpu.memory_space<vmem>>, vector<128x512xf32>
    %cst_265 = arith.constant dense<0.000000e+00> : vector<2x512xf32>
    %486 = tpu.matmul %484, %485, %cst_265 {dimension_numbers = #tpu.dot_dimension_numbers<[1], [0], [0], [1], [0, 0, 1, 1], [], []>} : vector<2x128xf32>, vector<128x512xf32>, vector<2x512xf32> -> vector<2x512xf32>
    %487 = arith.addf %483, %486 : vector<2x512xf32>
    %488 = vector.extract_strided_slice %487 {offsets = [0, 0], sizes = [2, 128], strides = [1, 1]} : vector<2x512xf32> to vector<2x128xf32>
    %489 = arith.negf %488 : vector<2x128xf32>
    %490 = math.exp %489 : vector<2x128xf32>
    %cst_266 = arith.constant 1.000000e+00 : f32
    %491 = vector.broadcast %cst_266 : f32 to vector<2x128xf32>
    %492 = arith.addf %491, %490 : vector<2x128xf32>
    %493 = arith.divf %491, %492 : vector<2x128xf32>
    %494 = vector.extract_strided_slice %487 {offsets = [0, 128], sizes = [2, 128], strides = [1, 1]} : vector<2x512xf32> to vector<2x128xf32>
    %495 = arith.negf %494 : vector<2x128xf32>
    %496 = math.exp %495 : vector<2x128xf32>
    %cst_267 = arith.constant 1.000000e+00 : f32
    %497 = vector.broadcast %cst_267 : f32 to vector<2x128xf32>
    %498 = arith.addf %497, %496 : vector<2x128xf32>
    %499 = arith.divf %497, %498 : vector<2x128xf32>
    %500 = vector.extract_strided_slice %487 {offsets = [0, 256], sizes = [2, 128], strides = [1, 1]} : vector<2x512xf32> to vector<2x128xf32>
    %501 = math.tanh %500 : vector<2x128xf32>
    %502 = vector.extract_strided_slice %487 {offsets = [0, 384], sizes = [2, 128], strides = [1, 1]} : vector<2x512xf32> to vector<2x128xf32>
    %503 = arith.negf %502 : vector<2x128xf32>
    %504 = math.exp %503 : vector<2x128xf32>
    %cst_268 = arith.constant 1.000000e+00 : f32
    %505 = vector.broadcast %cst_268 : f32 to vector<2x128xf32>
    %506 = arith.addf %505, %504 : vector<2x128xf32>
    %507 = arith.divf %505, %506 : vector<2x128xf32>
    %c0_269 = arith.constant 0 : index
    %c0_270 = arith.constant 0 : index
    %508 = vector.load %arg7[%c0_269, %c0_270] : memref<2x128xf32, #tpu.memory_space<vmem>>, vector<2x128xf32>
    %509 = arith.mulf %499, %508 : vector<2x128xf32>
    %510 = arith.mulf %493, %501 : vector<2x128xf32>
    %511 = arith.addf %509, %510 : vector<2x128xf32>
    %512 = math.tanh %511 : vector<2x128xf32>
    %513 = arith.mulf %507, %512 : vector<2x128xf32>
    %c0_271 = arith.constant 0 : index
    %c0_272 = arith.constant 0 : index
    %514 = vector.load %arg7[%c0_271, %c0_272] : memref<2x128xf32, #tpu.memory_space<vmem>>, vector<2x128xf32>
    tpu.vector_store %arg7[%c0_271, %c0_272], %511 {strides = array<i32>} : memref<2x128xf32, #tpu.memory_space<vmem>>, vector<2x128xf32>,
    %c0_273 = arith.constant 0 : index
    %c0_274 = arith.constant 0 : index
    %515 = vector.load %arg6[%c0_273, %c0_274] : memref<2x128xf32, #tpu.memory_space<vmem>>, vector<2x128xf32>
    tpu.vector_store %arg6[%c0_273, %c0_274], %513 {strides = array<i32>} : memref<2x128xf32, #tpu.memory_space<vmem>>, vector<2x128xf32>,
    %516 = vector.extract_strided_slice %513 {offsets = [0, 0], sizes = [2, 64], strides = [1, 1]} : vector<2x128xf32> to vector<2x64xf32>
    %517 = arith.index_cast %c7_i32_255 : i32 to index
    %c0_275 = arith.constant 0 : index
    %c0_276 = arith.constant 0 : index
    %518 = vector.load %arg4[%517, %c0_275, %c0_276] : memref<8x2x128xf32, #tpu.memory_space<vmem>>, vector<1x2x64xf32>
    %519 = vector.shape_cast %518 : vector<1x2x64xf32> to vector<2x64xf32>
    %520 = vector.shape_cast %516 : vector<2x64xf32> to vector<1x2x64xf32>
    tpu.vector_store %arg4[%517, %c0_275, %c0_276], %520 {strides = array<i32>} : memref<8x2x128xf32, #tpu.memory_space<vmem>>, vector<1x2x64xf32>,
    %521 = vector.extract_strided_slice %513 {offsets = [0, 64], sizes = [2, 64], strides = [1, 1]} : vector<2x128xf32> to vector<2x64xf32>
    %c7_i32_277 = arith.constant 7 : i32
    %522 = arith.subi %c7_i32_277, %c7_i32_255 : i32
    %523 = arith.index_cast %522 : i32 to index
    %c0_278 = arith.constant 0 : index
    %c64_279 = arith.constant 64 : index
    %524 = vector.load %arg4[%523, %c0_278, %c64_279] : memref<8x2x128xf32, #tpu.memory_space<vmem>>, vector<1x2x64xf32>
    %525 = vector.shape_cast %524 : vector<1x2x64xf32> to vector<2x64xf32>
    %526 = vector.shape_cast %521 : vector<2x64xf32> to vector<1x2x64xf32>
    tpu.vector_store %arg4[%523, %c0_278, %c64_279], %526 {strides = array<i32>} : memref<8x2x128xf32, #tpu.memory_space<vmem>>, vector<1x2x64xf32>,
    %c8_i32_280 = arith.constant 8 : i32
    return
  }
}

</mosaic_0001>

<llo_original>
// kernel: tpu_custom_call.1
$region0: #{tpu_custom_call.1}
  #allocation0 [shape = 'u32[]', space=smem, size = 0x4, offset = 0x4, fixed_abs, tag = 'smem constant byte address 0x4 - core index']
  #allocation1 [shape = 'u32[144,128]{1,0:T(1,128)}', space=vmem, size = 0x12000, scoped, tag = 'internal scratch']
  #allocation2 [shape = 'f32[8,2,512]{2,1,0:T(2,128)}', space=vmem, size = 0x8000, scoped, tag = 'scratch operand']
  #allocation3 [shape = 'f32[2,128]{1,0:T(2,128)}', space=vmem, size = 0x400, scoped, tag = 'scratch operand']
  #allocation4 [shape = 'f32[2,128]{1,0:T(2,128)}', space=vmem, size = 0x400, scoped, tag = 'scratch operand']
  %s0 = inlined_call_operand.hbm [shape: f32[8,2,16], index: 0, kind: input, shape index: {}]
  %s1 = inlined_call_operand.hbm [shape: f32[16,512], index: 1, kind: input, shape index: {}]
  %s2 = inlined_call_operand.hbm [shape: f32[128,512], index: 2, kind: input, shape index: {}]
  %s3 = inlined_call_operand.vmem [shape: f32[1,512], index: 3, kind: input, shape index: {}]
  %s4 = inlined_call_operand.hbm [shape: f32[8,2,128], index: 4, kind: output, shape index: {}]
  %s5 = sld [smem:[#allocation0]]
  $region38: #{tpu_custom_call.1} parent=0
    _
  %s7 = ssub.s32 1, %s5
  %s8 = scalar_select 0, %s7, %s5
  $region1: #{tpu_custom_call.1} parent=0
    #allocation5 [shape = 'u8[8192]{0}', space=vmem, size = 0x2000, scoped, tag = 'input window, operand 0, single buffered']
    #allocation6 [shape = 's32[1]{0}', space=sflag, size = 0x4, scoped, tag = 'scoped memory for tpu_custom_call.1']
    #allocation7 [shape = 's32[1]{0}', space=sflag, size = 0x4, scoped, tag = 'scoped memory for tpu_custom_call.1']
    #allocation8 [shape = 'u8[32768]{0}', space=vmem, size = 0x8000, scoped, tag = 'input window, operand 1, single buffered']
    #allocation9 [shape = 's32[1]{0}', space=sflag, size = 0x4, scoped, tag = 'scoped memory for tpu_custom_call.1']
    #allocation10 [shape = 'u8[262144]{0}', space=vmem, size = 0x40000, scoped, tag = 'input window, operand 2, single buffered']
    #allocation11 [shape = 'u8[8192]{0}', space=vmem, size = 0x2000, scoped, tag = 'output window, operand 0, single buffered']
    %9 = vsyncpa [#allocation6], 0
    %10 = vsyncpa [#allocation9], 0
    %11 = vsyncpa [#allocation7], 0
    // Predicated region
    $region2: #{tpu_custom_call.1} parent=1 // pred_check
      _
    $region3: #{tpu_custom_call.1} parent=1 // pred_check_branch
      %13 = sbr.rel (0) target = $region5
    $region4: #{tpu_custom_call.1} parent=1 // pred_region
      %s15 = ssub.s32 256, 256
      %16 = vsyncadd [#allocation6], %s15
      %s17 = sshll.u32 [#allocation5], 4
      %s18 = int_to_ptr.vmem [resolvable:$true] %s17
      %23 = dma.hbm_to_vmem [thread:$0]  %s0, 256, %s18, [#allocation6], 32, 32, 2
    $region5: #{tpu_custom_call.1} parent=1 // pred_fallthru
      _
    // Predicated region
    $region6: #{tpu_custom_call.1} parent=1 // pred_check
      _
    $region7: #{tpu_custom_call.1} parent=1 // pred_check_branch
      %25 = sbr.rel (0) target = $region9
    $region8: #{tpu_custom_call.1} parent=1 // pred_region
      %s27 = ssub.s32 1024, 1024
      %28 = vsyncadd [#allocation9], %s27
      %s29 = sshll.u32 [#allocation8], 4
      %s30 = int_to_ptr.vmem [resolvable:$true] %s29
      %35 = dma.hbm_to_vmem [thread:$0]  %s1, 1024, %s30, [#allocation9], 512, 512, 32
    $region9: #{tpu_custom_call.1} parent=1 // pred_fallthru
      _
    // Predicated region
    $region10: #{tpu_custom_call.1} parent=1 // pred_check
      _
    $region11: #{tpu_custom_call.1} parent=1 // pred_check_branch
      %37 = sbr.rel (0) target = $region13
    $region12: #{tpu_custom_call.1} parent=1 // pred_region
      %s39 = ssub.s32 8192, 8192
      %40 = vsyncadd [#allocation9], %s39
      %s41 = sshll.u32 [#allocation10], 4
      %s42 = int_to_ptr.vmem [resolvable:$true] %s41
      %47 = dma.hbm_to_vmem [thread:$0]  %s2, 8192, %s42, [#allocation9], 512, 512, 32
    $region13: #{tpu_custom_call.1} parent=1 // pred_fallthru
      _
    // Predicated region
    $region14: #{tpu_custom_call.1} parent=1 // pred_check
      _
    $region15: #{tpu_custom_call.1} parent=1 // pred_check_branch
      %49 = sbr.rel (0) target = $region17
    $region16: #{tpu_custom_call.1} parent=1 // pred_region
      _
    $region17: #{tpu_custom_call.1} parent=1 // pred_fallthru
      _
    // Predicated region
    $region18: #{tpu_custom_call.1} parent=1 // pred_check
      _
    $region19: #{tpu_custom_call.1} parent=1 // pred_check_branch
      %51 = sbr.rel (0) target = $region21
    $region20: #{tpu_custom_call.1} parent=1 // pred_region
      %52 = dma.done [#allocation6], 256
    $region21: #{tpu_custom_call.1} parent=1 // pred_fallthru
      _
    // Predicated region
    $region22: #{tpu_custom_call.1} parent=1 // pred_check
      _
    $region23: #{tpu_custom_call.1} parent=1 // pred_check_branch
      %54 = sbr.rel (0) target = $region25
    $region24: #{tpu_custom_call.1} parent=1 // pred_region
      %55 = dma.done [#allocation9], 1024
    $region25: #{tpu_custom_call.1} parent=1 // pred_fallthru
      _
    // Predicated region
    $region26: #{tpu_custom_call.1} parent=1 // pred_check
      _
    $region27: #{tpu_custom_call.1} parent=1 // pred_check_branch
      %57 = sbr.rel (0) target = $region29
    $region28: #{tpu_custom_call.1} parent=1 // pred_region
      %58 = dma.done [#allocation9], 8192
    $region29: #{tpu_custom_call.1} parent=1 // pred_fallthru
      _
    %v59 = vld [vmem:[#allocation5] sm:$0x3]
    %v60 = vld [vmem:[#allocation8] sm:$0xff]
    %v61 = vld [vmem:[#allocation8 + $0x8] sm:$0xff]
    %v62 = vld [vmem:[#allocation8 + $0x10] sm:$0xff]
    %v63 = vld [vmem:[#allocation8 + $0x18] sm:$0xff]
    %v64 = vld [vmem:[#allocation8 + $0x20] sm:$0xff]
    %v65 = vld [vmem:[#allocation8 + $0x28] sm:$0xff]
    %v66 = vld [vmem:[#allocation8 + $0x30] sm:$0xff]
    %v67 = vld [vmem:[#allocation8 + $0x38] sm:$0xff]
    %v68 = vld [vmem:[%s3] sm:$0xf]
    %v70 = vlaneseq
    %v71 = vshrl.u32 %v70, 7
    %v72 = vsub.s32 0, %v71
    %v73 = vrot.slane %v68, %v72
    %v74 = vlaneseq
    %v75 = vshrl.u32 %v74, 7
    %v76 = vsub.s32 1, %v75
    %v77 = vrot.slane %v68, %v76
    %v78 = vlaneseq
    %v79 = vshrl.u32 %v78, 7
    %v80 = vsub.s32 2, %v79
    %v81 = vrot.slane %v68, %v80
    %v82 = vlaneseq
    %v83 = vshrl.u32 %v82, 7
    %v84 = vsub.s32 3, %v83
    %v85 = vrot.slane %v68, %v84
    %vm90 = vcmask 130048
    %v92 = vsel %vm90, %v59, 0
    %94 = vmatprep.subr.mxu0 %v61
    %95 = vmatpush1.msra.mxu0 %v60
    %96 = vmatprep.subr.mxu0 %v65
    %97 = vmatpush1.msra.mxu0 %v64
    %98 = vmatprep.subr.mxu0 0.0
    %99 = vmatpush1.msra.mxu0 0.0
    %100 = vmatprep.subr.mxu0 0.0
    %101 = vmatpush1.msra.mxu0 0.0
    %102 = vmatprep.subr.mxu0 0.0
    %103 = vmatpush1.msra.mxu0 0.0
    %104 = vmatprep.subr.mxu0 0.0
    %105 = vmatpush1.msra.mxu0 0.0
    %106 = vmatprep.subr.mxu0 0.0
    %107 = vmatpush1.msra.mxu0 0.0
    %108 = vmatprep.subr.mxu0 0.0
    %109 = vmatpush1.msra.mxu0 0.0
    %110 = vmatprep.subr.mxu0 0.0
    %111 = vmatpush1.msra.mxu0 0.0
    %112 = vmatprep.subr.mxu0 0.0
    %113 = vmatpush1.msra.mxu0 0.0
    %114 = vmatprep.subr.mxu0 0.0
    %115 = vmatpush1.msra.mxu0 0.0
    %116 = vmatprep.subr.mxu0 0.0
    %117 = vmatpush1.msra.mxu0 0.0
    %118 = vmatprep.subr.mxu0 0.0
    %119 = vmatpush1.msra.mxu0 0.0
    %120 = vmatprep.subr.mxu0 0.0
    %121 = vmatpush1.msra.mxu0 0.0
    %122 = vmatprep.subr.mxu0 0.0
    %123 = vmatpush1.msra.mxu0 0.0
    %124 = vmatprep.subr.mxu0 0.0
    %125 = vmatpush1.msra.mxu0 0.0
    %126 = vmatprep.subr.mxu0 0.0
    %127 = vmatpush1.msra.mxu0 0.0
    %128 = vmatprep.subr.mxu0 0.0
    %129 = vmatpush1.msra.mxu0 0.0
    %130 = vmatprep.subr.mxu0 0.0
    %131 = vmatpush1.msra.mxu0 0.0
    %132 = vmatprep.subr.mxu0 0.0
    %133 = vmatpush1.msra.mxu0 0.0
    %134 = vmatprep.subr.mxu0 0.0
    %135 = vmatpush1.msra.mxu0 0.0
    %136 = vmatprep.subr.mxu0 0.0
    %137 = vmatpush1.msra.mxu0 0.0
    %138 = vmatprep.subr.mxu0 0.0
    %139 = vmatpush1.msra.mxu0 0.0
    %140 = vmatprep.subr.mxu0 0.0
    %141 = vmatpush1.msra.mxu0 0.0
    %142 = vmatprep.subr.mxu0 0.0
    %143 = vmatpush1.msra.mxu0 0.0
    %144 = vmatprep.subr.mxu0 0.0
    %145 = vmatpush1.msra.mxu0 0.0
    %146 = vmatprep.subr.mxu0 0.0
    %147 = vmatpush1.msra.mxu0 0.0
    %148 = vmatprep.subr.mxu0 0.0
    %149 = vmatpush1.msra.mxu0 0.0
    %150 = vmatprep.subr.mxu0 0.0
    %151 = vmatpush1.msra.mxu0 0.0
    %152 = vmatprep.subr.mxu0 0.0
    %153 = vmatpush1.msra.mxu0 0.0
    %154 = vmatprep.subr.mxu0 0.0
    %155 = vmatpush1.msra.mxu0 0.0
    %156 = vmatprep.subr.mxu0 0.0
    %157 = vmatpush1.msra.mxu0 0.0
    %158 = vmatprep.mubr.f32.mxu0 0.0
    %159 = vmatmul.mubr.f32.gmra.mrb[0].mxu0 %v92
    %v160 = vpop.f32.mrb[0].mxu0
    %v161 = vadd.f32 %v73, %v160
    %v162 = vpop.f32.mrb[0].mxu0
    %v163 = vadd.f32 %v77, %v162
    %164 = vdwg.mxu0
    %165 = vmatprep.subr.mxu0 %v63
    %166 = vmatpush1.msra.mxu0 %v62
    %167 = vmatprep.subr.mxu0 %v67
    %168 = vmatpush1.msra.mxu0 %v66
    %169 = vmatprep.subr.mxu0 0.0
    %170 = vmatpush1.msra.mxu0 0.0
    %171 = vmatprep.subr.mxu0 0.0
    %172 = vmatpush1.msra.mxu0 0.0
    %173 = vmatprep.subr.mxu0 0.0
    %174 = vmatpush1.msra.mxu0 0.0
    %175 = vmatprep.subr.mxu0 0.0
    %176 = vmatpush1.msra.mxu0 0.0
    %177 = vmatprep.subr.mxu0 0.0
    %178 = vmatpush1.msra.mxu0 0.0
    %179 = vmatprep.subr.mxu0 0.0
    %180 = vmatpush1.msra.mxu0 0.0
    %181 = vmatprep.subr.mxu0 0.0
    %182 = vmatpush1.msra.mxu0 0.0
    %183 = vmatprep.subr.mxu0 0.0
    %184 = vmatpush1.msra.mxu0 0.0
    %185 = vmatprep.subr.mxu0 0.0
    %186 = vmatpush1.msra.mxu0 0.0
    %187 = vmatprep.subr.mxu0 0.0
    %188 = vmatpush1.msra.mxu0 0.0
    %189 = vmatprep.subr.mxu0 0.0
    %190 = vmatpush1.msra.mxu0 0.0
    %191 = vmatprep.subr.mxu0 0.0
    %192 = vmatpush1.msra.mxu0 0.0
    %193 = vmatprep.subr.mxu0 0.0
    %194 = vmatpush1.msra.mxu0 0.0
    %195 = vmatprep.subr.mxu0 0.0
    %196 = vmatpush1.msra.mxu0 0.0
    %197 = vmatprep.subr.mxu0 0.0
    %198 = vmatpush1.msra.mxu0 0.0
    %199 = vmatprep.subr.mxu0 0.0
    %200 = vmatpush1.msra.mxu0 0.0
    %201 = vmatprep.subr.mxu0 0.0
    %202 = vmatpush1.msra.mxu0 0.0
    %203 = vmatprep.subr.mxu0 0.0
    %204 = vmatpush1.msra.mxu0 0.0
    %205 = vmatprep.subr.mxu0 0.0
    %206 = vmatpush1.msra.mxu0 0.0
    %207 = vmatprep.subr.mxu0 0.0
    %208 = vmatpush1.msra.mxu0 0.0
    %209 = vmatprep.subr.mxu0 0.0
    %210 = vmatpush1.msra.mxu0 0.0
    %211 = vmatprep.subr.mxu0 0.0
    %212 = vmatpush1.msra.mxu0 0.0
    %213 = vmatprep.subr.mxu0 0.0
    %214 = vmatpush1.msra.mxu0 0.0
    %215 = vmatprep.subr.mxu0 0.0
    %216 = vmatpush1.msra.mxu0 0.0
    %217 = vmatprep.subr.mxu0 0.0
    %218 = vmatpush1.msra.mxu0 0.0
    %219 = vmatprep.subr.mxu0 0.0
    %220 = vmatpush1.msra.mxu0 0.0
    %221 = vmatprep.subr.mxu0 0.0
    %222 = vmatpush1.msra.mxu0 0.0
    %223 = vmatprep.subr.mxu0 0.0
    %224 = vmatpush1.msra.mxu0 0.0
    %225 = vmatprep.subr.mxu0 0.0
    %226 = vmatpush1.msra.mxu0 0.0
    %227 = vmatprep.subr.mxu0 0.0
    %228 = vmatpush1.msra.mxu0 0.0
    %229 = vmatprep.mubr.f32.mxu0 0.0
    %230 = vmatmul.mubr.f32.gmra.mrb[0].mxu0 %v92
    %v231 = vpop.f32.mrb[0].mxu0
    %v232 = vadd.f32 %v81, %v231
    %v233 = vpop.f32.mrb[0].mxu0
    %v234 = vadd.f32 %v85, %v233
    %235 = vdwg.mxu0
    %v240 = vcombine.low %v161, %v163
    %v241 = vcombine.low %v232, %v234
    %v243 = vunpack.c.l.s4 1983009808
    %v244 = vunpack.c.0.s8 %v243
    %v245 = vlaneseq
    %v246 = vshrl.u32 %v245, 7
    %v247 = vsub.s32 %v244, %v246
    %v248 = vrot.slane %v240, %v247
    %v250 = vunpack.c.l.s4 1983009808
    %v251 = vunpack.c.0.s8 %v250
    %v252 = vlaneseq
    %v253 = vshrl.u32 %v252, 7
    %v254 = vsub.s32 %v251, %v253
    %v255 = vrot.slane %v241, %v254
    %v256 = vcombine.low %v248, %v255
    %258 = vst [vmem:[#allocation2] sm:$0xff] %v256
    %s259 = scalar_lea.vmem [#allocation5], 2
    %v260 = vld [vmem:[%s259] sm:$0x3]
    %v261 = vld [vmem:[#allocation8] sm:$0xff]
    %v262 = vld [vmem:[#allocation8 + $0x8] sm:$0xff]
    %v263 = vld [vmem:[#allocation8 + $0x10] sm:$0xff]
    %v264 = vld [vmem:[#allocation8 + $0x18] sm:$0xff]
    %v265 = vld [vmem:[#allocation8 + $0x20] sm:$0xff]
    %v266 = vld [vmem:[#allocation8 + $0x28] sm:$0xff]
    %v267 = vld [vmem:[#allocation8 + $0x30] sm:$0xff]
    %v268 = vld [vmem:[#allocation8 + $0x38] sm:$0xff]
    %v269 = vld [vmem:[%s3] sm:$0xf]
    %v271 = vlaneseq
    %v272 = vshrl.u32 %v271, 7
    %v273 = vsub.s32 0, %v272
    %v274 = vrot.slane %v269, %v273
    %v275 = vlaneseq
    %v276 = vshrl.u32 %v275, 7
    %v277 = vsub.s32 1, %v276
    %v278 = vrot.slane %v269, %v277
    %v279 = vlaneseq
    %v280 = vshrl.u32 %v279, 7
    %v281 = vsub.s32 2, %v280
    %v282 = vrot.slane %v269, %v281
    %v283 = vlaneseq
    %v284 = vshrl.u32 %v283, 7
    %v285 = vsub.s32 3, %v284
    %v286 = vrot.slane %v269, %v285
    %v292 = vsel %vm90, %v260, 0
    %294 = vmatprep.subr.mxu0 %v262
    %295 = vmatpush1.msra.mxu0 %v261
    %296 = vmatprep.subr.mxu0 %v266
    %297 = vmatpush1.msra.mxu0 %v265
    %298 = vmatprep.subr.mxu0 0.0
    %299 = vmatpush1.msra.mxu0 0.0
    %300 = vmatprep.subr.mxu0 0.0
    %301 = vmatpush1.msra.mxu0 0.0
    %302 = vmatprep.subr.mxu0 0.0
    %303 = vmatpush1.msra.mxu0 0.0
    %304 = vmatprep.subr.mxu0 0.0
    %305 = vmatpush1.msra.mxu0 0.0
    %306 = vmatprep.subr.mxu0 0.0
    %307 = vmatpush1.msra.mxu0 0.0
    %308 = vmatprep.subr.mxu0 0.0
    %309 = vmatpush1.msra.mxu0 0.0
    %310 = vmatprep.subr.mxu0 0.0
    %311 = vmatpush1.msra.mxu0 0.0
    %312 = vmatprep.subr.mxu0 0.0
    %313 = vmatpush1.msra.mxu0 0.0
    %314 = vmatprep.subr.mxu0 0.0
    %315 = vmatpush1.msra.mxu0 0.0
    %316 = vmatprep.subr.mxu0 0.0
    %317 = vmatpush1.msra.mxu0 0.0
    %318 = vmatprep.subr.mxu0 0.0
    %319 = vmatpush1.msra.mxu0 0.0
    %320 = vmatprep.subr.mxu0 0.0
    %321 = vmatpush1.msra.mxu0 0.0
    %322 = vmatprep.subr.mxu0 0.0
    %323 = vmatpush1.msra.mxu0 0.0
    %324 = vmatprep.subr.mxu0 0.0
    %325 = vmatpush1.msra.mxu0 0.0
    %326 = vmatprep.subr.mxu0 0.0
    %327 = vmatpush1.msra.mxu0 0.0
    %328 = vmatprep.subr.mxu0 0.0
    %329 = vmatpush1.msra.mxu0 0.0
    %330 = vmatprep.subr.mxu0 0.0
    %331 = vmatpush1.msra.mxu0 0.0
    %332 = vmatprep.subr.mxu0 0.0
    %333 = vmatpush1.msra.mxu0 0.0
    %334 = vmatprep.subr.mxu0 0.0
    %335 = vmatpush1.msra.mxu0 0.0
    %336 = vmatprep.subr.mxu0 0.0
    %337 = vmatpush1.msra.mxu0 0.0
    %338 = vmatprep.subr.mxu0 0.0
    %339 = vmatpush1.msra.mxu0 0.0
    %340 = vmatprep.subr.mxu0 0.0
    %341 = vmatpush1.msra.mxu0 0.0
    %342 = vmatprep.subr.mxu0 0.0
    %343 = vmatpush1.msra.mxu0 0.0
    %344 = vmatprep.subr.mxu0 0.0
    %345 = vmatpush1.msra.mxu0 0.0
    %346 = vmatprep.subr.mxu0 0.0
    %347 = vmatpush1.msra.mxu0 0.0
    %348 = vmatprep.subr.mxu0 0.0
    %349 = vmatpush1.msra.mxu0 0.0
    %350 = vmatprep.subr.mxu0 0.0
    %351 = vmatpush1.msra.mxu0 0.0
    %352 = vmatprep.subr.mxu0 0.0
    %353 = vmatpush1.msra.mxu0 0.0
    %354 = vmatprep.subr.mxu0 0.0
    %355 = vmatpush1.msra.mxu0 0.0
    %356 = vmatprep.subr.mxu0 0.0
    %357 = vmatpush1.msra.mxu0 0.0
    %358 = vmatprep.mubr.f32.mxu0 0.0
    %359 = vmatmul.mubr.f32.gmra.mrb[0].mxu0 %v292
    %v360 = vpop.f32.mrb[0].mxu0
    %v361 = vadd.f32 %v274, %v360
    %v362 = vpop.f32.mrb[0].mxu0
    %v363 = vadd.f32 %v278, %v362
    %364 = vdwg.mxu0
    %365 = vmatprep.subr.mxu0 %v264
    %366 = vmatpush1.msra.mxu0 %v263
    %367 = vmatprep.subr.mxu0 %v268
    %368 = vmatpush1.msra.mxu0 %v267
    %369 = vmatprep.subr.mxu0 0.0
    %370 = vmatpush1.msra.mxu0 0.0
    %371 = vmatprep.subr.mxu0 0.0
    %372 = vmatpush1.msra.mxu0 0.0
    %373 = vmatprep.subr.mxu0 0.0
    %374 = vmatpush1.msra.mxu0 0.0
    %375 = vmatprep.subr.mxu0 0.0
    %376 = vmatpush1.msra.mxu0 0.0
    %377 = vmatprep.subr.mxu0 0.0
    %378 = vmatpush1.msra.mxu0 0.0
    %379 = vmatprep.subr.mxu0 0.0
    %380 = vmatpush1.msra.mxu0 0.0
    %381 = vmatprep.subr.mxu0 0.0
    %382 = vmatpush1.msra.mxu0 0.0
    %383 = vmatprep.subr.mxu0 0.0
    %384 = vmatpush1.msra.mxu0 0.0
    %385 = vmatprep.subr.mxu0 0.0
    %386 = vmatpush1.msra.mxu0 0.0
    %387 = vmatprep.subr.mxu0 0.0
    %388 = vmatpush1.msra.mxu0 0.0
    %389 = vmatprep.subr.mxu0 0.0
    %390 = vmatpush1.msra.mxu0 0.0
    %391 = vmatprep.subr.mxu0 0.0
    %392 = vmatpush1.msra.mxu0 0.0
    %393 = vmatprep.subr.mxu0 0.0
    %394 = vmatpush1.msra.mxu0 0.0
    %395 = vmatprep.subr.mxu0 0.0
    %396 = vmatpush1.msra.mxu0 0.0
    %397 = vmatprep.subr.mxu0 0.0
    %398 = vmatpush1.msra.mxu0 0.0
    %399 = vmatprep.subr.mxu0 0.0
    %400 = vmatpush1.msra.mxu0 0.0
    %401 = vmatprep.subr.mxu0 0.0
    %402 = vmatpush1.msra.mxu0 0.0
    %403 = vmatprep.subr.mxu0 0.0
    %404 = vmatpush1.msra.mxu0 0.0
    %405 = vmatprep.subr.mxu0 0.0
    %406 = vmatpush1.msra.mxu0 0.0
    %407 = vmatprep.subr.mxu0 0.0
    %408 = vmatpush1.msra.mxu0 0.0
    %409 = vmatprep.subr.mxu0 0.0
    %410 = vmatpush1.msra.mxu0 0.0
    %411 = vmatprep.subr.mxu0 0.0
    %412 = vmatpush1.msra.mxu0 0.0
    %413 = vmatprep.subr.mxu0 0.0
    %414 = vmatpush1.msra.mxu0 0.0
    %415 = vmatprep.subr.mxu0 0.0
    %416 = vmatpush1.msra.mxu0 0.0
    %417 = vmatprep.subr.mxu0 0.0
    %418 = vmatpush1.msra.mxu0 0.0
    %419 = vmatprep.subr.mxu0 0.0
    %420 = vmatpush1.msra.mxu0 0.0
    %421 = vmatprep.subr.mxu0 0.0
    %422 = vmatpush1.msra.mxu0 0.0
    %423 = vmatprep.subr.mxu0 0.0
    %424 = vmatpush1.msra.mxu0 0.0
    %425 = vmatprep.subr.mxu0 0.0
    %426 = vmatpush1.msra.mxu0 0.0
    %427 = vmatprep.subr.mxu0 0.0
    %428 = vmatpush1.msra.mxu0 0.0
    %429 = vmatprep.mubr.f32.mxu0 0.0
    %430 = vmatmul.mubr.f32.gmra.mrb[0].mxu0 %v292
    %v431 = vpop.f32.mrb[0].mxu0
    %v432 = vadd.f32 %v282, %v431
    %v433 = vpop.f32.mrb[0].mxu0
    %v434 = vadd.f32 %v286, %v433
    %435 = vdwg.mxu0
    %v440 = vcombine.low %v361, %v363
    %v441 = vcombine.low %v432, %v434
    %v443 = vunpack.c.l.s4 1983009808
    %v444 = vunpack.c.0.s8 %v443
    %v445 = vlaneseq
    %v446 = vshrl.u32 %v445, 7
    %v447 = vsub.s32 %v444, %v446
    %v448 = vrot.slane %v440, %v447
    %v450 = vunpack.c.l.s4 1983009808
    %v451 = vunpack.c.0.s8 %v450
    %v452 = vlaneseq
    %v453 = vshrl.u32 %v452, 7
    %v454 = vsub.s32 %v451, %v453
    %v455 = vrot.slane %v441, %v454
    %v456 = vcombine.low %v448, %v455
    %s458 = scalar_lea.vmem [#allocation2], 8
    %459 = vst [vmem:[%s458] sm:$0xff] %v456
    %s460 = scalar_lea.vmem [#allocation5], 4
    %v461 = vld [vmem:[%s460] sm:$0x3]
    %v462 = vld [vmem:[#allocation8] sm:$0xff]
    %v463 = vld [vmem:[#allocation8 + $0x8] sm:$0xff]
    %v464 = vld [vmem:[#allocation8 + $0x10] sm:$0xff]
    %v465 = vld [vmem:[#allocation8 + $0x18] sm:$0xff]
    %v466 = vld [vmem:[#allocation8 + $0x20] sm:$0xff]
    %v467 = vld [vmem:[#allocation8 + $0x28] sm:$0xff]
    %v468 = vld [vmem:[#allocation8 + $0x30] sm:$0xff]
    %v469 = vld [vmem:[#allocation8 + $0x38] sm:$0xff]
    %v470 = vld [vmem:[%s3] sm:$0xf]
    %v472 = vlaneseq
    %v473 = vshrl.u32 %v472, 7
    %v474 = vsub.s32 0, %v473
    %v475 = vrot.slane %v470, %v474
    %v476 = vlaneseq
    %v477 = vshrl.u32 %v476, 7
    %v478 = vsub.s32 1, %v477
    %v479 = vrot.slane %v470, %v478
    %v480 = vlaneseq
    %v481 = vshrl.u32 %v480, 7
    %v482 = vsub.s32 2, %v481
    %v483 = vrot.slane %v470, %v482
    %v484 = vlaneseq
    %v485 = vshrl.u32 %v484, 7
    %v486 = vsub.s32 3, %v485
    %v487 = vrot.slane %v470, %v486
    %v493 = vsel %vm90, %v461, 0
    %495 = vmatprep.subr.mxu0 %v463
    %496 = vmatpush1.msra.mxu0 %v462
    %497 = vmatprep.subr.mxu0 %v467
    %498 = vmatpush1.msra.mxu0 %v466
    %499 = vmatprep.subr.mxu0 0.0
    %500 = vmatpush1.msra.mxu0 0.0
    %501 = vmatprep.subr.mxu0 0.0
    %502 = vmatpush1.msra.mxu0 0.0
    %503 = vmatprep.subr.mxu0 0.0
    %504 = vmatpush1.msra.mxu0 0.0
    %505 = vmatprep.subr.mxu0 0.0
    %506 = vmatpush1.msra.mxu0 0.0
    %507 = vmatprep.subr.mxu0 0.0
    %508 = vmatpush1.msra.mxu0 0.0
    %509 = vmatprep.subr.mxu0 0.0
    %510 = vmatpush1.msra.mxu0 0.0
    %511 = vmatprep.subr.mxu0 0.0
    %512 = vmatpush1.msra.mxu0 0.0
    %513 = vmatprep.subr.mxu0 0.0
    %514 = vmatpush1.msra.mxu0 0.0
    %515 = vmatprep.subr.mxu0 0.0
    %516 = vmatpush1.msra.mxu0 0.0
    %517 = vmatprep.subr.mxu0 0.0
    %518 = vmatpush1.msra.mxu0 0.0
    %519 = vmatprep.subr.mxu0 0.0
    %520 = vmatpush1.msra.mxu0 0.0
    %521 = vmatprep.subr.mxu0 0.0
    %522 = vmatpush1.msra.mxu0 0.0
    %523 = vmatprep.subr.mxu0 0.0
    %524 = vmatpush1.msra.mxu0 0.0
    %525 = vmatprep.subr.mxu0 0.0
    %526 = vmatpush1.msra.mxu0 0.0
    %527 = vmatprep.subr.mxu0 0.0
    %528 = vmatpush1.msra.mxu0 0.0
    %529 = vmatprep.subr.mxu0 0.0
    %530 = vmatpush1.msra.mxu0 0.0
    %531 = vmatprep.subr.mxu0 0.0
    %532 = vmatpush1.msra.mxu0 0.0
    %533 = vmatprep.subr.mxu0 0.0
    %534 = vmatpush1.msra.mxu0 0.0
    %535 = vmatprep.subr.mxu0 0.0
    %536 = vmatpush1.msra.mxu0 0.0
    %537 = vmatprep.subr.mxu0 0.0
    %538 = vmatpush1.msra.mxu0 0.0
    %539 = vmatprep.subr.mxu0 0.0
    %540 = vmatpush1.msra.mxu0 0.0
    %541 = vmatprep.subr.mxu0 0.0
    %542 = vmatpush1.msra.mxu0 0.0
    %543 = vmatprep.subr.mxu0 0.0
    %544 = vmatpush1.msra.mxu0 0.0
    %545 = vmatprep.subr.mxu0 0.0
    %546 = vmatpush1.msra.mxu0 0.0
    %547 = vmatprep.subr.mxu0 0.0
    %548 = vmatpush1.msra.mxu0 0.0
    %549 = vmatprep.subr.mxu0 0.0
    %550 = vmatpush1.msra.mxu0 0.0
    %551 = vmatprep.subr.mxu0 0.0
    %552 = vmatpush1.msra.mxu0 0.0
    %553 = vmatprep.subr.mxu0 0.0
    %554 = vmatpush1.msra.mxu0 0.0
    %555 = vmatprep.subr.mxu0 0.0
    %556 = vmatpush1.msra.mxu0 0.0
    %557 = vmatprep.subr.mxu0 0.0
    %558 = vmatpush1.msra.mxu0 0.0
    %559 = vmatprep.mubr.f32.mxu0 0.0
    %560 = vmatmul.mubr.f32.gmra.mrb[0].mxu0 %v493
    %v561 = vpop.f32.mrb[0].mxu0
    %v562 = vadd.f32 %v475, %v561
    %v563 = vpop.f32.mrb[0].mxu0
    %v564 = vadd.f32 %v479, %v563
    %565 = vdwg.mxu0
    %566 = vmatprep.subr.mxu0 %v465
    %567 = vmatpush1.msra.mxu0 %v464
    %568 = vmatprep.subr.mxu0 %v469
    %569 = vmatpush1.msra.mxu0 %v468
    %570 = vmatprep.subr.mxu0 0.0
    %571 = vmatpush1.msra.mxu0 0.0
    %572 = vmatprep.subr.mxu0 0.0
    %573 = vmatpush1.msra.mxu0 0.0
    %574 = vmatprep.subr.mxu0 0.0
    %575 = vmatpush1.msra.mxu0 0.0
    %576 = vmatprep.subr.mxu0 0.0
    %577 = vmatpush1.msra.mxu0 0.0
    %578 = vmatprep.subr.mxu0 0.0
    %579 = vmatpush1.msra.mxu0 0.0
    %580 = vmatprep.subr.mxu0 0.0
    %581 = vmatpush1.msra.mxu0 0.0
    %582 = vmatprep.subr.mxu0 0.0
    %583 = vmatpush1.msra.mxu0 0.0
    %584 = vmatprep.subr.mxu0 0.0
    %585 = vmatpush1.msra.mxu0 0.0
    %586 = vmatprep.subr.mxu0 0.0
    %587 = vmatpush1.msra.mxu0 0.0
    %588 = vmatprep.subr.mxu0 0.0
    %589 = vmatpush1.msra.mxu0 0.0
    %590 = vmatprep.subr.mxu0 0.0
    %591 = vmatpush1.msra.mxu0 0.0
    %592 = vmatprep.subr.mxu0 0.0
    %593 = vmatpush1.msra.mxu0 0.0
    %594 = vmatprep.subr.mxu0 0.0
    %595 = vmatpush1.msra.mxu0 0.0
    %596 = vmatprep.subr.mxu0 0.0
    %597 = vmatpush1.msra.mxu0 0.0
    %598 = vmatprep.subr.mxu0 0.0
    %599 = vmatpush1.msra.mxu0 0.0
    %600 = vmatprep.subr.mxu0 0.0
    %601 = vmatpush1.msra.mxu0 0.0
    %602 = vmatprep.subr.mxu0 0.0
    %603 = vmatpush1.msra.mxu0 0.0
    %604 = vmatprep.subr.mxu0 0.0
    %605 = vmatpush1.msra.mxu0 0.0
    %606 = vmatprep.subr.mxu0 0.0
    %607 = vmatpush1.msra.mxu0 0.0
    %608 = vmatprep.subr.mxu0 0.0
    %609 = vmatpush1.msra.mxu0 0.0
    %610 = vmatprep.subr.mxu0 0.0
    %611 = vmatpush1.msra.mxu0 0.0
    %612 = vmatprep.subr.mxu0 0.0
    %613 = vmatpush1.msra.mxu0 0.0
    %614 = vmatprep.subr.mxu0 0.0
    %615 = vmatpush1.msra.mxu0 0.0
    %616 = vmatprep.subr.mxu0 0.0
    %617 = vmatpush1.msra.mxu0 0.0
    %618 = vmatprep.subr.mxu0 0.0
    %619 = vmatpush1.msra.mxu0 0.0
    %620 = vmatprep.subr.mxu0 0.0
    %621 = vmatpush1.msra.mxu0 0.0
    %622 = vmatprep.subr.mxu0 0.0
    %623 = vmatpush1.msra.mxu0 0.0
    %624 = vmatprep.subr.mxu0 0.0
    %625 = vmatpush1.msra.mxu0 0.0
    %626 = vmatprep.subr.mxu0 0.0
    %627 = vmatpush1.msra.mxu0 0.0
    %628 = vmatprep.subr.mxu0 0.0
    %629 = vmatpush1.msra.mxu0 0.0
    %630 = vmatprep.mubr.f32.mxu0 0.0
    %631 = vmatmul.mubr.f32.gmra.mrb[0].mxu0 %v493
    %v632 = vpop.f32.mrb[0].mxu0
    %v633 = vadd.f32 %v483, %v632
    %v634 = vpop.f32.mrb[0].mxu0
    %v635 = vadd.f32 %v487, %v634
    %636 = vdwg.mxu0
    %v641 = vcombine.low %v562, %v564
    %v642 = vcombine.low %v633, %v635
    %v644 = vunpack.c.l.s4 1983009808
    %v645 = vunpack.c.0.s8 %v644
    %v646 = vlaneseq
    %v647 = vshrl.u32 %v646, 7
    %v648 = vsub.s32 %v645, %v647
    %v649 = vrot.slane %v641, %v648
    %v651 = vunpack.c.l.s4 1983009808
    %v652 = vunpack.c.0.s8 %v651
    %v653 = vlaneseq
    %v654 = vshrl.u32 %v653, 7
    %v655 = vsub.s32 %v652, %v654
    %v656 = vrot.slane %v642, %v655
    %v657 = vcombine.low %v649, %v656
    %s659 = scalar_lea.vmem [#allocation2], 16
    %660 = vst [vmem:[%s659] sm:$0xff] %v657
    %s661 = scalar_lea.vmem [#allocation5], 6
    %v662 = vld [vmem:[%s661] sm:$0x3]
    %v663 = vld [vmem:[#allocation8] sm:$0xff]
    %v664 = vld [vmem:[#allocation8 + $0x8] sm:$0xff]
    %v665 = vld [vmem:[#allocation8 + $0x10] sm:$0xff]
    %v666 = vld [vmem:[#allocation8 + $0x18] sm:$0xff]
    %v667 = vld [vmem:[#allocation8 + $0x20] sm:$0xff]
    %v668 = vld [vmem:[#allocation8 + $0x28] sm:$0xff]
    %v669 = vld [vmem:[#allocation8 + $0x30] sm:$0xff]
    %v670 = vld [vmem:[#allocation8 + $0x38] sm:$0xff]
    %v671 = vld [vmem:[%s3] sm:$0xf]
    %v673 = vlaneseq
    %v674 = vshrl.u32 %v673, 7
    %v675 = vsub.s32 0, %v674
    %v676 = vrot.slane %v671, %v675
    %v677 = vlaneseq
    %v678 = vshrl.u32 %v677, 7
    %v679 = vsub.s32 1, %v678
    %v680 = vrot.slane %v671, %v679
    %v681 = vlaneseq
    %v682 = vshrl.u32 %v681, 7
    %v683 = vsub.s32 2, %v682
    %v684 = vrot.slane %v671, %v683
    %v685 = vlaneseq
    %v686 = vshrl.u32 %v685, 7
    %v687 = vsub.s32 3, %v686
    %v688 = vrot.slane %v671, %v687
    %v694 = vsel %vm90, %v662, 0
    %696 = vmatprep.subr.mxu0 %v664
    %697 = vmatpush1.msra.mxu0 %v663
    %698 = vmatprep.subr.mxu0 %v668
    %699 = vmatpush1.msra.mxu0 %v667
    %700 = vmatprep.subr.mxu0 0.0
    %701 = vmatpush1.msra.mxu0 0.0
    %702 = vmatprep.subr.mxu0 0.0
    %703 = vmatpush1.msra.mxu0 0.0
    %704 = vmatprep.subr.mxu0 0.0
    %705 = vmatpush1.msra.mxu0 0.0
    %706 = vmatprep.subr.mxu0 0.0
    %707 = vmatpush1.msra.mxu0 0.0
    %708 = vmatprep.subr.mxu0 0.0
    %709 = vmatpush1.msra.mxu0 0.0
    %710 = vmatprep.subr.mxu0 0.0
    %711 = vmatpush1.msra.mxu0 0.0
    %712 = vmatprep.subr.mxu0 0.0
    %713 = vmatpush1.msra.mxu0 0.0
    %714 = vmatprep.subr.mxu0 0.0
    %715 = vmatpush1.msra.mxu0 0.0
    %716 = vmatprep.subr.mxu0 0.0
    %717 = vmatpush1.msra.mxu0 0.0
    %718 = vmatprep.subr.mxu0 0.0
    %719 = vmatpush1.msra.mxu0 0.0
    %720 = vmatprep.subr.mxu0 0.0
    %721 = vmatpush1.msra.mxu0 0.0
    %722 = vmatprep.subr.mxu0 0.0
    %723 = vmatpush1.msra.mxu0 0.0
    %724 = vmatprep.subr.mxu0 0.0
    %725 = vmatpush1.msra.mxu0 0.0
    %726 = vmatprep.subr.mxu0 0.0
    %727 = vmatpush1.msra.mxu0 0.0
    %728 = vmatprep.subr.mxu0 0.0
    %729 = vmatpush1.msra.mxu0 0.0
    %730 = vmatprep.subr.mxu0 0.0
    %731 = vmatpush1.msra.mxu0 0.0
    %732 = vmatprep.subr.mxu0 0.0
    %733 = vmatpush1.msra.mxu0 0.0
    %734 = vmatprep.subr.mxu0 0.0
    %735 = vmatpush1.msra.mxu0 0.0
    %736 = vmatprep.subr.mxu0 0.0
    %737 = vmatpush1.msra.mxu0 0.0
    %738 = vmatprep.subr.mxu0 0.0
    %739 = vmatpush1.msra.mxu0 0.0
    %740 = vmatprep.subr.mxu0 0.0
    %741 = vmatpush1.msra.mxu0 0.0
    %742 = vmatprep.subr.mxu0 0.0
    %743 = vmatpush1.msra.mxu0 0.0
    %744 = vmatprep.subr.mxu0 0.0
    %745 = vmatpush1.msra.mxu0 0.0
    %746 = vmatprep.subr.mxu0 0.0
    %747 = vmatpush1.msra.mxu0 0.0
    %748 = vmatprep.subr.mxu0 0.0
    %749 = vmatpush1.msra.mxu0 0.0
    %750 = vmatprep.subr.mxu0 0.0
    %751 = vmatpush1.msra.mxu0 0.0
    %752 = vmatprep.subr.mxu0 0.0
    %753 = vmatpush1.msra.mxu0 0.0
    %754 = vmatprep.subr.mxu0 0.0
    %755 = vmatpush1.msra.mxu0 0.0
    %756 = vmatprep.subr.mxu0 0.0
    %757 = vmatpush1.msra.mxu0 0.0
    %758 = vmatprep.subr.mxu0 0.0
    %759 = vmatpush1.msra.mxu0 0.0
    %760 = vmatprep.mubr.f32.mxu0 0.0
    %761 = vmatmul.mubr.f32.gmra.mrb[0].mxu0 %v694
    %v762 = vpop.f32.mrb[0].mxu0
    %v763 = vadd.f32 %v676, %v762
    %v764 = vpop.f32.mrb[0].mxu0
    %v765 = vadd.f32 %v680, %v764
    %766 = vdwg.mxu0
    %767 = vmatprep.subr.mxu0 %v666
    %768 = vmatpush1.msra.mxu0 %v665
    %769 = vmatprep.subr.mxu0 %v670
    %770 = vmatpush1.msra.mxu0 %v669
    %771 = vmatprep.subr.mxu0 0.0
    %772 = vmatpush1.msra.mxu0 0.0
    %773 = vmatprep.subr.mxu0 0.0
    %774 = vmatpush1.msra.mxu0 0.0
    %775 = vmatprep.subr.mxu0 0.0
    %776 = vmatpush1.msra.mxu0 0.0
    %777 = vmatprep.subr.mxu0 0.0
    %778 = vmatpush1.msra.mxu0 0.0
    %779 = vmatprep.subr.mxu0 0.0
    %780 = vmatpush1.msra.mxu0 0.0
    %781 = vmatprep.subr.mxu0 0.0
    %782 = vmatpush1.msra.mxu0 0.0
    %783 = vmatprep.subr.mxu0 0.0
    %784 = vmatpush1.msra.mxu0 0.0
    %785 = vmatprep.subr.mxu0 0.0
    %786 = vmatpush1.msra.mxu0 0.0
    %787 = vmatprep.subr.mxu0 0.0
    %788 = vmatpush1.msra.mxu0 0.0
    %789 = vmatprep.subr.mxu0 0.0
    %790 = vmatpush1.msra.mxu0 0.0
    %791 = vmatprep.subr.mxu0 0.0
    %792 = vmatpush1.msra.mxu0 0.0
    %793 = vmatprep.subr.mxu0 0.0
    %794 = vmatpush1.msra.mxu0 0.0
    %795 = vmatprep.subr.mxu0 0.0
    %796 = vmatpush1.msra.mxu0 0.0
    %797 = vmatprep.subr.mxu0 0.0
    %798 = vmatpush1.msra.mxu0 0.0
    %799 = vmatprep.subr.mxu0 0.0
    %800 = vmatpush1.msra.mxu0 0.0
    %801 = vmatprep.subr.mxu0 0.0
    %802 = vmatpush1.msra.mxu0 0.0
    %803 = vmatprep.subr.mxu0 0.0
    %804 = vmatpush1.msra.mxu0 0.0
    %805 = vmatprep.subr.mxu0 0.0
    %806 = vmatpush1.msra.mxu0 0.0
    %807 = vmatprep.subr.mxu0 0.0
    %808 = vmatpush1.msra.mxu0 0.0
    %809 = vmatprep.subr.mxu0 0.0
    %810 = vmatpush1.msra.mxu0 0.0
    %811 = vmatprep.subr.mxu0 0.0
    %812 = vmatpush1.msra.mxu0 0.0
    %813 = vmatprep.subr.mxu0 0.0
    %814 = vmatpush1.msra.mxu0 0.0
    %815 = vmatprep.subr.mxu0 0.0
    %816 = vmatpush1.msra.mxu0 0.0
    %817 = vmatprep.subr.mxu0 0.0
    %818 = vmatpush1.msra.mxu0 0.0
    %819 = vmatprep.subr.mxu0 0.0
    %820 = vmatpush1.msra.mxu0 0.0
    %821 = vmatprep.subr.mxu0 0.0
    %822 = vmatpush1.msra.mxu0 0.0
    %823 = vmatprep.subr.mxu0 0.0
    %824 = vmatpush1.msra.mxu0 0.0
    %825 = vmatprep.subr.mxu0 0.0
    %826 = vmatpush1.msra.mxu0 0.0
    %827 = vmatprep.subr.mxu0 0.0
    %828 = vmatpush1.msra.mxu0 0.0
    %829 = vmatprep.subr.mxu0 0.0
    %830 = vmatpush1.msra.mxu0 0.0
    %831 = vmatprep.mubr.f32.mxu0 0.0
    %832 = vmatmul.mubr.f32.gmra.mrb[0].mxu0 %v694
    %v833 = vpop.f32.mrb[0].mxu0
    %v834 = vadd.f32 %v684, %v833
    %v835 = vpop.f32.mrb[0].mxu0
    %v836 = vadd.f32 %v688, %v835
    %837 = vdwg.mxu0
    %v842 = vcombine.low %v763, %v765
    %v843 = vcombine.low %v834, %v836
    %v845 = vunpack.c.l.s4 1983009808
    %v846 = vunpack.c.0.s8 %v845
    %v847 = vlaneseq
    %v848 = vshrl.u32 %v847, 7
    %v849 = vsub.s32 %v846, %v848
    %v850 = vrot.slane %v842, %v849
    %v852 = vunpack.c.l.s4 1983009808
    %v853 = vunpack.c.0.s8 %v852
    %v854 = vlaneseq
    %v855 = vshrl.u32 %v854, 7
    %v856 = vsub.s32 %v853, %v855
    %v857 = vrot.slane %v843, %v856
    %v858 = vcombine.low %v850, %v857
    %s860 = scalar_lea.vmem [#allocation2], 24
    %861 = vst [vmem:[%s860] sm:$0xff] %v858
    %s862 = scalar_lea.vmem [#allocation5], 8
    %v863 = vld [vmem:[%s862] sm:$0x3]
    %v864 = vld [vmem:[#allocation8] sm:$0xff]
    %v865 = vld [vmem:[#allocation8 + $0x8] sm:$0xff]
    %v866 = vld [vmem:[#allocation8 + $0x10] sm:$0xff]
    %v867 = vld [vmem:[#allocation8 + $0x18] sm:$0xff]
    %v868 = vld [vmem:[#allocation8 + $0x20] sm:$0xff]
    %v869 = vld [vmem:[#allocation8 + $0x28] sm:$0xff]
    %v870 = vld [vmem:[#allocation8 + $0x30] sm:$0xff]
    %v871 = vld [vmem:[#allocation8 + $0x38] sm:$0xff]
    %v872 = vld [vmem:[%s3] sm:$0xf]
    %v874 = vlaneseq
    %v875 = vshrl.u32 %v874, 7
    %v876 = vsub.s32 0, %v875
    %v877 = vrot.slane %v872, %v876
    %v878 = vlaneseq
    %v879 = vshrl.u32 %v878, 7
    %v880 = vsub.s32 1, %v879
    %v881 = vrot.slane %v872, %v880
    %v882 = vlaneseq
    %v883 = vshrl.u32 %v882, 7
    %v884 = vsub.s32 2, %v883
    %v885 = vrot.slane %v872, %v884
    %v886 = vlaneseq
    %v887 = vshrl.u32 %v886, 7
    %v888 = vsub.s32 3, %v887
    %v889 = vrot.slane %v872, %v888
    %v895 = vsel %vm90, %v863, 0
    %897 = vmatprep.subr.mxu0 %v865
    %898 = vmatpush1.msra.mxu0 %v864
    %899 = vmatprep.subr.mxu0 %v869
    %900 = vmatpush1.msra.mxu0 %v868
    %901 = vmatprep.subr.mxu0 0.0
    %902 = vmatpush1.msra.mxu0 0.0
    %903 = vmatprep.subr.mxu0 0.0
    %904 = vmatpush1.msra.mxu0 0.0
    %905 = vmatprep.subr.mxu0 0.0
    %906 = vmatpush1.msra.mxu0 0.0
    %907 = vmatprep.subr.mxu0 0.0
    %908 = vmatpush1.msra.mxu0 0.0
    %909 = vmatprep.subr.mxu0 0.0
    %910 = vmatpush1.msra.mxu0 0.0
    %911 = vmatprep.subr.mxu0 0.0
    %912 = vmatpush1.msra.mxu0 0.0
    %913 = vmatprep.subr.mxu0 0.0
    %914 = vmatpush1.msra.mxu0 0.0
    %915 = vmatprep.subr.mxu0 0.0
    %916 = vmatpush1.msra.mxu0 0.0
    %917 = vmatprep.subr.mxu0 0.0
    %918 = vmatpush1.msra.mxu0 0.0
    %919 = vmatprep.subr.mxu0 0.0
    %920 = vmatpush1.msra.mxu0 0.0
    %921 = vmatprep.subr.mxu0 0.0
    %922 = vmatpush1.msra.mxu0 0.0
    %923 = vmatprep.subr.mxu0 0.0
    %924 = vmatpush1.msra.mxu0 0.0
    %925 = vmatprep.subr.mxu0 0.0
    %926 = vmatpush1.msra.mxu0 0.0
    %927 = vmatprep.subr.mxu0 0.0
    %928 = vmatpush1.msra.mxu0 0.0
    %929 = vmatprep.subr.mxu0 0.0
    %930 = vmatpush1.msra.mxu0 0.0
    %931 = vmatprep.subr.mxu0 0.0
    %932 = vmatpush1.msra.mxu0 0.0
    %933 = vmatprep.subr.mxu0 0.0
    %934 = vmatpush1.msra.mxu0 0.0
    %935 = vmatprep.subr.mxu0 0.0
    %936 = vmatpush1.msra.mxu0 0.0
    %937 = vmatprep.subr.mxu0 0.0
    %938 = vmatpush1.msra.mxu0 0.0
    %939 = vmatprep.subr.mxu0 0.0
    %940 = vmatpush1.msra.mxu0 0.0
    %941 = vmatprep.subr.mxu0 0.0
    %942 = vmatpush1.msra.mxu0 0.0
    %943 = vmatprep.subr.mxu0 0.0
    %944 = vmatpush1.msra.mxu0 0.0
    %945 = vmatprep.subr.mxu0 0.0
    %946 = vmatpush1.msra.mxu0 0.0
    %947 = vmatprep.subr.mxu0 0.0
    %948 = vmatpush1.msra.mxu0 0.0
    %949 = vmatprep.subr.mxu0 0.0
    %950 = vmatpush1.msra.mxu0 0.0
    %951 = vmatprep.subr.mxu0 0.0
    %952 = vmatpush1.msra.mxu0 0.0
    %953 = vmatprep.subr.mxu0 0.0
    %954 = vmatpush1.msra.mxu0 0.0
    %955 = vmatprep.subr.mxu0 0.0
    %956 = vmatpush1.msra.mxu0 0.0
    %957 = vmatprep.subr.mxu0 0.0
    %958 = vmatpush1.msra.mxu0 0.0
    %959 = vmatprep.subr.mxu0 0.0
    %960 = vmatpush1.msra.mxu0 0.0
    %961 = vmatprep.mubr.f32.mxu0 0.0
    %962 = vmatmul.mubr.f32.gmra.mrb[0].mxu0 %v895
    %v963 = vpop.f32.mrb[0].mxu0
    %v964 = vadd.f32 %v877, %v963
    %v965 = vpop.f32.mrb[0].mxu0
    %v966 = vadd.f32 %v881, %v965
    %967 = vdwg.mxu0
    %968 = vmatprep.subr.mxu0 %v867
    %969 = vmatpush1.msra.mxu0 %v866
    %970 = vmatprep.subr.mxu0 %v871
    %971 = vmatpush1.msra.mxu0 %v870
    %972 = vmatprep.subr.mxu0 0.0
    %973 = vmatpush1.msra.mxu0 0.0
    %974 = vmatprep.subr.mxu0 0.0
    %975 = vmatpush1.msra.mxu0 0.0
    %976 = vmatprep.subr.mxu0 0.0
    %977 = vmatpush1.msra.mxu0 0.0
    %978 = vmatprep.subr.mxu0 0.0
    %979 = vmatpush1.msra.mxu0 0.0
    %980 = vmatprep.subr.mxu0 0.0
    %981 = vmatpush1.msra.mxu0 0.0
    %982 = vmatprep.subr.mxu0 0.0
    %983 = vmatpush1.msra.mxu0 0.0
    %984 = vmatprep.subr.mxu0 0.0
    %985 = vmatpush1.msra.mxu0 0.0
    %986 = vmatprep.subr.mxu0 0.0
    %987 = vmatpush1.msra.mxu0 0.0
    %988 = vmatprep.subr.mxu0 0.0
    %989 = vmatpush1.msra.mxu0 0.0
    %990 = vmatprep.subr.mxu0 0.0
    %991 = vmatpush1.msra.mxu0 0.0
    %992 = vmatprep.subr.mxu0 0.0
    %993 = vmatpush1.msra.mxu0 0.0
    %994 = vmatprep.subr.mxu0 0.0
    %995 = vmatpush1.msra.mxu0 0.0
    %996 = vmatprep.subr.mxu0 0.0
    %997 = vmatpush1.msra.mxu0 0.0
    %998 = vmatprep.subr.mxu0 0.0
    %999 = vmatpush1.msra.mxu0 0.0
    %1000 = vmatprep.subr.mxu0 0.0
    %1001 = vmatpush1.msra.mxu0 0.0
    %1002 = vmatprep.subr.mxu0 0.0
    %1003 = vmatpush1.msra.mxu0 0.0
    %1004 = vmatprep.subr.mxu0 0.0
    %1005 = vmatpush1.msra.mxu0 0.0
    %1006 = vmatprep.subr.mxu0 0.0
    %1007 = vmatpush1.msra.mxu0 0.0
    %1008 = vmatprep.subr.mxu0 0.0
    %1009 = vmatpush1.msra.mxu0 0.0
    %1010 = vmatprep.subr.mxu0 0.0
    %1011 = vmatpush1.msra.mxu0 0.0
    %1012 = vmatprep.subr.mxu0 0.0
    %1013 = vmatpush1.msra.mxu0 0.0
    %1014 = vmatprep.subr.mxu0 0.0
    %1015 = vmatpush1.msra.mxu0 0.0
    %1016 = vmatprep.subr.mxu0 0.0
    %1017 = vmatpush1.msra.mxu0 0.0
    %1018 = vmatprep.subr.mxu0 0.0
    %1019 = vmatpush1.msra.mxu0 0.0
    %1020 = vmatprep.subr.mxu0 0.0
    %1021 = vmatpush1.msra.mxu0 0.0
    %1022 = vmatprep.subr.mxu0 0.0
    %1023 = vmatpush1.msra.mxu0 0.0
    %1024 = vmatprep.subr.mxu0 0.0
    %1025 = vmatpush1.msra.mxu0 0.0
    %1026 = vmatprep.subr.mxu0 0.0
    %1027 = vmatpush1.msra.mxu0 0.0
    %1028 = vmatprep.subr.mxu0 0.0
    %1029 = vmatpush1.msra.mxu0 0.0
    %1030 = vmatprep.subr.mxu0 0.0
    %1031 = vmatpush1.msra.mxu0 0.0
    %1032 = vmatprep.mubr.f32.mxu0 0.0
    %1033 = vmatmul.mubr.f32.gmra.mrb[0].mxu0 %v895
    %v1034 = vpop.f32.mrb[0].mxu0
    %v1035 = vadd.f32 %v885, %v1034
    %v1036 = vpop.f32.mrb[0].mxu0
    %v1037 = vadd.f32 %v889, %v1036
    %1038 = vdwg.mxu0
    %v1043 = vcombine.low %v964, %v966
    %v1044 = vcombine.low %v1035, %v1037
    %v1046 = vunpack.c.l.s4 1983009808
    %v1047 = vunpack.c.0.s8 %v1046
    %v1048 = vlaneseq
    %v1049 = vshrl.u32 %v1048, 7
    %v1050 = vsub.s32 %v1047, %v1049
    %v1051 = vrot.slane %v1043, %v1050
    %v1053 = vunpack.c.l.s4 1983009808
    %v1054 = vunpack.c.0.s8 %v1053
    %v1055 = vlaneseq
    %v1056 = vshrl.u32 %v1055, 7
    %v1057 = vsub.s32 %v1054, %v1056
    %v1058 = vrot.slane %v1044, %v1057
    %v1059 = vcombine.low %v1051, %v1058
    %s1061 = scalar_lea.vmem [#allocation2], 32
    %1062 = vst [vmem:[%s1061] sm:$0xff] %v1059
    %s1063 = scalar_lea.vmem [#allocation5], 10
    %v1064 = vld [vmem:[%s1063] sm:$0x3]
    %v1065 = vld [vmem:[#allocation8] sm:$0xff]
    %v1066 = vld [vmem:[#allocation8 + $0x8] sm:$0xff]
    %v1067 = vld [vmem:[#allocation8 + $0x10] sm:$0xff]
    %v1068 = vld [vmem:[#allocation8 + $0x18] sm:$0xff]
    %v1069 = vld [vmem:[#allocation8 + $0x20] sm:$0xff]
    %v1070 = vld [vmem:[#allocation8 + $0x28] sm:$0xff]
    %v1071 = vld [vmem:[#allocation8 + $0x30] sm:$0xff]
    %v1072 = vld [vmem:[#allocation8 + $0x38] sm:$0xff]
    %v1073 = vld [vmem:[%s3] sm:$0xf]
    %v1075 = vlaneseq
    %v1076 = vshrl.u32 %v1075, 7
    %v1077 = vsub.s32 0, %v1076
    %v1078 = vrot.slane %v1073, %v1077
    %v1079 = vlaneseq
    %v1080 = vshrl.u32 %v1079, 7
    %v1081 = vsub.s32 1, %v1080
    %v1082 = vrot.slane %v1073, %v1081
    %v1083 = vlaneseq
    %v1084 = vshrl.u32 %v1083, 7
    %v1085 = vsub.s32 2, %v1084
    %v1086 = vrot.slane %v1073, %v1085
    %v1087 = vlaneseq
    %v1088 = vshrl.u32 %v1087, 7
    %v1089 = vsub.s32 3, %v1088
    %v1090 = vrot.slane %v1073, %v1089
    %v1096 = vsel %vm90, %v1064, 0
    %1098 = vmatprep.subr.mxu0 %v1066
    %1099 = vmatpush1.msra.mxu0 %v1065
    %1100 = vmatprep.subr.mxu0 %v1070
    %1101 = vmatpush1.msra.mxu0 %v1069
    %1102 = vmatprep.subr.mxu0 0.0
    %1103 = vmatpush1.msra.mxu0 0.0
    %1104 = vmatprep.subr.mxu0 0.0
    %1105 = vmatpush1.msra.mxu0 0.0
    %1106 = vmatprep.subr.mxu0 0.0
    %1107 = vmatpush1.msra.mxu0 0.0
    %1108 = vmatprep.subr.mxu0 0.0
    %1109 = vmatpush1.msra.mxu0 0.0
    %1110 = vmatprep.subr.mxu0 0.0
    %1111 = vmatpush1.msra.mxu0 0.0
    %1112 = vmatprep.subr.mxu0 0.0
    %1113 = vmatpush1.msra.mxu0 0.0
    %1114 = vmatprep.subr.mxu0 0.0
    %1115 = vmatpush1.msra.mxu0 0.0
    %1116 = vmatprep.subr.mxu0 0.0
    %1117 = vmatpush1.msra.mxu0 0.0
    %1118 = vmatprep.subr.mxu0 0.0
    %1119 = vmatpush1.msra.mxu0 0.0
    %1120 = vmatprep.subr.mxu0 0.0
    %1121 = vmatpush1.msra.mxu0 0.0
    %1122 = vmatprep.subr.mxu0 0.0
    %1123 = vmatpush1.msra.mxu0 0.0
    %1124 = vmatprep.subr.mxu0 0.0
    %1125 = vmatpush1.msra.mxu0 0.0
    %1126 = vmatprep.subr.mxu0 0.0
    %1127 = vmatpush1.msra.mxu0 0.0
    %1128 = vmatprep.subr.mxu0 0.0
    %1129 = vmatpush1.msra.mxu0 0.0
    %1130 = vmatprep.subr.mxu0 0.0
    %1131 = vmatpush1.msra.mxu0 0.0
    %1132 = vmatprep.subr.mxu0 0.0
    %1133 = vmatpush1.msra.mxu0 0.0
    %1134 = vmatprep.subr.mxu0 0.0
    %1135 = vmatpush1.msra.mxu0 0.0
    %1136 = vmatprep.subr.mxu0 0.0
    %1137 = vmatpush1.msra.mxu0 0.0
    %1138 = vmatprep.subr.mxu0 0.0
    %1139 = vmatpush1.msra.mxu0 0.0
    %1140 = vmatprep.subr.mxu0 0.0
    %1141 = vmatpush1.msra.mxu0 0.0
    %1142 = vmatprep.subr.mxu0 0.0
    %1143 = vmatpush1.msra.mxu0 0.0
    %1144 = vmatprep.subr.mxu0 0.0
    %1145 = vmatpush1.msra.mxu0 0.0
    %1146 = vmatprep.subr.mxu0 0.0
    %1147 = vmatpush1.msra.mxu0 0.0
    %1148 = vmatprep.subr.mxu0 0.0
    %1149 = vmatpush1.msra.mxu0 0.0
    %1150 = vmatprep.subr.mxu0 0.0
    %1151 = vmatpush1.msra.mxu0 0.0
    %1152 = vmatprep.subr.mxu0 0.0
    %1153 = vmatpush1.msra.mxu0 0.0
    %1154 = vmatprep.subr.mxu0 0.0
    %1155 = vmatpush1.msra.mxu0 0.0
    %1156 = vmatprep.subr.mxu0 0.0
    %1157 = vmatpush1.msra.mxu0 0.0
    %1158 = vmatprep.subr.mxu0 0.0
    %1159 = vmatpush1.msra.mxu0 0.0
    %1160 = vmatprep.subr.mxu0 0.0
    %1161 = vmatpush1.msra.mxu0 0.0
    %1162 = vmatprep.mubr.f32.mxu0 0.0
    %1163 = vmatmul.mubr.f32.gmra.mrb[0].mxu0 %v1096
    %v1164 = vpop.f32.mrb[0].mxu0
    %v1165 = vadd.f32 %v1078, %v1164
    %v1166 = vpop.f32.mrb[0].mxu0
    %v1167 = vadd.f32 %v1082, %v1166
    %1168 = vdwg.mxu0
    %1169 = vmatprep.subr.mxu0 %v1068
    %1170 = vmatpush1.msra.mxu0 %v1067
    %1171 = vmatprep.subr.mxu0 %v1072
    %1172 = vmatpush1.msra.mxu0 %v1071
    %1173 = vmatprep.subr.mxu0 0.0
    %1174 = vmatpush1.msra.mxu0 0.0
    %1175 = vmatprep.subr.mxu0 0.0
    %1176 = vmatpush1.msra.mxu0 0.0
    %1177 = vmatprep.subr.mxu0 0.0
    %1178 = vmatpush1.msra.mxu0 0.0
    %1179 = vmatprep.subr.mxu0 0.0
    %1180 = vmatpush1.msra.mxu0 0.0
    %1181 = vmatprep.subr.mxu0 0.0
    %1182 = vmatpush1.msra.mxu0 0.0
    %1183 = vmatprep.subr.mxu0 0.0
    %1184 = vmatpush1.msra.mxu0 0.0
    %1185 = vmatprep.subr.mxu0 0.0
    %1186 = vmatpush1.msra.mxu0 0.0
    %1187 = vmatprep.subr.mxu0 0.0
    %1188 = vmatpush1.msra.mxu0 0.0
    %1189 = vmatprep.subr.mxu0 0.0
    %1190 = vmatpush1.msra.mxu0 0.0
    %1191 = vmatprep.subr.mxu0 0.0
    %1192 = vmatpush1.msra.mxu0 0.0
    %1193 = vmatprep.subr.mxu0 0.0
    %1194 = vmatpush1.msra.mxu0 0.0
    %1195 = vmatprep.subr.mxu0 0.0
    %1196 = vmatpush1.msra.mxu0 0.0
    %1197 = vmatprep.subr.mxu0 0.0
    %1198 = vmatpush1.msra.mxu0 0.0
    %1199 = vmatprep.subr.mxu0 0.0
    %1200 = vmatpush1.msra.mxu0 0.0
    %1201 = vmatprep.subr.mxu0 0.0
    %1202 = vmatpush1.msra.mxu0 0.0
    %1203 = vmatprep.subr.mxu0 0.0
    %1204 = vmatpush1.msra.mxu0 0.0
    %1205 = vmatprep.subr.mxu0 0.0
    %1206 = vmatpush1.msra.mxu0 0.0
    %1207 = vmatprep.subr.mxu0 0.0
    %1208 = vmatpush1.msra.mxu0 0.0
    %1209 = vmatprep.subr.mxu0 0.0
    %1210 = vmatpush1.msra.mxu0 0.0
    %1211 = vmatprep.subr.mxu0 0.0
    %1212 = vmatpush1.msra.mxu0 0.0
    %1213 = vmatprep.subr.mxu0 0.0
    %1214 = vmatpush1.msra.mxu0 0.0
    %1215 = vmatprep.subr.mxu0 0.0
    %1216 = vmatpush1.msra.mxu0 0.0
    %1217 = vmatprep.subr.mxu0 0.0
    %1218 = vmatpush1.msra.mxu0 0.0
    %1219 = vmatprep.subr.mxu0 0.0
    %1220 = vmatpush1.msra.mxu0 0.0
    %1221 = vmatprep.subr.mxu0 0.0
    %1222 = vmatpush1.msra.mxu0 0.0
    %1223 = vmatprep.subr.mxu0 0.0
    %1224 = vmatpush1.msra.mxu0 0.0
    %1225 = vmatprep.subr.mxu0 0.0
    %1226 = vmatpush1.msra.mxu0 0.0
    %1227 = vmatprep.subr.mxu0 0.0
    %1228 = vmatpush1.msra.mxu0 0.0
    %1229 = vmatprep.subr.mxu0 0.0
    %1230 = vmatpush1.msra.mxu0 0.0
    %1231 = vmatprep.subr.mxu0 0.0
    %1232 = vmatpush1.msra.mxu0 0.0
    %1233 = vmatprep.mubr.f32.mxu0 0.0
    %1234 = vmatmul.mubr.f32.gmra.mrb[0].mxu0 %v1096
    %v1235 = vpop.f32.mrb[0].mxu0
    %v1236 = vadd.f32 %v1086, %v1235
    %v1237 = vpop.f32.mrb[0].mxu0
    %v1238 = vadd.f32 %v1090, %v1237
    %1239 = vdwg.mxu0
    %v1244 = vcombine.low %v1165, %v1167
    %v1245 = vcombine.low %v1236, %v1238
    %v1247 = vunpack.c.l.s4 1983009808
    %v1248 = vunpack.c.0.s8 %v1247
    %v1249 = vlaneseq
    %v1250 = vshrl.u32 %v1249, 7
    %v1251 = vsub.s32 %v1248, %v1250
    %v1252 = vrot.slane %v1244, %v1251
    %v1254 = vunpack.c.l.s4 1983009808
    %v1255 = vunpack.c.0.s8 %v1254
    %v1256 = vlaneseq
    %v1257 = vshrl.u32 %v1256, 7
    %v1258 = vsub.s32 %v1255, %v1257
    %v1259 = vrot.slane %v1245, %v1258
    %v1260 = vcombine.low %v1252, %v1259
    %s1262 = scalar_lea.vmem [#allocation2], 40
    %1263 = vst [vmem:[%s1262] sm:$0xff] %v1260
    %s1264 = scalar_lea.vmem [#allocation5], 12
    %v1265 = vld [vmem:[%s1264] sm:$0x3]
    %v1266 = vld [vmem:[#allocation8] sm:$0xff]
    %v1267 = vld [vmem:[#allocation8 + $0x8] sm:$0xff]
    %v1268 = vld [vmem:[#allocation8 + $0x10] sm:$0xff]
    %v1269 = vld [vmem:[#allocation8 + $0x18] sm:$0xff]
    %v1270 = vld [vmem:[#allocation8 + $0x20] sm:$0xff]
    %v1271 = vld [vmem:[#allocation8 + $0x28] sm:$0xff]
    %v1272 = vld [vmem:[#allocation8 + $0x30] sm:$0xff]
    %v1273 = vld [vmem:[#allocation8 + $0x38] sm:$0xff]
    %v1274 = vld [vmem:[%s3] sm:$0xf]
    %v1276 = vlaneseq
    %v1277 = vshrl.u32 %v1276, 7
    %v1278 = vsub.s32 0, %v1277
    %v1279 = vrot.slane %v1274, %v1278
    %v1280 = vlaneseq
    %v1281 = vshrl.u32 %v1280, 7
    %v1282 = vsub.s32 1, %v1281
    %v1283 = vrot.slane %v1274, %v1282
    %v1284 = vlaneseq
    %v1285 = vshrl.u32 %v1284, 7
    %v1286 = vsub.s32 2, %v1285
    %v1287 = vrot.slane %v1274, %v1286
    %v1288 = vlaneseq
    %v1289 = vshrl.u32 %v1288, 7
    %v1290 = vsub.s32 3, %v1289
    %v1291 = vrot.slane %v1274, %v1290
    %v1297 = vsel %vm90, %v1265, 0
    %1299 = vmatprep.subr.mxu0 %v1267
    %1300 = vmatpush1.msra.mxu0 %v1266
    %1301 = vmatprep.subr.mxu0 %v1271
    %1302 = vmatpush1.msra.mxu0 %v1270
    %1303 = vmatprep.subr.mxu0 0.0
    %1304 = vmatpush1.msra.mxu0 0.0
    %1305 = vmatprep.subr.mxu0 0.0
    %1306 = vmatpush1.msra.mxu0 0.0
    %1307 = vmatprep.subr.mxu0 0.0
    %1308 = vmatpush1.msra.mxu0 0.0
    %1309 = vmatprep.subr.mxu0 0.0
    %1310 = vmatpush1.msra.mxu0 0.0
    %1311 = vmatprep.subr.mxu0 0.0
    %1312 = vmatpush1.msra.mxu0 0.0
    %1313 = vmatprep.subr.mxu0 0.0
    %1314 = vmatpush1.msra.mxu0 0.0
    %1315 = vmatprep.subr.mxu0 0.0
    %1316 = vmatpush1.msra.mxu0 0.0
    %1317 = vmatprep.subr.mxu0 0.0
    %1318 = vmatpush1.msra.mxu0 0.0
    %1319 = vmatprep.subr.mxu0 0.0
    %1320 = vmatpush1.msra.mxu0 0.0
    %1321 = vmatprep.subr.mxu0 0.0
    %1322 = vmatpush1.msra.mxu0 0.0
    %1323 = vmatprep.subr.mxu0 0.0
    %1324 = vmatpush1.msra.mxu0 0.0
    %1325 = vmatprep.subr.mxu0 0.0
    %1326 = vmatpush1.msra.mxu0 0.0
    %1327 = vmatprep.subr.mxu0 0.0
    %1328 = vmatpush1.msra.mxu0 0.0
    %1329 = vmatprep.subr.mxu0 0.0
    %1330 = vmatpush1.msra.mxu0 0.0
    %1331 = vmatprep.subr.mxu0 0.0
    %1332 = vmatpush1.msra.mxu0 0.0
    %1333 = vmatprep.subr.mxu0 0.0
    %1334 = vmatpush1.msra.mxu0 0.0
    %1335 = vmatprep.subr.mxu0 0.0
    %1336 = vmatpush1.msra.mxu0 0.0
    %1337 = vmatprep.subr.mxu0 0.0
    %1338 = vmatpush1.msra.mxu0 0.0
    %1339 = vmatprep.subr.mxu0 0.0
    %1340 = vmatpush1.msra.mxu0 0.0
    %1341 = vmatprep.subr.mxu0 0.0
    %1342 = vmatpush1.msra.mxu0 0.0
    %1343 = vmatprep.subr.mxu0 0.0
    %1344 = vmatpush1.msra.mxu0 0.0
    %1345 = vmatprep.subr.mxu0 0.0
    %1346 = vmatpush1.msra.mxu0 0.0
    %1347 = vmatprep.subr.mxu0 0.0
    %1348 = vmatpush1.msra.mxu0 0.0
    %1349 = vmatprep.subr.mxu0 0.0
    %1350 = vmatpush1.msra.mxu0 0.0
    %1351 = vmatprep.subr.mxu0 0.0
    %1352 = vmatpush1.msra.mxu0 0.0
    %1353 = vmatprep.subr.mxu0 0.0
    %1354 = vmatpush1.msra.mxu0 0.0
    %1355 = vmatprep.subr.mxu0 0.0
    %1356 = vmatpush1.msra.mxu0 0.0
    %1357 = vmatprep.subr.mxu0 0.0
    %1358 = vmatpush1.msra.mxu0 0.0
    %1359 = vmatprep.subr.mxu0 0.0
    %1360 = vmatpush1.msra.mxu0 0.0
    %1361 = vmatprep.subr.mxu0 0.0
    %1362 = vmatpush1.msra.mxu0 0.0
    %1363 = vmatprep.mubr.f32.mxu0 0.0
    %1364 = vmatmul.mubr.f32.gmra.mrb[0].mxu0 %v1297
    %v1365 = vpop.f32.mrb[0].mxu0
    %v1366 = vadd.f32 %v1279, %v1365
    %v1367 = vpop.f32.mrb[0].mxu0
    %v1368 = vadd.f32 %v1283, %v1367
    %1369 = vdwg.mxu0
    %1370 = vmatprep.subr.mxu0 %v1269
    %1371 = vmatpush1.msra.mxu0 %v1268
    %1372 = vmatprep.subr.mxu0 %v1273
    %1373 = vmatpush1.msra.mxu0 %v1272
    %1374 = vmatprep.subr.mxu0 0.0
    %1375 = vmatpush1.msra.mxu0 0.0
    %1376 = vmatprep.subr.mxu0 0.0
    %1377 = vmatpush1.msra.mxu0 0.0
    %1378 = vmatprep.subr.mxu0 0.0
    %1379 = vmatpush1.msra.mxu0 0.0
    %1380 = vmatprep.subr.mxu0 0.0
    %1381 = vmatpush1.msra.mxu0 0.0
    %1382 = vmatprep.subr.mxu0 0.0
    %1383 = vmatpush1.msra.mxu0 0.0
    %1384 = vmatprep.subr.mxu0 0.0
    %1385 = vmatpush1.msra.mxu0 0.0
    %1386 = vmatprep.subr.mxu0 0.0
    %1387 = vmatpush1.msra.mxu0 0.0
    %1388 = vmatprep.subr.mxu0 0.0
    %1389 = vmatpush1.msra.mxu0 0.0
    %1390 = vmatprep.subr.mxu0 0.0
    %1391 = vmatpush1.msra.mxu0 0.0
    %1392 = vmatprep.subr.mxu0 0.0
    %1393 = vmatpush1.msra.mxu0 0.0
    %1394 = vmatprep.subr.mxu0 0.0
    %1395 = vmatpush1.msra.mxu0 0.0
    %1396 = vmatprep.subr.mxu0 0.0
    %1397 = vmatpush1.msra.mxu0 0.0
    %1398 = vmatprep.subr.mxu0 0.0
    %1399 = vmatpush1.msra.mxu0 0.0
    %1400 = vmatprep.subr.mxu0 0.0
    %1401 = vmatpush1.msra.mxu0 0.0
    %1402 = vmatprep.subr.mxu0 0.0
    %1403 = vmatpush1.msra.mxu0 0.0
    %1404 = vmatprep.subr.mxu0 0.0
    %1405 = vmatpush1.msra.mxu0 0.0
    %1406 = vmatprep.subr.mxu0 0.0
    %1407 = vmatpush1.msra.mxu0 0.0
    %1408 = vmatprep.subr.mxu0 0.0
    %1409 = vmatpush1.msra.mxu0 0.0
    %1410 = vmatprep.subr.mxu0 0.0
    %1411 = vmatpush1.msra.mxu0 0.0
    %1412 = vmatprep.subr.mxu0 0.0
    %1413 = vmatpush1.msra.mxu0 0.0
    %1414 = vmatprep.subr.mxu0 0.0
    %1415 = vmatpush1.msra.mxu0 0.0
    %1416 = vmatprep.subr.mxu0 0.0
    %1417 = vmatpush1.msra.mxu0 0.0
    %1418 = vmatprep.subr.mxu0 0.0
    %1419 = vmatpush1.msra.mxu0 0.0
    %1420 = vmatprep.subr.mxu0 0.0
    %1421 = vmatpush1.msra.mxu0 0.0
    %1422 = vmatprep.subr.mxu0 0.0
    %1423 = vmatpush1.msra.mxu0 0.0
    %1424 = vmatprep.subr.mxu0 0.0
    %1425 = vmatpush1.msra.mxu0 0.0
    %1426 = vmatprep.subr.mxu0 0.0
    %1427 = vmatpush1.msra.mxu0 0.0
    %1428 = vmatprep.subr.mxu0 0.0
    %1429 = vmatpush1.msra.mxu0 0.0
    %1430 = vmatprep.subr.mxu0 0.0
    %1431 = vmatpush1.msra.mxu0 0.0
    %1432 = vmatprep.subr.mxu0 0.0
    %1433 = vmatpush1.msra.mxu0 0.0
    %1434 = vmatprep.mubr.f32.mxu0 0.0
    %1435 = vmatmul.mubr.f32.gmra.mrb[0].mxu0 %v1297
    %v1436 = vpop.f32.mrb[0].mxu0
    %v1437 = vadd.f32 %v1287, %v1436
    %v1438 = vpop.f32.mrb[0].mxu0
    %v1439 = vadd.f32 %v1291, %v1438
    %1440 = vdwg.mxu0
    %v1445 = vcombine.low %v1366, %v1368
    %v1446 = vcombine.low %v1437, %v1439
    %v1448 = vunpack.c.l.s4 1983009808
    %v1449 = vunpack.c.0.s8 %v1448
    %v1450 = vlaneseq
    %v1451 = vshrl.u32 %v1450, 7
    %v1452 = vsub.s32 %v1449, %v1451
    %v1453 = vrot.slane %v1445, %v1452
    %v1455 = vunpack.c.l.s4 1983009808
    %v1456 = vunpack.c.0.s8 %v1455
    %v1457 = vlaneseq
    %v1458 = vshrl.u32 %v1457, 7
    %v1459 = vsub.s32 %v1456, %v1458
    %v1460 = vrot.slane %v1446, %v1459
    %v1461 = vcombine.low %v1453, %v1460
    %s1463 = scalar_lea.vmem [#allocation2], 48
    %1464 = vst [vmem:[%s1463] sm:$0xff] %v1461
    %s1465 = scalar_lea.vmem [#allocation5], 14
    %v1466 = vld [vmem:[%s1465] sm:$0x3]
    %v1467 = vld [vmem:[#allocation8] sm:$0xff]
    %v1468 = vld [vmem:[#allocation8 + $0x8] sm:$0xff]
    %v1469 = vld [vmem:[#allocation8 + $0x10] sm:$0xff]
    %v1470 = vld [vmem:[#allocation8 + $0x18] sm:$0xff]
    %v1471 = vld [vmem:[#allocation8 + $0x20] sm:$0xff]
    %v1472 = vld [vmem:[#allocation8 + $0x28] sm:$0xff]
    %v1473 = vld [vmem:[#allocation8 + $0x30] sm:$0xff]
    %v1474 = vld [vmem:[#allocation8 + $0x38] sm:$0xff]
    %v1475 = vld [vmem:[%s3] sm:$0xf]
    %v1477 = vlaneseq
    %v1478 = vshrl.u32 %v1477, 7
    %v1479 = vsub.s32 0, %v1478
    %v1480 = vrot.slane %v1475, %v1479
    %v1481 = vlaneseq
    %v1482 = vshrl.u32 %v1481, 7
    %v1483 = vsub.s32 1, %v1482
    %v1484 = vrot.slane %v1475, %v1483
    %v1485 = vlaneseq
    %v1486 = vshrl.u32 %v1485, 7
    %v1487 = vsub.s32 2, %v1486
    %v1488 = vrot.slane %v1475, %v1487
    %v1489 = vlaneseq
    %v1490 = vshrl.u32 %v1489, 7
    %v1491 = vsub.s32 3, %v1490
    %v1492 = vrot.slane %v1475, %v1491
    %v1498 = vsel %vm90, %v1466, 0
    %1500 = vmatprep.subr.mxu0 %v1468
    %1501 = vmatpush1.msra.mxu0 %v1467
    %1502 = vmatprep.subr.mxu0 %v1472
    %1503 = vmatpush1.msra.mxu0 %v1471
    %1504 = vmatprep.subr.mxu0 0.0
    %1505 = vmatpush1.msra.mxu0 0.0
    %1506 = vmatprep.subr.mxu0 0.0
    %1507 = vmatpush1.msra.mxu0 0.0
    %1508 = vmatprep.subr.mxu0 0.0
    %1509 = vmatpush1.msra.mxu0 0.0
    %1510 = vmatprep.subr.mxu0 0.0
    %1511 = vmatpush1.msra.mxu0 0.0
    %1512 = vmatprep.subr.mxu0 0.0
    %1513 = vmatpush1.msra.mxu0 0.0
    %1514 = vmatprep.subr.mxu0 0.0
    %1515 = vmatpush1.msra.mxu0 0.0
    %1516 = vmatprep.subr.mxu0 0.0
    %1517 = vmatpush1.msra.mxu0 0.0
    %1518 = vmatprep.subr.mxu0 0.0
    %1519 = vmatpush1.msra.mxu0 0.0
    %1520 = vmatprep.subr.mxu0 0.0
    %1521 = vmatpush1.msra.mxu0 0.0
    %1522 = vmatprep.subr.mxu0 0.0
    %1523 = vmatpush1.msra.mxu0 0.0
    %1524 = vmatprep.subr.mxu0 0.0
    %1525 = vmatpush1.msra.mxu0 0.0
    %1526 = vmatprep.subr.mxu0 0.0
    %1527 = vmatpush1.msra.mxu0 0.0
    %1528 = vmatprep.subr.mxu0 0.0
    %1529 = vmatpush1.msra.mxu0 0.0
    %1530 = vmatprep.subr.mxu0 0.0
    %1531 = vmatpush1.msra.mxu0 0.0
    %1532 = vmatprep.subr.mxu0 0.0
    %1533 = vmatpush1.msra.mxu0 0.0
    %1534 = vmatprep.subr.mxu0 0.0
    %1535 = vmatpush1.msra.mxu0 0.0
    %1536 = vmatprep.subr.mxu0 0.0
    %1537 = vmatpush1.msra.mxu0 0.0
    %1538 = vmatprep.subr.mxu0 0.0
    %1539 = vmatpush1.msra.mxu0 0.0
    %1540 = vmatprep.subr.mxu0 0.0
    %1541 = vmatpush1.msra.mxu0 0.0
    %1542 = vmatprep.subr.mxu0 0.0
    %1543 = vmatpush1.msra.mxu0 0.0
    %1544 = vmatprep.subr.mxu0 0.0
    %1545 = vmatpush1.msra.mxu0 0.0
    %1546 = vmatprep.subr.mxu0 0.0
    %1547 = vmatpush1.msra.mxu0 0.0
    %1548 = vmatprep.subr.mxu0 0.0
    %1549 = vmatpush1.msra.mxu0 0.0
    %1550 = vmatprep.subr.mxu0 0.0
    %1551 = vmatpush1.msra.mxu0 0.0
    %1552 = vmatprep.subr.mxu0 0.0
    %1553 = vmatpush1.msra.mxu0 0.0
    %1554 = vmatprep.subr.mxu0 0.0
    %1555 = vmatpush1.msra.mxu0 0.0
    %1556 = vmatprep.subr.mxu0 0.0
    %1557 = vmatpush1.msra.mxu0 0.0
    %1558 = vmatprep.subr.mxu0 0.0
    %1559 = vmatpush1.msra.mxu0 0.0
    %1560 = vmatprep.subr.mxu0 0.0
    %1561 = vmatpush1.msra.mxu0 0.0
    %1562 = vmatprep.subr.mxu0 0.0
    %1563 = vmatpush1.msra.mxu0 0.0
    %1564 = vmatprep.mubr.f32.mxu0 0.0
    %1565 = vmatmul.mubr.f32.gmra.mrb[0].mxu0 %v1498
    %v1566 = vpop.f32.mrb[0].mxu0
    %v1567 = vadd.f32 %v1480, %v1566
    %v1568 = vpop.f32.mrb[0].mxu0
    %v1569 = vadd.f32 %v1484, %v1568
    %1570 = vdwg.mxu0
    %1571 = vmatprep.subr.mxu0 %v1470
    %1572 = vmatpush1.msra.mxu0 %v1469
    %1573 = vmatprep.subr.mxu0 %v1474
    %1574 = vmatpush1.msra.mxu0 %v1473
    %1575 = vmatprep.subr.mxu0 0.0
    %1576 = vmatpush1.msra.mxu0 0.0
    %1577 = vmatprep.subr.mxu0 0.0
    %1578 = vmatpush1.msra.mxu0 0.0
    %1579 = vmatprep.subr.mxu0 0.0
    %1580 = vmatpush1.msra.mxu0 0.0
    %1581 = vmatprep.subr.mxu0 0.0
    %1582 = vmatpush1.msra.mxu0 0.0
    %1583 = vmatprep.subr.mxu0 0.0
    %1584 = vmatpush1.msra.mxu0 0.0
    %1585 = vmatprep.subr.mxu0 0.0
    %1586 = vmatpush1.msra.mxu0 0.0
    %1587 = vmatprep.subr.mxu0 0.0
    %1588 = vmatpush1.msra.mxu0 0.0
    %1589 = vmatprep.subr.mxu0 0.0
    %1590 = vmatpush1.msra.mxu0 0.0
    %1591 = vmatprep.subr.mxu0 0.0
    %1592 = vmatpush1.msra.mxu0 0.0
    %1593 = vmatprep.subr.mxu0 0.0
    %1594 = vmatpush1.msra.mxu0 0.0
    %1595 = vmatprep.subr.mxu0 0.0
    %1596 = vmatpush1.msra.mxu0 0.0
    %1597 = vmatprep.subr.mxu0 0.0
    %1598 = vmatpush1.msra.mxu0 0.0
    %1599 = vmatprep.subr.mxu0 0.0
    %1600 = vmatpush1.msra.mxu0 0.0
    %1601 = vmatprep.subr.mxu0 0.0
    %1602 = vmatpush1.msra.mxu0 0.0
    %1603 = vmatprep.subr.mxu0 0.0
    %1604 = vmatpush1.msra.mxu0 0.0
    %1605 = vmatprep.subr.mxu0 0.0
    %1606 = vmatpush1.msra.mxu0 0.0
    %1607 = vmatprep.subr.mxu0 0.0
    %1608 = vmatpush1.msra.mxu0 0.0
    %1609 = vmatprep.subr.mxu0 0.0
    %1610 = vmatpush1.msra.mxu0 0.0
    %1611 = vmatprep.subr.mxu0 0.0
    %1612 = vmatpush1.msra.mxu0 0.0
    %1613 = vmatprep.subr.mxu0 0.0
    %1614 = vmatpush1.msra.mxu0 0.0
    %1615 = vmatprep.subr.mxu0 0.0
    %1616 = vmatpush1.msra.mxu0 0.0
    %1617 = vmatprep.subr.mxu0 0.0
    %1618 = vmatpush1.msra.mxu0 0.0
    %1619 = vmatprep.subr.mxu0 0.0
    %1620 = vmatpush1.msra.mxu0 0.0
    %1621 = vmatprep.subr.mxu0 0.0
    %1622 = vmatpush1.msra.mxu0 0.0
    %1623 = vmatprep.subr.mxu0 0.0
    %1624 = vmatpush1.msra.mxu0 0.0
    %1625 = vmatprep.subr.mxu0 0.0
    %1626 = vmatpush1.msra.mxu0 0.0
    %1627 = vmatprep.subr.mxu0 0.0
    %1628 = vmatpush1.msra.mxu0 0.0
    %1629 = vmatprep.subr.mxu0 0.0
    %1630 = vmatpush1.msra.mxu0 0.0
    %1631 = vmatprep.subr.mxu0 0.0
    %1632 = vmatpush1.msra.mxu0 0.0
    %1633 = vmatprep.subr.mxu0 0.0
    %1634 = vmatpush1.msra.mxu0 0.0
    %1635 = vmatprep.mubr.f32.mxu0 0.0
    %1636 = vmatmul.mubr.f32.gmra.mrb[0].mxu0 %v1498
    %v1637 = vpop.f32.mrb[0].mxu0
    %v1638 = vadd.f32 %v1488, %v1637
    %v1639 = vpop.f32.mrb[0].mxu0
    %v1640 = vadd.f32 %v1492, %v1639
    %1641 = vdwg.mxu0
    %v1646 = vcombine.low %v1567, %v1569
    %v1647 = vcombine.low %v1638, %v1640
    %v1649 = vunpack.c.l.s4 1983009808
    %v1650 = vunpack.c.0.s8 %v1649
    %v1651 = vlaneseq
    %v1652 = vshrl.u32 %v1651, 7
    %v1653 = vsub.s32 %v1650, %v1652
    %v1654 = vrot.slane %v1646, %v1653
    %v1656 = vunpack.c.l.s4 1983009808
    %v1657 = vunpack.c.0.s8 %v1656
    %v1658 = vlaneseq
    %v1659 = vshrl.u32 %v1658, 7
    %v1660 = vsub.s32 %v1657, %v1659
    %v1661 = vrot.slane %v1647, %v1660
    %v1662 = vcombine.low %v1654, %v1661
    %s1664 = scalar_lea.vmem [#allocation2], 56
    %1665 = vst [vmem:[%s1664] sm:$0xff] %v1662
    %1666 = vst [vmem:[#allocation3] sm:$0x3] 0.0
    %1667 = vst [vmem:[#allocation4] sm:$0x3] 0.0
    %v1668 = vlaneseq
    %v1669 = vand.u32 %v1668, 127
    %v1670 = vadd.s32 %v1669, 128
    %v1671 = vadd.s32 %v1669, 256
    %v1672 = vadd.s32 %v1669, 384
    %vm1673 = vcmp.lt.s32.totalorder %v1669, 0
    %v1674 = vsub.s32 0, %v1669
    %v1675 = vsel %vm1673, %v1674, %v1669
    %v1676 = vshrl.u32 %v1675, 7
    %v1677 = vand.u32 %v1675, 127
    %v1678 = vsub.s32 0, %v1677
    %v1679 = vsel %vm1673, %v1678, %v1677
    %vm1680 = vcmp.lt.s32.totalorder %v1670, 0
    %v1681 = vsub.s32 0, %v1670
    %v1682 = vsel %vm1680, %v1681, %v1670
    %v1683 = vshrl.u32 %v1682, 7
    %v1684 = vand.u32 %v1682, 127
    %v1685 = vsub.s32 0, %v1684
    %v1686 = vsel %vm1680, %v1685, %v1684
    %vm1687 = vcmp.lt.s32.totalorder %v1671, 0
    %v1688 = vsub.s32 0, %v1671
    %v1689 = vsel %vm1687, %v1688, %v1671
    %v1690 = vshrl.u32 %v1689, 7
    %v1691 = vand.u32 %v1689, 127
    %v1692 = vsub.s32 0, %v1691
    %v1693 = vsel %vm1687, %v1692, %v1691
    %vm1694 = vcmp.lt.s32.totalorder %v1672, 0
    %v1695 = vsub.s32 0, %v1672
    %v1696 = vsel %vm1694, %v1695, %v1672
    %v1697 = vshrl.u32 %v1696, 7
    %v1698 = vand.u32 %v1696, 127
    %v1699 = vsub.s32 0, %v1698
    %v1700 = vsel %vm1694, %v1699, %v1698
    %vm1701 = vcmp.ne.s32.totalorder %v1679, 0
    %vm1702 = vcmp.ne.s32.totalorder %v1686, 0
    %vm1703 = vcmp.ne.s32.totalorder %v1693, 0
    %vm1704 = vcmp.ne.s32.totalorder %v1700, 0
    %vm1705 = vcmp.lt.s32.totalorder %v1679, 0
    %vm1706 = vcmp.lt.s32.totalorder %v1686, 0
    %vm1707 = vcmp.lt.s32.totalorder %v1693, 0
    %vm1708 = vcmp.lt.s32.totalorder %v1700, 0
    %vm1709 = vmand %vm1705, %vm1701
    %vm1710 = vmand %vm1706, %vm1702
    %vm1711 = vmand %vm1707, %vm1703
    %vm1712 = vmand %vm1708, %vm1704
    %v1713 = vadd.s32 %v1679, 128
    %v1714 = vadd.s32 %v1686, 128
    %v1715 = vadd.s32 %v1693, 128
    %v1716 = vadd.s32 %v1700, 128
    %v1717 = vsel %vm1709, %v1713, %v1679
    %v1718 = vsel %vm1710, %v1714, %v1686
    %v1719 = vsel %vm1711, %v1715, %v1693
    %v1720 = vsel %vm1712, %v1716, %v1700
    %vm1721 = vcmp.lt.s32.totalorder %v1717, 64
    %vm1722 = vcmp.lt.s32.totalorder %v1718, 64
    %vm1723 = vcmp.lt.s32.totalorder %v1719, 64
    %vm1724 = vcmp.lt.s32.totalorder %v1720, 64
    %v1725 = vld [vmem:[#allocation2] sm:$0xff]
    %v1726 = vld [vmem:[%s1664] sm:$0xff]
    %v1728 = vcombine.high %v1725, %v1725
    %v1730 = vunpack.c.l.s4 1983009808
    %v1731 = vunpack.c.0.s8 %v1730
    %v1732 = vlaneseq
    %v1733 = vshrl.u32 %v1732, 7
    %v1734 = vsub.s32 %v1731, %v1733
    %v1735 = vrot.slane %v1725, %v1734
    %v1737 = vunpack.c.l.s4 1983009808
    %v1738 = vunpack.c.0.s8 %v1737
    %v1739 = vlaneseq
    %v1740 = vshrl.u32 %v1739, 7
    %v1741 = vsub.s32 %v1738, %v1740
    %v1742 = vrot.slane %v1728, %v1741
    %v1743 = vcombine.high %v1735, %v1735
    %v1744 = vcombine.high %v1742, %v1742
    %v1750 = vcombine.high %v1726, %v1726
    %v1752 = vunpack.c.l.s4 1983009808
    %v1753 = vunpack.c.0.s8 %v1752
    %v1754 = vlaneseq
    %v1755 = vshrl.u32 %v1754, 7
    %v1756 = vsub.s32 %v1753, %v1755
    %v1757 = vrot.slane %v1726, %v1756
    %v1759 = vunpack.c.l.s4 1983009808
    %v1760 = vunpack.c.0.s8 %v1759
    %v1761 = vlaneseq
    %v1762 = vshrl.u32 %v1761, 7
    %v1763 = vsub.s32 %v1760, %v1762
    %v1764 = vrot.slane %v1750, %v1763
    %v1765 = vcombine.high %v1757, %v1757
    %v1766 = vcombine.high %v1764, %v1764
    %v1771 = vsel %vm1721, %v1735, %v1757
    %v1772 = vsel %vm1722, %v1743, %v1765
    %v1773 = vsel %vm1723, %v1742, %v1764
    %v1774 = vsel %vm1724, %v1744, %v1766
    %v1775 = vld [vmem:[#allocation3] sm:$0x3]
    %v1776 = vld [vmem:[#allocation10] sm:$0xff]
    %v1777 = vld [vmem:[#allocation10 + $0x8] sm:$0xff]
    %v1778 = vld [vmem:[#allocation10 + $0x10] sm:$0xff]
    %v1779 = vld [vmem:[#allocation10 + $0x18] sm:$0xff]
    %v1780 = vld [vmem:[#allocation10 + $0x20] sm:$0xff]
    %v1781 = vld [vmem:[#allocation10 + $0x28] sm:$0xff]
    %v1782 = vld [vmem:[#allocation10 + $0x30] sm:$0xff]
    %v1783 = vld [vmem:[#allocation10 + $0x38] sm:$0xff]
    %v1784 = vld [vmem:[#allocation10 + $0x40] sm:$0xff]
    %v1785 = vld [vmem:[#allocation10 + $0x48] sm:$0xff]
    %v1786 = vld [vmem:[#allocation10 + $0x50] sm:$0xff]
    %v1787 = vld [vmem:[#allocation10 + $0x58] sm:$0xff]
    %v1788 = vld [vmem:[#allocation10 + $0x60] sm:$0xff]
    %v1789 = vld [vmem:[#allocation10 + $0x68] sm:$0xff]
    %v1790 = vld [vmem:[#allocation10 + $0x70] sm:$0xff]
    %v1791 = vld [vmem:[#allocation10 + $0x78] sm:$0xff]
    %v1792 = vld [vmem:[#allocation10 + $0x80] sm:$0xff]
    %v1793 = vld [vmem:[#allocation10 + $0x88] sm:$0xff]
    %v1794 = vld [vmem:[#allocation10 + $0x90] sm:$0xff]
    %v1795 = vld [vmem:[#allocation10 + $0x98] sm:$0xff]
    %v1796 = vld [vmem:[#allocation10 + $0xa0] sm:$0xff]
    %v1797 = vld [vmem:[#allocation10 + $0xa8] sm:$0xff]
    %v1798 = vld [vmem:[#allocation10 + $0xb0] sm:$0xff]
    %v1799 = vld [vmem:[#allocation10 + $0xb8] sm:$0xff]
    %v1800 = vld [vmem:[#allocation10 + $0xc0] sm:$0xff]
    %v1801 = vld [vmem:[#allocation10 + $0xc8] sm:$0xff]
    %v1802 = vld [vmem:[#allocation10 + $0xd0] sm:$0xff]
    %v1803 = vld [vmem:[#allocation10 + $0xd8] sm:$0xff]
    %v1804 = vld [vmem:[#allocation10 + $0xe0] sm:$0xff]
    %v1805 = vld [vmem:[#allocation10 + $0xe8] sm:$0xff]
    %v1806 = vld [vmem:[#allocation10 + $0xf0] sm:$0xff]
    %v1807 = vld [vmem:[#allocation10 + $0xf8] sm:$0xff]
    %v1808 = vld [vmem:[#allocation10 + $0x100] sm:$0xff]
    %v1809 = vld [vmem:[#allocation10 + $0x108] sm:$0xff]
    %v1810 = vld [vmem:[#allocation10 + $0x110] sm:$0xff]
    %v1811 = vld [vmem:[#allocation10 + $0x118] sm:$0xff]
    %v1812 = vld [vmem:[#allocation10 + $0x120] sm:$0xff]
    %v1813 = vld [vmem:[#allocation10 + $0x128] sm:$0xff]
    %v1814 = vld [vmem:[#allocation10 + $0x130] sm:$0xff]
    %v1815 = vld [vmem:[#allocation10 + $0x138] sm:$0xff]
    %v1816 = vld [vmem:[#allocation10 + $0x140] sm:$0xff]
    %v1817 = vld [vmem:[#allocation10 + $0x148] sm:$0xff]
    %v1818 = vld [vmem:[#allocation10 + $0x150] sm:$0xff]
    %v1819 = vld [vmem:[#allocation10 + $0x158] sm:$0xff]
    %v1820 = vld [vmem:[#allocation10 + $0x160] sm:$0xff]
    %v1821 = vld [vmem:[#allocation10 + $0x168] sm:$0xff]
    %v1822 = vld [vmem:[#allocation10 + $0x170] sm:$0xff]
    %v1823 = vld [vmem:[#allocation10 + $0x178] sm:$0xff]
    %v1824 = vld [vmem:[#allocation10 + $0x180] sm:$0xff]
    %v1825 = vld [vmem:[#allocation10 + $0x188] sm:$0xff]
    %v1826 = vld [vmem:[#allocation10 + $0x190] sm:$0xff]
    %v1827 = vld [vmem:[#allocation10 + $0x198] sm:$0xff]
    %v1828 = vld [vmem:[#allocation10 + $0x1a0] sm:$0xff]
    %v1829 = vld [vmem:[#allocation10 + $0x1a8] sm:$0xff]
    %v1830 = vld [vmem:[#allocation10 + $0x1b0] sm:$0xff]
    %v1831 = vld [vmem:[#allocation10 + $0x1b8] sm:$0xff]
    %v1832 = vld [vmem:[#allocation10 + $0x1c0] sm:$0xff]
    %v1833 = vld [vmem:[#allocation10 + $0x1c8] sm:$0xff]
    %v1834 = vld [vmem:[#allocation10 + $0x1d0] sm:$0xff]
    %v1835 = vld [vmem:[#allocation10 + $0x1d8] sm:$0xff]
    %v1836 = vld [vmem:[#allocation10 + $0x1e0] sm:$0xff]
    %v1837 = vld [vmem:[#allocation10 + $0x1e8] sm:$0xff]
    %v1838 = vld [vmem:[#allocation10 + $0x1f0] sm:$0xff]
    %v1839 = vld [vmem:[#allocation10 + $0x1f8] sm:$0xff]
    %1840 = vmatprep.subr.mxu0 %v1777
    %1841 = vmatpush1.msra.mxu0 %v1776
    %1842 = vmatprep.subr.mxu0 %v1781
    %1843 = vmatpush1.msra.mxu0 %v1780
    %1844 = vmatprep.subr.mxu0 %v1785
    %1845 = vmatpush1.msra.mxu0 %v1784
    %1846 = vmatprep.subr.mxu0 %v1789
    %1847 = vmatpush1.msra.mxu0 %v1788
    %1848 = vmatprep.subr.mxu0 %v1793
    %1849 = vmatpush1.msra.mxu0 %v1792
    %1850 = vmatprep.subr.mxu0 %v1797
    %1851 = vmatpush1.msra.mxu0 %v1796
    %1852 = vmatprep.subr.mxu0 %v1801
    %1853 = vmatpush1.msra.mxu0 %v1800
    %1854 = vmatprep.subr.mxu0 %v1805
    %1855 = vmatpush1.msra.mxu0 %v1804
    %1856 = vmatprep.subr.mxu0 %v1809
    %1857 = vmatpush1.msra.mxu0 %v1808
    %1858 = vmatprep.subr.mxu0 %v1813
    %1859 = vmatpush1.msra.mxu0 %v1812
    %1860 = vmatprep.subr.mxu0 %v1817
    %1861 = vmatpush1.msra.mxu0 %v1816
    %1862 = vmatprep.subr.mxu0 %v1821
    %1863 = vmatpush1.msra.mxu0 %v1820
    %1864 = vmatprep.subr.mxu0 %v1825
    %1865 = vmatpush1.msra.mxu0 %v1824
    %1866 = vmatprep.subr.mxu0 %v1829
    %1867 = vmatpush1.msra.mxu0 %v1828
    %1868 = vmatprep.subr.mxu0 %v1833
    %1869 = vmatpush1.msra.mxu0 %v1832
    %1870 = vmatprep.subr.mxu0 %v1837
    %1871 = vmatpush1.msra.mxu0 %v1836
    %1872 = vmatprep.subr.mxu0 0.0
    %1873 = vmatpush1.msra.mxu0 0.0
    %1874 = vmatprep.subr.mxu0 0.0
    %1875 = vmatpush1.msra.mxu0 0.0
    %1876 = vmatprep.subr.mxu0 0.0
    %1877 = vmatpush1.msra.mxu0 0.0
    %1878 = vmatprep.subr.mxu0 0.0
    %1879 = vmatpush1.msra.mxu0 0.0
    %1880 = vmatprep.subr.mxu0 0.0
    %1881 = vmatpush1.msra.mxu0 0.0
    %1882 = vmatprep.subr.mxu0 0.0
    %1883 = vmatpush1.msra.mxu0 0.0
    %1884 = vmatprep.subr.mxu0 0.0
    %1885 = vmatpush1.msra.mxu0 0.0
    %1886 = vmatprep.subr.mxu0 0.0
    %1887 = vmatpush1.msra.mxu0 0.0
    %1888 = vmatprep.subr.mxu0 0.0
    %1889 = vmatpush1.msra.mxu0 0.0
    %1890 = vmatprep.subr.mxu0 0.0
    %1891 = vmatpush1.msra.mxu0 0.0
    %1892 = vmatprep.subr.mxu0 0.0
    %1893 = vmatpush1.msra.mxu0 0.0
    %1894 = vmatprep.subr.mxu0 0.0
    %1895 = vmatpush1.msra.mxu0 0.0
    %1896 = vmatprep.subr.mxu0 0.0
    %1897 = vmatpush1.msra.mxu0 0.0
    %1898 = vmatprep.subr.mxu0 0.0
    %1899 = vmatpush1.msra.mxu0 0.0
    %1900 = vmatprep.subr.mxu0 0.0
    %1901 = vmatpush1.msra.mxu0 0.0
    %1902 = vmatprep.subr.mxu0 0.0
    %1903 = vmatpush1.msra.mxu0 0.0
    %1904 = vmatprep.mubr.f32.mxu0 0.0
    %1905 = vmatmul.mubr.f32.gmra.mrb[0].mxu0 %v1775
    %v1906 = vpop.f32.mrb[0].mxu0
    %v1907 = vadd.f32 0.0, %v1906
    %v1908 = vpop.f32.mrb[0].mxu0
    %v1909 = vadd.f32 0.0, %v1908
    %1910 = vdwg.mxu0
    %1911 = vmatprep.subr.mxu0 %v1779
    %1912 = vmatpush1.msra.mxu0 %v1778
    %1913 = vmatprep.subr.mxu0 %v1783
    %1914 = vmatpush1.msra.mxu0 %v1782
    %1915 = vmatprep.subr.mxu0 %v1787
    %1916 = vmatpush1.msra.mxu0 %v1786
    %1917 = vmatprep.subr.mxu0 %v1791
    %1918 = vmatpush1.msra.mxu0 %v1790
    %1919 = vmatprep.subr.mxu0 %v1795
    %1920 = vmatpush1.msra.mxu0 %v1794
    %1921 = vmatprep.subr.mxu0 %v1799
    %1922 = vmatpush1.msra.mxu0 %v1798
    %1923 = vmatprep.subr.mxu0 %v1803
    %1924 = vmatpush1.msra.mxu0 %v1802
    %1925 = vmatprep.subr.mxu0 %v1807
    %1926 = vmatpush1.msra.mxu0 %v1806
    %1927 = vmatprep.subr.mxu0 %v1811
    %1928 = vmatpush1.msra.mxu0 %v1810
    %1929 = vmatprep.subr.mxu0 %v1815
    %1930 = vmatpush1.msra.mxu0 %v1814
    %1931 = vmatprep.subr.mxu0 %v1819
    %1932 = vmatpush1.msra.mxu0 %v1818
    %1933 = vmatprep.subr.mxu0 %v1823
    %1934 = vmatpush1.msra.mxu0 %v1822
    %1935 = vmatprep.subr.mxu0 %v1827
    %1936 = vmatpush1.msra.mxu0 %v1826
    %1937 = vmatprep.subr.mxu0 %v1831
    %1938 = vmatpush1.msra.mxu0 %v1830
    %1939 = vmatprep.subr.mxu0 %v1835
    %1940 = vmatpush1.msra.mxu0 %v1834
    %1941 = vmatprep.subr.mxu0 %v1839
    %1942 = vmatpush1.msra.mxu0 %v1838
    %1943 = vmatprep.subr.mxu0 0.0
    %1944 = vmatpush1.msra.mxu0 0.0
    %1945 = vmatprep.subr.mxu0 0.0
    %1946 = vmatpush1.msra.mxu0 0.0
    %1947 = vmatprep.subr.mxu0 0.0
    %1948 = vmatpush1.msra.mxu0 0.0
    %1949 = vmatprep.subr.mxu0 0.0
    %1950 = vmatpush1.msra.mxu0 0.0
    %1951 = vmatprep.subr.mxu0 0.0
    %1952 = vmatpush1.msra.mxu0 0.0
    %1953 = vmatprep.subr.mxu0 0.0
    %1954 = vmatpush1.msra.mxu0 0.0
    %1955 = vmatprep.subr.mxu0 0.0
    %1956 = vmatpush1.msra.mxu0 0.0
    %1957 = vmatprep.subr.mxu0 0.0
    %1958 = vmatpush1.msra.mxu0 0.0
    %1959 = vmatprep.subr.mxu0 0.0
    %1960 = vmatpush1.msra.mxu0 0.0
    %1961 = vmatprep.subr.mxu0 0.0
    %1962 = vmatpush1.msra.mxu0 0.0
    %1963 = vmatprep.subr.mxu0 0.0
    %1964 = vmatpush1.msra.mxu0 0.0
    %1965 = vmatprep.subr.mxu0 0.0
    %1966 = vmatpush1.msra.mxu0 0.0
    %1967 = vmatprep.subr.mxu0 0.0
    %1968 = vmatpush1.msra.mxu0 0.0
    %1969 = vmatprep.subr.mxu0 0.0
    %1970 = vmatpush1.msra.mxu0 0.0
    %1971 = vmatprep.subr.mxu0 0.0
    %1972 = vmatpush1.msra.mxu0 0.0
    %1973 = vmatprep.subr.mxu0 0.0
    %1974 = vmatpush1.msra.mxu0 0.0
    %1975 = vmatprep.mubr.f32.mxu0 0.0
    %1976 = vmatmul.mubr.f32.gmra.mrb[0].mxu0 %v1775
    %v1977 = vpop.f32.mrb[0].mxu0
    %v1978 = vadd.f32 0.0, %v1977
    %v1979 = vpop.f32.mrb[0].mxu0
    %v1980 = vadd.f32 0.0, %v1979
    %1981 = vdwg.mxu0
    %v1982 = vadd.f32 %v1771, %v1907
    %v1983 = vadd.f32 %v1772, %v1909
    %v1984 = vadd.f32 %v1773, %v1978
    %v1985 = vadd.f32 %v1774, %v1980
    %v1986 = vxor.u32 %v1982, 2147483648
    %v1987 = vmul.f32 %v1986, 1.442695
    %v1988 = vpow.pop %v1987
    %v1989 = vadd.f32 %v1988, 1.0
    %v1990 = vrcp.pop %v1989
    %v1991 = vmul.f32 1.0, %v1990
    %v1992 = vxor.u32 %v1983, 2147483648
    %v1993 = vmul.f32 %v1992, 1.442695
    %v1994 = vpow.pop %v1993
    %v1995 = vadd.f32 %v1994, 1.0
    %v1996 = vrcp.pop %v1995
    %v1997 = vmul.f32 1.0, %v1996
    %v1998 = vtanh.pop %v1984
    %v1999 = vxor.u32 %v1985, 2147483648
    %v2000 = vmul.f32 %v1999, 1.442695
    %v2001 = vpow.pop %v2000
    %v2002 = vadd.f32 %v2001, 1.0
    %v2003 = vrcp.pop %v2002
    %v2004 = vmul.f32 1.0, %v2003
    %v2005 = vld [vmem:[#allocation4] sm:$0x3]
    %v2006 = vmul.f32 %v1997, %v2005
    %v2007 = vmul.f32 %v1991, %v1998
    %v2008 = vadd.f32 %v2006, %v2007
    %v2009 = vtanh.pop %v2008
    %v2010 = vmul.f32 %v2004, %v2009
    %2011 = vst [vmem:[#allocation4] sm:$0x3] %v2008
    %2012 = vst [vmem:[#allocation3] sm:$0x3] %v2010
    %vm2013 = vcmask 517120
    %2014 = vst.msk [vmem:[#allocation11] sm:$0x3] %vm2013, %v2010
    %s2015 = scalar_lea.vmem [#allocation11], 14
    %vm2016 = vcmask 1041920
    %2017 = vst.msk [vmem:[%s2015] sm:$0x3] %vm2016, %v2010
    %v2018 = vld [vmem:[%s458] sm:$0xff]
    %v2019 = vld [vmem:[%s1463] sm:$0xff]
    %v2021 = vcombine.high %v2018, %v2018
    %v2023 = vunpack.c.l.s4 1983009808
    %v2024 = vunpack.c.0.s8 %v2023
    %v2025 = vlaneseq
    %v2026 = vshrl.u32 %v2025, 7
    %v2027 = vsub.s32 %v2024, %v2026
    %v2028 = vrot.slane %v2018, %v2027
    %v2030 = vunpack.c.l.s4 1983009808
    %v2031 = vunpack.c.0.s8 %v2030
    %v2032 = vlaneseq
    %v2033 = vshrl.u32 %v2032, 7
    %v2034 = vsub.s32 %v2031, %v2033
    %v2035 = vrot.slane %v2021, %v2034
    %v2036 = vcombine.high %v2028, %v2028
    %v2037 = vcombine.high %v2035, %v2035
    %v2043 = vcombine.high %v2019, %v2019
    %v2045 = vunpack.c.l.s4 1983009808
    %v2046 = vunpack.c.0.s8 %v2045
    %v2047 = vlaneseq
    %v2048 = vshrl.u32 %v2047, 7
    %v2049 = vsub.s32 %v2046, %v2048
    %v2050 = vrot.slane %v2019, %v2049
    %v2052 = vunpack.c.l.s4 1983009808
    %v2053 = vunpack.c.0.s8 %v2052
    %v2054 = vlaneseq
    %v2055 = vshrl.u32 %v2054, 7
    %v2056 = vsub.s32 %v2053, %v2055
    %v2057 = vrot.slane %v2043, %v2056
    %v2058 = vcombine.high %v2050, %v2050
    %v2059 = vcombine.high %v2057, %v2057
    %v2064 = vsel %vm1721, %v2028, %v2050
    %v2065 = vsel %vm1722, %v2036, %v2058
    %v2066 = vsel %vm1723, %v2035, %v2057
    %v2067 = vsel %vm1724, %v2037, %v2059
    %v2068 = vld [vmem:[#allocation3] sm:$0x3]
    %v2069 = vld [vmem:[#allocation10] sm:$0xff]
    %v2070 = vld [vmem:[#allocation10 + $0x8] sm:$0xff]
    %v2071 = vld [vmem:[#allocation10 + $0x10] sm:$0xff]
    %v2072 = vld [vmem:[#allocation10 + $0x18] sm:$0xff]
    %v2073 = vld [vmem:[#allocation10 + $0x20] sm:$0xff]
    %v2074 = vld [vmem:[#allocation10 + $0x28] sm:$0xff]
    %v2075 = vld [vmem:[#allocation10 + $0x30] sm:$0xff]
    %v2076 = vld [vmem:[#allocation10 + $0x38] sm:$0xff]
    %v2077 = vld [vmem:[#allocation10 + $0x40] sm:$0xff]
    %v2078 = vld [vmem:[#allocation10 + $0x48] sm:$0xff]
    %v2079 = vld [vmem:[#allocation10 + $0x50] sm:$0xff]
    %v2080 = vld [vmem:[#allocation10 + $0x58] sm:$0xff]
    %v2081 = vld [vmem:[#allocation10 + $0x60] sm:$0xff]
    %v2082 = vld [vmem:[#allocation10 + $0x68] sm:$0xff]
    %v2083 = vld [vmem:[#allocation10 + $0x70] sm:$0xff]
    %v2084 = vld [vmem:[#allocation10 + $0x78] sm:$0xff]
    %v2085 = vld [vmem:[#allocation10 + $0x80] sm:$0xff]
    %v2086 = vld [vmem:[#allocation10 + $0x88] sm:$0xff]
    %v2087 = vld [vmem:[#allocation10 + $0x90] sm:$0xff]
    %v2088 = vld [vmem:[#allocation10 + $0x98] sm:$0xff]
    %v2089 = vld [vmem:[#allocation10 + $0xa0] sm:$0xff]
    %v2090 = vld [vmem:[#allocation10 + $0xa8] sm:$0xff]
    %v2091 = vld [vmem:[#allocation10 + $0xb0] sm:$0xff]
    %v2092 = vld [vmem:[#allocation10 + $0xb8] sm:$0xff]
    %v2093 = vld [vmem:[#allocation10 + $0xc0] sm:$0xff]
    %v2094 = vld [vmem:[#allocation10 + $0xc8] sm:$0xff]
    %v2095 = vld [vmem:[#allocation10 + $0xd0] sm:$0xff]
    %v2096 = vld [vmem:[#allocation10 + $0xd8] sm:$0xff]
    %v2097 = vld [vmem:[#allocation10 + $0xe0] sm:$0xff]
    %v2098 = vld [vmem:[#allocation10 + $0xe8] sm:$0xff]
    %v2099 = vld [vmem:[#allocation10 + $0xf0] sm:$0xff]
    %v2100 = vld [vmem:[#allocation10 + $0xf8] sm:$0xff]
    %v2101 = vld [vmem:[#allocation10 + $0x100] sm:$0xff]
    %v2102 = vld [vmem:[#allocation10 + $0x108] sm:$0xff]
    %v2103 = vld [vmem:[#allocation10 + $0x110] sm:$0xff]
    %v2104 = vld [vmem:[#allocation10 + $0x118] sm:$0xff]
    %v2105 = vld [vmem:[#allocation10 + $0x120] sm:$0xff]
    %v2106 = vld [vmem:[#allocation10 + $0x128] sm:$0xff]
    %v2107 = vld [vmem:[#allocation10 + $0x130] sm:$0xff]
    %v2108 = vld [vmem:[#allocation10 + $0x138] sm:$0xff]
    %v2109 = vld [vmem:[#allocation10 + $0x140] sm:$0xff]
    %v2110 = vld [vmem:[#allocation10 + $0x148] sm:$0xff]
    %v2111 = vld [vmem:[#allocation10 + $0x150] sm:$0xff]
    %v2112 = vld [vmem:[#allocation10 + $0x158] sm:$0xff]
    %v2113 = vld [vmem:[#allocation10 + $0x160] sm:$0xff]
    %v2114 = vld [vmem:[#allocation10 + $0x168] sm:$0xff]
    %v2115 = vld [vmem:[#allocation10 + $0x170] sm:$0xff]
    %v2116 = vld [vmem:[#allocation10 + $0x178] sm:$0xff]
    %v2117 = vld [vmem:[#allocation10 + $0x180] sm:$0xff]
    %v2118 = vld [vmem:[#allocation10 + $0x188] sm:$0xff]
    %v2119 = vld [vmem:[#allocation10 + $0x190] sm:$0xff]
    %v2120 = vld [vmem:[#allocation10 + $0x198] sm:$0xff]
    %v2121 = vld [vmem:[#allocation10 + $0x1a0] sm:$0xff]
    %v2122 = vld [vmem:[#allocation10 + $0x1a8] sm:$0xff]
    %v2123 = vld [vmem:[#allocation10 + $0x1b0] sm:$0xff]
    %v2124 = vld [vmem:[#allocation10 + $0x1b8] sm:$0xff]
    %v2125 = vld [vmem:[#allocation10 + $0x1c0] sm:$0xff]
    %v2126 = vld [vmem:[#allocation10 + $0x1c8] sm:$0xff]
    %v2127 = vld [vmem:[#allocation10 + $0x1d0] sm:$0xff]
    %v2128 = vld [vmem:[#allocation10 + $0x1d8] sm:$0xff]
    %v2129 = vld [vmem:[#allocation10 + $0x1e0] sm:$0xff]
    %v2130 = vld [vmem:[#allocation10 + $0x1e8] sm:$0xff]
    %v2131 = vld [vmem:[#allocation10 + $0x1f0] sm:$0xff]
    %v2132 = vld [vmem:[#allocation10 + $0x1f8] sm:$0xff]
    %2133 = vmatprep.subr.mxu0 %v2070
    %2134 = vmatpush1.msra.mxu0 %v2069
    %2135 = vmatprep.subr.mxu0 %v2074
    %2136 = vmatpush1.msra.mxu0 %v2073
    %2137 = vmatprep.subr.mxu0 %v2078
    %2138 = vmatpush1.msra.mxu0 %v2077
    %2139 = vmatprep.subr.mxu0 %v2082
    %2140 = vmatpush1.msra.mxu0 %v2081
    %2141 = vmatprep.subr.mxu0 %v2086
    %2142 = vmatpush1.msra.mxu0 %v2085
    %2143 = vmatprep.subr.mxu0 %v2090
    %2144 = vmatpush1.msra.mxu0 %v2089
    %2145 = vmatprep.subr.mxu0 %v2094
    %2146 = vmatpush1.msra.mxu0 %v2093
    %2147 = vmatprep.subr.mxu0 %v2098
    %2148 = vmatpush1.msra.mxu0 %v2097
    %2149 = vmatprep.subr.mxu0 %v2102
    %2150 = vmatpush1.msra.mxu0 %v2101
    %2151 = vmatprep.subr.mxu0 %v2106
    %2152 = vmatpush1.msra.mxu0 %v2105
    %2153 = vmatprep.subr.mxu0 %v2110
    %2154 = vmatpush1.msra.mxu0 %v2109
    %2155 = vmatprep.subr.mxu0 %v2114
    %2156 = vmatpush1.msra.mxu0 %v2113
    %2157 = vmatprep.subr.mxu0 %v2118
    %2158 = vmatpush1.msra.mxu0 %v2117
    %2159 = vmatprep.subr.mxu0 %v2122
    %2160 = vmatpush1.msra.mxu0 %v2121
    %2161 = vmatprep.subr.mxu0 %v2126
    %2162 = vmatpush1.msra.mxu0 %v2125
    %2163 = vmatprep.subr.mxu0 %v2130
    %2164 = vmatpush1.msra.mxu0 %v2129
    %2165 = vmatprep.subr.mxu0 0.0
    %2166 = vmatpush1.msra.mxu0 0.0
    %2167 = vmatprep.subr.mxu0 0.0
    %2168 = vmatpush1.msra.mxu0 0.0
    %2169 = vmatprep.subr.mxu0 0.0
    %2170 = vmatpush1.msra.mxu0 0.0
    %2171 = vmatprep.subr.mxu0 0.0
    %2172 = vmatpush1.msra.mxu0 0.0
    %2173 = vmatprep.subr.mxu0 0.0
    %2174 = vmatpush1.msra.mxu0 0.0
    %2175 = vmatprep.subr.mxu0 0.0
    %2176 = vmatpush1.msra.mxu0 0.0
    %2177 = vmatprep.subr.mxu0 0.0
    %2178 = vmatpush1.msra.mxu0 0.0
    %2179 = vmatprep.subr.mxu0 0.0
    %2180 = vmatpush1.msra.mxu0 0.0
    %2181 = vmatprep.subr.mxu0 0.0
    %2182 = vmatpush1.msra.mxu0 0.0
    %2183 = vmatprep.subr.mxu0 0.0
    %2184 = vmatpush1.msra.mxu0 0.0
    %2185 = vmatprep.subr.mxu0 0.0
    %2186 = vmatpush1.msra.mxu0 0.0
    %2187 = vmatprep.subr.mxu0 0.0
    %2188 = vmatpush1.msra.mxu0 0.0
    %2189 = vmatprep.subr.mxu0 0.0
    %2190 = vmatpush1.msra.mxu0 0.0
    %2191 = vmatprep.subr.mxu0 0.0
    %2192 = vmatpush1.msra.mxu0 0.0
    %2193 = vmatprep.subr.mxu0 0.0
    %2194 = vmatpush1.msra.mxu0 0.0
    %2195 = vmatprep.subr.mxu0 0.0
    %2196 = vmatpush1.msra.mxu0 0.0
    %2197 = vmatprep.mubr.f32.mxu0 0.0
    %2198 = vmatmul.mubr.f32.gmra.mrb[0].mxu0 %v2068
    %v2199 = vpop.f32.mrb[0].mxu0
    %v2200 = vadd.f32 0.0, %v2199
    %v2201 = vpop.f32.mrb[0].mxu0
    %v2202 = vadd.f32 0.0, %v2201
    %2203 = vdwg.mxu0
    %2204 = vmatprep.subr.mxu0 %v2072
    %2205 = vmatpush1.msra.mxu0 %v2071
    %2206 = vmatprep.subr.mxu0 %v2076
    %2207 = vmatpush1.msra.mxu0 %v2075
    %2208 = vmatprep.subr.mxu0 %v2080
    %2209 = vmatpush1.msra.mxu0 %v2079
    %2210 = vmatprep.subr.mxu0 %v2084
    %2211 = vmatpush1.msra.mxu0 %v2083
    %2212 = vmatprep.subr.mxu0 %v2088
    %2213 = vmatpush1.msra.mxu0 %v2087
    %2214 = vmatprep.subr.mxu0 %v2092
    %2215 = vmatpush1.msra.mxu0 %v2091
    %2216 = vmatprep.subr.mxu0 %v2096
    %2217 = vmatpush1.msra.mxu0 %v2095
    %2218 = vmatprep.subr.mxu0 %v2100
    %2219 = vmatpush1.msra.mxu0 %v2099
    %2220 = vmatprep.subr.mxu0 %v2104
    %2221 = vmatpush1.msra.mxu0 %v2103
    %2222 = vmatprep.subr.mxu0 %v2108
    %2223 = vmatpush1.msra.mxu0 %v2107
    %2224 = vmatprep.subr.mxu0 %v2112
    %2225 = vmatpush1.msra.mxu0 %v2111
    %2226 = vmatprep.subr.mxu0 %v2116
    %2227 = vmatpush1.msra.mxu0 %v2115
    %2228 = vmatprep.subr.mxu0 %v2120
    %2229 = vmatpush1.msra.mxu0 %v2119
    %2230 = vmatprep.subr.mxu0 %v2124
    %2231 = vmatpush1.msra.mxu0 %v2123
    %2232 = vmatprep.subr.mxu0 %v2128
    %2233 = vmatpush1.msra.mxu0 %v2127
    %2234 = vmatprep.subr.mxu0 %v2132
    %2235 = vmatpush1.msra.mxu0 %v2131
    %2236 = vmatprep.subr.mxu0 0.0
    %2237 = vmatpush1.msra.mxu0 0.0
    %2238 = vmatprep.subr.mxu0 0.0
    %2239 = vmatpush1.msra.mxu0 0.0
    %2240 = vmatprep.subr.mxu0 0.0
    %2241 = vmatpush1.msra.mxu0 0.0
    %2242 = vmatprep.subr.mxu0 0.0
    %2243 = vmatpush1.msra.mxu0 0.0
    %2244 = vmatprep.subr.mxu0 0.0
    %2245 = vmatpush1.msra.mxu0 0.0
    %2246 = vmatprep.subr.mxu0 0.0
    %2247 = vmatpush1.msra.mxu0 0.0
    %2248 = vmatprep.subr.mxu0 0.0
    %2249 = vmatpush1.msra.mxu0 0.0
    %2250 = vmatprep.subr.mxu0 0.0
    %2251 = vmatpush1.msra.mxu0 0.0
    %2252 = vmatprep.subr.mxu0 0.0
    %2253 = vmatpush1.msra.mxu0 0.0
    %2254 = vmatprep.subr.mxu0 0.0
    %2255 = vmatpush1.msra.mxu0 0.0
    %2256 = vmatprep.subr.mxu0 0.0
    %2257 = vmatpush1.msra.mxu0 0.0
    %2258 = vmatprep.subr.mxu0 0.0
    %2259 = vmatpush1.msra.mxu0 0.0
    %2260 = vmatprep.subr.mxu0 0.0
    %2261 = vmatpush1.msra.mxu0 0.0
    %2262 = vmatprep.subr.mxu0 0.0
    %2263 = vmatpush1.msra.mxu0 0.0
    %2264 = vmatprep.subr.mxu0 0.0
    %2265 = vmatpush1.msra.mxu0 0.0
    %2266 = vmatprep.subr.mxu0 0.0
    %2267 = vmatpush1.msra.mxu0 0.0
    %2268 = vmatprep.mubr.f32.mxu0 0.0
    %2269 = vmatmul.mubr.f32.gmra.mrb[0].mxu0 %v2068
    %v2270 = vpop.f32.mrb[0].mxu0
    %v2271 = vadd.f32 0.0, %v2270
    %v2272 = vpop.f32.mrb[0].mxu0
    %v2273 = vadd.f32 0.0, %v2272
    %2274 = vdwg.mxu0
    %v2275 = vadd.f32 %v2064, %v2200
    %v2276 = vadd.f32 %v2065, %v2202
    %v2277 = vadd.f32 %v2066, %v2271
    %v2278 = vadd.f32 %v2067, %v2273
    %v2279 = vxor.u32 %v2275, 2147483648
    %v2280 = vmul.f32 %v2279, 1.442695
    %v2281 = vpow.pop %v2280
    %v2282 = vadd.f32 %v2281, 1.0
    %v2283 = vrcp.pop %v2282
    %v2284 = vmul.f32 1.0, %v2283
    %v2285 = vxor.u32 %v2276, 2147483648
    %v2286 = vmul.f32 %v2285, 1.442695
    %v2287 = vpow.pop %v2286
    %v2288 = vadd.f32 %v2287, 1.0
    %v2289 = vrcp.pop %v2288
    %v2290 = vmul.f32 1.0, %v2289
    %v2291 = vtanh.pop %v2277
    %v2292 = vxor.u32 %v2278, 2147483648
    %v2293 = vmul.f32 %v2292, 1.442695
    %v2294 = vpow.pop %v2293
    %v2295 = vadd.f32 %v2294, 1.0
    %v2296 = vrcp.pop %v2295
    %v2297 = vmul.f32 1.0, %v2296
    %v2298 = vld [vmem:[#allocation4] sm:$0x3]
    %v2299 = vmul.f32 %v2290, %v2298
    %v2300 = vmul.f32 %v2284, %v2291
    %v2301 = vadd.f32 %v2299, %v2300
    %v2302 = vtanh.pop %v2301
    %v2303 = vmul.f32 %v2297, %v2302
    %2304 = vst [vmem:[#allocation4] sm:$0x3] %v2301
    %2305 = vst [vmem:[#allocation3] sm:$0x3] %v2303
    %s2306 = scalar_lea.vmem [#allocation11], 2
    %2307 = vst.msk [vmem:[%s2306] sm:$0x3] %vm2013, %v2303
    %s2308 = scalar_lea.vmem [#allocation11], 12
    %2309 = vst.msk [vmem:[%s2308] sm:$0x3] %vm2016, %v2303
    %v2310 = vld [vmem:[%s659] sm:$0xff]
    %v2311 = vld [vmem:[%s1262] sm:$0xff]
    %v2313 = vcombine.high %v2310, %v2310
    %v2315 = vunpack.c.l.s4 1983009808
    %v2316 = vunpack.c.0.s8 %v2315
    %v2317 = vlaneseq
    %v2318 = vshrl.u32 %v2317, 7
    %v2319 = vsub.s32 %v2316, %v2318
    %v2320 = vrot.slane %v2310, %v2319
    %v2322 = vunpack.c.l.s4 1983009808
    %v2323 = vunpack.c.0.s8 %v2322
    %v2324 = vlaneseq
    %v2325 = vshrl.u32 %v2324, 7
    %v2326 = vsub.s32 %v2323, %v2325
    %v2327 = vrot.slane %v2313, %v2326
    %v2328 = vcombine.high %v2320, %v2320
    %v2329 = vcombine.high %v2327, %v2327
    %v2335 = vcombine.high %v2311, %v2311
    %v2337 = vunpack.c.l.s4 1983009808
    %v2338 = vunpack.c.0.s8 %v2337
    %v2339 = vlaneseq
    %v2340 = vshrl.u32 %v2339, 7
    %v2341 = vsub.s32 %v2338, %v2340
    %v2342 = vrot.slane %v2311, %v2341
    %v2344 = vunpack.c.l.s4 1983009808
    %v2345 = vunpack.c.0.s8 %v2344
    %v2346 = vlaneseq
    %v2347 = vshrl.u32 %v2346, 7
    %v2348 = vsub.s32 %v2345, %v2347
    %v2349 = vrot.slane %v2335, %v2348
    %v2350 = vcombine.high %v2342, %v2342
    %v2351 = vcombine.high %v2349, %v2349
    %v2356 = vsel %vm1721, %v2320, %v2342
    %v2357 = vsel %vm1722, %v2328, %v2350
    %v2358 = vsel %vm1723, %v2327, %v2349
    %v2359 = vsel %vm1724, %v2329, %v2351
    %v2360 = vld [vmem:[#allocation3] sm:$0x3]
    %v2361 = vld [vmem:[#allocation10] sm:$0xff]
    %v2362 = vld [vmem:[#allocation10 + $0x8] sm:$0xff]
    %v2363 = vld [vmem:[#allocation10 + $0x10] sm:$0xff]
    %v2364 = vld [vmem:[#allocation10 + $0x18] sm:$0xff]
    %v2365 = vld [vmem:[#allocation10 + $0x20] sm:$0xff]
    %v2366 = vld [vmem:[#allocation10 + $0x28] sm:$0xff]
    %v2367 = vld [vmem:[#allocation10 + $0x30] sm:$0xff]
    %v2368 = vld [vmem:[#allocation10 + $0x38] sm:$0xff]
    %v2369 = vld [vmem:[#allocation10 + $0x40] sm:$0xff]
    %v2370 = vld [vmem:[#allocation10 + $0x48] sm:$0xff]
    %v2371 = vld [vmem:[#allocation10 + $0x50] sm:$0xff]
    %v2372 = vld [vmem:[#allocation10 + $0x58] sm:$0xff]
    %v2373 = vld [vmem:[#allocation10 + $0x60] sm:$0xff]
    %v2374 = vld [vmem:[#allocation10 + $0x68] sm:$0xff]
    %v2375 = vld [vmem:[#allocation10 + $0x70] sm:$0xff]
    %v2376 = vld [vmem:[#allocation10 + $0x78] sm:$0xff]
    %v2377 = vld [vmem:[#allocation10 + $0x80] sm:$0xff]
    %v2378 = vld [vmem:[#allocation10 + $0x88] sm:$0xff]
    %v2379 = vld [vmem:[#allocation10 + $0x90] sm:$0xff]
    %v2380 = vld [vmem:[#allocation10 + $0x98] sm:$0xff]
    %v2381 = vld [vmem:[#allocation10 + $0xa0] sm:$0xff]
    %v2382 = vld [vmem:[#allocation10 + $0xa8] sm:$0xff]
    %v2383 = vld [vmem:[#allocation10 + $0xb0] sm:$0xff]
    %v2384 = vld [vmem:[#allocation10 + $0xb8] sm:$0xff]
    %v2385 = vld [vmem:[#allocation10 + $0xc0] sm:$0xff]
    %v2386 = vld [vmem:[#allocation10 + $0xc8] sm:$0xff]
    %v2387 = vld [vmem:[#allocation10 + $0xd0] sm:$0xff]
    %v2388 = vld [vmem:[#allocation10 + $0xd8] sm:$0xff]
    %v2389 = vld [vmem:[#allocation10 + $0xe0] sm:$0xff]
    %v2390 = vld [vmem:[#allocation10 + $0xe8] sm:$0xff]
    %v2391 = vld [vmem:[#allocation10 + $0xf0] sm:$0xff]
    %v2392 = vld [vmem:[#allocation10 + $0xf8] sm:$0xff]
    %v2393 = vld [vmem:[#allocation10 + $0x100] sm:$0xff]
    %v2394 = vld [vmem:[#allocation10 + $0x108] sm:$0xff]
    %v2395 = vld [vmem:[#allocation10 + $0x110] sm:$0xff]
    %v2396 = vld [vmem:[#allocation10 + $0x118] sm:$0xff]
    %v2397 = vld [vmem:[#allocation10 + $0x120] sm:$0xff]
    %v2398 = vld [vmem:[#allocation10 + $0x128] sm:$0xff]
    %v2399 = vld [vmem:[#allocation10 + $0x130] sm:$0xff]
    %v2400 = vld [vmem:[#allocation10 + $0x138] sm:$0xff]
    %v2401 = vld [vmem:[#allocation10 + $0x140] sm:$0xff]
    %v2402 = vld [vmem:[#allocation10 + $0x148] sm:$0xff]
    %v2403 = vld [vmem:[#allocation10 + $0x150] sm:$0xff]
    %v2404 = vld [vmem:[#allocation10 + $0x158] sm:$0xff]
    %v2405 = vld [vmem:[#allocation10 + $0x160] sm:$0xff]
    %v2406 = vld [vmem:[#allocation10 + $0x168] sm:$0xff]
    %v2407 = vld [vmem:[#allocation10 + $0x170] sm:$0xff]
    %v2408 = vld [vmem:[#allocation10 + $0x178] sm:$0xff]
    %v2409 = vld [vmem:[#allocation10 + $0x180] sm:$0xff]
    %v2410 = vld [vmem:[#allocation10 + $0x188] sm:$0xff]
    %v2411 = vld [vmem:[#allocation10 + $0x190] sm:$0xff]
    %v2412 = vld [vmem:[#allocation10 + $0x198] sm:$0xff]
    %v2413 = vld [vmem:[#allocation10 + $0x1a0] sm:$0xff]
    %v2414 = vld [vmem:[#allocation10 + $0x1a8] sm:$0xff]
    %v2415 = vld [vmem:[#allocation10 + $0x1b0] sm:$0xff]
    %v2416 = vld [vmem:[#allocation10 + $0x1b8] sm:$0xff]
    %v2417 = vld [vmem:[#allocation10 + $0x1c0] sm:$0xff]
    %v2418 = vld [vmem:[#allocation10 + $0x1c8] sm:$0xff]
    %v2419 = vld [vmem:[#allocation10 + $0x1d0] sm:$0xff]
    %v2420 = vld [vmem:[#allocation10 + $0x1d8] sm:$0xff]
    %v2421 = vld [vmem:[#allocation10 + $0x1e0] sm:$0xff]
    %v2422 = vld [vmem:[#allocation10 + $0x1e8] sm:$0xff]
    %v2423 = vld [vmem:[#allocation10 + $0x1f0] sm:$0xff]
    %v2424 = vld [vmem:[#allocation10 + $0x1f8] sm:$0xff]
    %2425 = vmatprep.subr.mxu0 %v2362
    %2426 = vmatpush1.msra.mxu0 %v2361
    %2427 = vmatprep.subr.mxu0 %v2366
    %2428 = vmatpush1.msra.mxu0 %v2365
    %2429 = vmatprep.subr.mxu0 %v2370
    %2430 = vmatpush1.msra.mxu0 %v2369
    %2431 = vmatprep.subr.mxu0 %v2374
    %2432 = vmatpush1.msra.mxu0 %v2373
    %2433 = vmatprep.subr.mxu0 %v2378
    %2434 = vmatpush1.msra.mxu0 %v2377
    %2435 = vmatprep.subr.mxu0 %v2382
    %2436 = vmatpush1.msra.mxu0 %v2381
    %2437 = vmatprep.subr.mxu0 %v2386
    %2438 = vmatpush1.msra.mxu0 %v2385
    %2439 = vmatprep.subr.mxu0 %v2390
    %2440 = vmatpush1.msra.mxu0 %v2389
    %2441 = vmatprep.subr.mxu0 %v2394
    %2442 = vmatpush1.msra.mxu0 %v2393
    %2443 = vmatprep.subr.mxu0 %v2398
    %2444 = vmatpush1.msra.mxu0 %v2397
    %2445 = vmatprep.subr.mxu0 %v2402
    %2446 = vmatpush1.msra.mxu0 %v2401
    %2447 = vmatprep.subr.mxu0 %v2406
    %2448 = vmatpush1.msra.mxu0 %v2405
    %2449 = vmatprep.subr.mxu0 %v2410
    %2450 = vmatpush1.msra.mxu0 %v2409
    %2451 = vmatprep.subr.mxu0 %v2414
    %2452 = vmatpush1.msra.mxu0 %v2413
    %2453 = vmatprep.subr.mxu0 %v2418
    %2454 = vmatpush1.msra.mxu0 %v2417
    %2455 = vmatprep.subr.mxu0 %v2422
    %2456 = vmatpush1.msra.mxu0 %v2421
    %2457 = vmatprep.subr.mxu0 0.0
    %2458 = vmatpush1.msra.mxu0 0.0
    %2459 = vmatprep.subr.mxu0 0.0
    %2460 = vmatpush1.msra.mxu0 0.0
    %2461 = vmatprep.subr.mxu0 0.0
    %2462 = vmatpush1.msra.mxu0 0.0
    %2463 = vmatprep.subr.mxu0 0.0
    %2464 = vmatpush1.msra.mxu0 0.0
    %2465 = vmatprep.subr.mxu0 0.0
    %2466 = vmatpush1.msra.mxu0 0.0
    %2467 = vmatprep.subr.mxu0 0.0
    %2468 = vmatpush1.msra.mxu0 0.0
    %2469 = vmatprep.subr.mxu0 0.0
    %2470 = vmatpush1.msra.mxu0 0.0
    %2471 = vmatprep.subr.mxu0 0.0
    %2472 = vmatpush1.msra.mxu0 0.0
    %2473 = vmatprep.subr.mxu0 0.0
    %2474 = vmatpush1.msra.mxu0 0.0
    %2475 = vmatprep.subr.mxu0 0.0
    %2476 = vmatpush1.msra.mxu0 0.0
    %2477 = vmatprep.subr.mxu0 0.0
    %2478 = vmatpush1.msra.mxu0 0.0
    %2479 = vmatprep.subr.mxu0 0.0
    %2480 = vmatpush1.msra.mxu0 0.0
    %2481 = vmatprep.subr.mxu0 0.0
    %2482 = vmatpush1.msra.mxu0 0.0
    %2483 = vmatprep.subr.mxu0 0.0
    %2484 = vmatpush1.msra.mxu0 0.0
    %2485 = vmatprep.subr.mxu0 0.0
    %2486 = vmatpush1.msra.mxu0 0.0
    %2487 = vmatprep.subr.mxu0 0.0
    %2488 = vmatpush1.msra.mxu0 0.0
    %2489 = vmatprep.mubr.f32.mxu0 0.0
    %2490 = vmatmul.mubr.f32.gmra.mrb[0].mxu0 %v2360
    %v2491 = vpop.f32.mrb[0].mxu0
    %v2492 = vadd.f32 0.0, %v2491
    %v2493 = vpop.f32.mrb[0].mxu0
    %v2494 = vadd.f32 0.0, %v2493
    %2495 = vdwg.mxu0
    %2496 = vmatprep.subr.mxu0 %v2364
    %2497 = vmatpush1.msra.mxu0 %v2363
    %2498 = vmatprep.subr.mxu0 %v2368
    %2499 = vmatpush1.msra.mxu0 %v2367
    %2500 = vmatprep.subr.mxu0 %v2372
    %2501 = vmatpush1.msra.mxu0 %v2371
    %2502 = vmatprep.subr.mxu0 %v2376
    %2503 = vmatpush1.msra.mxu0 %v2375
    %2504 = vmatprep.subr.mxu0 %v2380
    %2505 = vmatpush1.msra.mxu0 %v2379
    %2506 = vmatprep.subr.mxu0 %v2384
    %2507 = vmatpush1.msra.mxu0 %v2383
    %2508 = vmatprep.subr.mxu0 %v2388
    %2509 = vmatpush1.msra.mxu0 %v2387
    %2510 = vmatprep.subr.mxu0 %v2392
    %2511 = vmatpush1.msra.mxu0 %v2391
    %2512 = vmatprep.subr.mxu0 %v2396
    %2513 = vmatpush1.msra.mxu0 %v2395
    %2514 = vmatprep.subr.mxu0 %v2400
    %2515 = vmatpush1.msra.mxu0 %v2399
    %2516 = vmatprep.subr.mxu0 %v2404
    %2517 = vmatpush1.msra.mxu0 %v2403
    %2518 = vmatprep.subr.mxu0 %v2408
    %2519 = vmatpush1.msra.mxu0 %v2407
    %2520 = vmatprep.subr.mxu0 %v2412
    %2521 = vmatpush1.msra.mxu0 %v2411
    %2522 = vmatprep.subr.mxu0 %v2416
    %2523 = vmatpush1.msra.mxu0 %v2415
    %2524 = vmatprep.subr.mxu0 %v2420
    %2525 = vmatpush1.msra.mxu0 %v2419
    %2526 = vmatprep.subr.mxu0 %v2424
    %2527 = vmatpush1.msra.mxu0 %v2423
    %2528 = vmatprep.subr.mxu0 0.0
    %2529 = vmatpush1.msra.mxu0 0.0
    %2530 = vmatprep.subr.mxu0 0.0
    %2531 = vmatpush1.msra.mxu0 0.0
    %2532 = vmatprep.subr.mxu0 0.0
    %2533 = vmatpush1.msra.mxu0 0.0
    %2534 = vmatprep.subr.mxu0 0.0
    %2535 = vmatpush1.msra.mxu0 0.0
    %2536 = vmatprep.subr.mxu0 0.0
    %2537 = vmatpush1.msra.mxu0 0.0
    %2538 = vmatprep.subr.mxu0 0.0
    %2539 = vmatpush1.msra.mxu0 0.0
    %2540 = vmatprep.subr.mxu0 0.0
    %2541 = vmatpush1.msra.mxu0 0.0
    %2542 = vmatprep.subr.mxu0 0.0
    %2543 = vmatpush1.msra.mxu0 0.0
    %2544 = vmatprep.subr.mxu0 0.0
    %2545 = vmatpush1.msra.mxu0 0.0
    %2546 = vmatprep.subr.mxu0 0.0
    %2547 = vmatpush1.msra.mxu0 0.0
    %2548 = vmatprep.subr.mxu0 0.0
    %2549 = vmatpush1.msra.mxu0 0.0
    %2550 = vmatprep.subr.mxu0 0.0
    %2551 = vmatpush1.msra.mxu0 0.0
    %2552 = vmatprep.subr.mxu0 0.0
    %2553 = vmatpush1.msra.mxu0 0.0
    %2554 = vmatprep.subr.mxu0 0.0
    %2555 = vmatpush1.msra.mxu0 0.0
    %2556 = vmatprep.subr.mxu0 0.0
    %2557 = vmatpush1.msra.mxu0 0.0
    %2558 = vmatprep.subr.mxu0 0.0
    %2559 = vmatpush1.msra.mxu0 0.0
    %2560 = vmatprep.mubr.f32.mxu0 0.0
    %2561 = vmatmul.mubr.f32.gmra.mrb[0].mxu0 %v2360
    %v2562 = vpop.f32.mrb[0].mxu0
    %v2563 = vadd.f32 0.0, %v2562
    %v2564 = vpop.f32.mrb[0].mxu0
    %v2565 = vadd.f32 0.0, %v2564
    %2566 = vdwg.mxu0
    %v2567 = vadd.f32 %v2356, %v2492
    %v2568 = vadd.f32 %v2357, %v2494
    %v2569 = vadd.f32 %v2358, %v2563
    %v2570 = vadd.f32 %v2359, %v2565
    %v2571 = vxor.u32 %v2567, 2147483648
    %v2572 = vmul.f32 %v2571, 1.442695
    %v2573 = vpow.pop %v2572
    %v2574 = vadd.f32 %v2573, 1.0
    %v2575 = vrcp.pop %v2574
    %v2576 = vmul.f32 1.0, %v2575
    %v2577 = vxor.u32 %v2568, 2147483648
    %v2578 = vmul.f32 %v2577, 1.442695
    %v2579 = vpow.pop %v2578
    %v2580 = vadd.f32 %v2579, 1.0
    %v2581 = vrcp.pop %v2580
    %v2582 = vmul.f32 1.0, %v2581
    %v2583 = vtanh.pop %v2569
    %v2584 = vxor.u32 %v2570, 2147483648
    %v2585 = vmul.f32 %v2584, 1.442695
    %v2586 = vpow.pop %v2585
    %v2587 = vadd.f32 %v2586, 1.0
    %v2588 = vrcp.pop %v2587
    %v2589 = vmul.f32 1.0, %v2588
    %v2590 = vld [vmem:[#allocation4] sm:$0x3]
    %v2591 = vmul.f32 %v2582, %v2590
    %v2592 = vmul.f32 %v2576, %v2583
    %v2593 = vadd.f32 %v2591, %v2592
    %v2594 = vtanh.pop %v2593
    %v2595 = vmul.f32 %v2589, %v2594
    %2596 = vst [vmem:[#allocation4] sm:$0x3] %v2593
    %2597 = vst [vmem:[#allocation3] sm:$0x3] %v2595
    %s2598 = scalar_lea.vmem [#allocation11], 4
    %2599 = vst.msk [vmem:[%s2598] sm:$0x3] %vm2013, %v2595
    %s2600 = scalar_lea.vmem [#allocation11], 10
    %2601 = vst.msk [vmem:[%s2600] sm:$0x3] %vm2016, %v2595
    %v2602 = vld [vmem:[%s860] sm:$0xff]
    %v2603 = vld [vmem:[%s1061] sm:$0xff]
    %v2605 = vcombine.high %v2602, %v2602
    %v2607 = vunpack.c.l.s4 1983009808
    %v2608 = vunpack.c.0.s8 %v2607
    %v2609 = vlaneseq
    %v2610 = vshrl.u32 %v2609, 7
    %v2611 = vsub.s32 %v2608, %v2610
    %v2612 = vrot.slane %v2602, %v2611
    %v2614 = vunpack.c.l.s4 1983009808
    %v2615 = vunpack.c.0.s8 %v2614
    %v2616 = vlaneseq
    %v2617 = vshrl.u32 %v2616, 7
    %v2618 = vsub.s32 %v2615, %v2617
    %v2619 = vrot.slane %v2605, %v2618
    %v2620 = vcombine.high %v2612, %v2612
    %v2621 = vcombine.high %v2619, %v2619
    %v2627 = vcombine.high %v2603, %v2603
    %v2629 = vunpack.c.l.s4 1983009808
    %v2630 = vunpack.c.0.s8 %v2629
    %v2631 = vlaneseq
    %v2632 = vshrl.u32 %v2631, 7
    %v2633 = vsub.s32 %v2630, %v2632
    %v2634 = vrot.slane %v2603, %v2633
    %v2636 = vunpack.c.l.s4 1983009808
    %v2637 = vunpack.c.0.s8 %v2636
    %v2638 = vlaneseq
    %v2639 = vshrl.u32 %v2638, 7
    %v2640 = vsub.s32 %v2637, %v2639
    %v2641 = vrot.slane %v2627, %v2640
    %v2642 = vcombine.high %v2634, %v2634
    %v2643 = vcombine.high %v2641, %v2641
    %v2648 = vsel %vm1721, %v2612, %v2634
    %v2649 = vsel %vm1722, %v2620, %v2642
    %v2650 = vsel %vm1723, %v2619, %v2641
    %v2651 = vsel %vm1724, %v2621, %v2643
    %v2652 = vld [vmem:[#allocation3] sm:$0x3]
    %v2653 = vld [vmem:[#allocation10] sm:$0xff]
    %v2654 = vld [vmem:[#allocation10 + $0x8] sm:$0xff]
    %v2655 = vld [vmem:[#allocation10 + $0x10] sm:$0xff]
    %v2656 = vld [vmem:[#allocation10 + $0x18] sm:$0xff]
    %v2657 = vld [vmem:[#allocation10 + $0x20] sm:$0xff]
    %v2658 = vld [vmem:[#allocation10 + $0x28] sm:$0xff]
    %v2659 = vld [vmem:[#allocation10 + $0x30] sm:$0xff]
    %v2660 = vld [vmem:[#allocation10 + $0x38] sm:$0xff]
    %v2661 = vld [vmem:[#allocation10 + $0x40] sm:$0xff]
    %v2662 = vld [vmem:[#allocation10 + $0x48] sm:$0xff]
    %v2663 = vld [vmem:[#allocation10 + $0x50] sm:$0xff]
    %v2664 = vld [vmem:[#allocation10 + $0x58] sm:$0xff]
    %v2665 = vld [vmem:[#allocation10 + $0x60] sm:$0xff]
    %v2666 = vld [vmem:[#allocation10 + $0x68] sm:$0xff]
    %v2667 = vld [vmem:[#allocation10 + $0x70] sm:$0xff]
    %v2668 = vld [vmem:[#allocation10 + $0x78] sm:$0xff]
    %v2669 = vld [vmem:[#allocation10 + $0x80] sm:$0xff]
    %v2670 = vld [vmem:[#allocation10 + $0x88] sm:$0xff]
    %v2671 = vld [vmem:[#allocation10 + $0x90] sm:$0xff]
    %v2672 = vld [vmem:[#allocation10 + $0x98] sm:$0xff]
    %v2673 = vld [vmem:[#allocation10 + $0xa0] sm:$0xff]
    %v2674 = vld [vmem:[#allocation10 + $0xa8] sm:$0xff]
    %v2675 = vld [vmem:[#allocation10 + $0xb0] sm:$0xff]
    %v2676 = vld [vmem:[#allocation10 + $0xb8] sm:$0xff]
    %v2677 = vld [vmem:[#allocation10 + $0xc0] sm:$0xff]
    %v2678 = vld [vmem:[#allocation10 + $0xc8] sm:$0xff]
    %v2679 = vld [vmem:[#allocation10 + $0xd0] sm:$0xff]
    %v2680 = vld [vmem:[#allocation10 + $0xd8] sm:$0xff]
    %v2681 = vld [vmem:[#allocation10 + $0xe0] sm:$0xff]
    %v2682 = vld [vmem:[#allocation10 + $0xe8] sm:$0xff]
    %v2683 = vld [vmem:[#allocation10 + $0xf0] sm:$0xff]
    %v2684 = vld [vmem:[#allocation10 + $0xf8] sm:$0xff]
    %v2685 = vld [vmem:[#allocation10 + $0x100] sm:$0xff]
    %v2686 = vld [vmem:[#allocation10 + $0x108] sm:$0xff]
    %v2687 = vld [vmem:[#allocation10 + $0x110] sm:$0xff]
    %v2688 = vld [vmem:[#allocation10 + $0x118] sm:$0xff]
    %v2689 = vld [vmem:[#allocation10 + $0x120] sm:$0xff]
    %v2690 = vld [vmem:[#allocation10 + $0x128] sm:$0xff]
    %v2691 = vld [vmem:[#allocation10 + $0x130] sm:$0xff]
    %v2692 = vld [vmem:[#allocation10 + $0x138] sm:$0xff]
    %v2693 = vld [vmem:[#allocation10 + $0x140] sm:$0xff]
    %v2694 = vld [vmem:[#allocation10 + $0x148] sm:$0xff]
    %v2695 = vld [vmem:[#allocation10 + $0x150] sm:$0xff]
    %v2696 = vld [vmem:[#allocation10 + $0x158] sm:$0xff]
    %v2697 = vld [vmem:[#allocation10 + $0x160] sm:$0xff]
    %v2698 = vld [vmem:[#allocation10 + $0x168] sm:$0xff]
    %v2699 = vld [vmem:[#allocation10 + $0x170] sm:$0xff]
    %v2700 = vld [vmem:[#allocation10 + $0x178] sm:$0xff]
    %v2701 = vld [vmem:[#allocation10 + $0x180] sm:$0xff]
    %v2702 = vld [vmem:[#allocation10 + $0x188] sm:$0xff]
    %v2703 = vld [vmem:[#allocation10 + $0x190] sm:$0xff]
    %v2704 = vld [vmem:[#allocation10 + $0x198] sm:$0xff]
    %v2705 = vld [vmem:[#allocation10 + $0x1a0] sm:$0xff]
    %v2706 = vld [vmem:[#allocation10 + $0x1a8] sm:$0xff]
    %v2707 = vld [vmem:[#allocation10 + $0x1b0] sm:$0xff]
    %v2708 = vld [vmem:[#allocation10 + $0x1b8] sm:$0xff]
    %v2709 = vld [vmem:[#allocation10 + $0x1c0] sm:$0xff]
    %v2710 = vld [vmem:[#allocation10 + $0x1c8] sm:$0xff]
    %v2711 = vld [vmem:[#allocation10 + $0x1d0] sm:$0xff]
    %v2712 = vld [vmem:[#allocation10 + $0x1d8] sm:$0xff]
    %v2713 = vld [vmem:[#allocation10 + $0x1e0] sm:$0xff]
    %v2714 = vld [vmem:[#allocation10 + $0x1e8] sm:$0xff]
    %v2715 = vld [vmem:[#allocation10 + $0x1f0] sm:$0xff]
    %v2716 = vld [vmem:[#allocation10 + $0x1f8] sm:$0xff]
    %2717 = vmatprep.subr.mxu0 %v2654
    %2718 = vmatpush1.msra.mxu0 %v2653
    %2719 = vmatprep.subr.mxu0 %v2658
    %2720 = vmatpush1.msra.mxu0 %v2657
    %2721 = vmatprep.subr.mxu0 %v2662
    %2722 = vmatpush1.msra.mxu0 %v2661
    %2723 = vmatprep.subr.mxu0 %v2666
    %2724 = vmatpush1.msra.mxu0 %v2665
    %2725 = vmatprep.subr.mxu0 %v2670
    %2726 = vmatpush1.msra.mxu0 %v2669
    %2727 = vmatprep.subr.mxu0 %v2674
    %2728 = vmatpush1.msra.mxu0 %v2673
    %2729 = vmatprep.subr.mxu0 %v2678
    %2730 = vmatpush1.msra.mxu0 %v2677
    %2731 = vmatprep.subr.mxu0 %v2682
    %2732 = vmatpush1.msra.mxu0 %v2681
    %2733 = vmatprep.subr.mxu0 %v2686
    %2734 = vmatpush1.msra.mxu0 %v2685
    %2735 = vmatprep.subr.mxu0 %v2690
    %2736 = vmatpush1.msra.mxu0 %v2689
    %2737 = vmatprep.subr.mxu0 %v2694
    %2738 = vmatpush1.msra.mxu0 %v2693
    %2739 = vmatprep.subr.mxu0 %v2698
    %2740 = vmatpush1.msra.mxu0 %v2697
    %2741 = vmatprep.subr.mxu0 %v2702
    %2742 = vmatpush1.msra.mxu0 %v2701
    %2743 = vmatprep.subr.mxu0 %v2706
    %2744 = vmatpush1.msra.mxu0 %v2705
    %2745 = vmatprep.subr.mxu0 %v2710
    %2746 = vmatpush1.msra.mxu0 %v2709
    %2747 = vmatprep.subr.mxu0 %v2714
    %2748 = vmatpush1.msra.mxu0 %v2713
    %2749 = vmatprep.subr.mxu0 0.0
    %2750 = vmatpush1.msra.mxu0 0.0
    %2751 = vmatprep.subr.mxu0 0.0
    %2752 = vmatpush1.msra.mxu0 0.0
    %2753 = vmatprep.subr.mxu0 0.0
    %2754 = vmatpush1.msra.mxu0 0.0
    %2755 = vmatprep.subr.mxu0 0.0
    %2756 = vmatpush1.msra.mxu0 0.0
    %2757 = vmatprep.subr.mxu0 0.0
    %2758 = vmatpush1.msra.mxu0 0.0
    %2759 = vmatprep.subr.mxu0 0.0
    %2760 = vmatpush1.msra.mxu0 0.0
    %2761 = vmatprep.subr.mxu0 0.0
    %2762 = vmatpush1.msra.mxu0 0.0
    %2763 = vmatprep.subr.mxu0 0.0
    %2764 = vmatpush1.msra.mxu0 0.0
    %2765 = vmatprep.subr.mxu0 0.0
    %2766 = vmatpush1.msra.mxu0 0.0
    %2767 = vmatprep.subr.mxu0 0.0
    %2768 = vmatpush1.msra.mxu0 0.0
    %2769 = vmatprep.subr.mxu0 0.0
    %2770 = vmatpush1.msra.mxu0 0.0
    %2771 = vmatprep.subr.mxu0 0.0
    %2772 = vmatpush1.msra.mxu0 0.0
    %2773 = vmatprep.subr.mxu0 0.0
    %2774 = vmatpush1.msra.mxu0 0.0
    %2775 = vmatprep.subr.mxu0 0.0
    %2776 = vmatpush1.msra.mxu0 0.0
    %2777 = vmatprep.subr.mxu0 0.0
    %2778 = vmatpush1.msra.mxu0 0.0
    %2779 = vmatprep.subr.mxu0 0.0
    %2780 = vmatpush1.msra.mxu0 0.0
    %2781 = vmatprep.mubr.f32.mxu0 0.0
    %2782 = vmatmul.mubr.f32.gmra.mrb[0].mxu0 %v2652
    %v2783 = vpop.f32.mrb[0].mxu0
    %v2784 = vadd.f32 0.0, %v2783
    %v2785 = vpop.f32.mrb[0].mxu0
    %v2786 = vadd.f32 0.0, %v2785
    %2787 = vdwg.mxu0
    %2788 = vmatprep.subr.mxu0 %v2656
    %2789 = vmatpush1.msra.mxu0 %v2655
    %2790 = vmatprep.subr.mxu0 %v2660
    %2791 = vmatpush1.msra.mxu0 %v2659
    %2792 = vmatprep.subr.mxu0 %v2664
    %2793 = vmatpush1.msra.mxu0 %v2663
    %2794 = vmatprep.subr.mxu0 %v2668
    %2795 = vmatpush1.msra.mxu0 %v2667
    %2796 = vmatprep.subr.mxu0 %v2672
    %2797 = vmatpush1.msra.mxu0 %v2671
    %2798 = vmatprep.subr.mxu0 %v2676
    %2799 = vmatpush1.msra.mxu0 %v2675
    %2800 = vmatprep.subr.mxu0 %v2680
    %2801 = vmatpush1.msra.mxu0 %v2679
    %2802 = vmatprep.subr.mxu0 %v2684
    %2803 = vmatpush1.msra.mxu0 %v2683
    %2804 = vmatprep.subr.mxu0 %v2688
    %2805 = vmatpush1.msra.mxu0 %v2687
    %2806 = vmatprep.subr.mxu0 %v2692
    %2807 = vmatpush1.msra.mxu0 %v2691
    %2808 = vmatprep.subr.mxu0 %v2696
    %2809 = vmatpush1.msra.mxu0 %v2695
    %2810 = vmatprep.subr.mxu0 %v2700
    %2811 = vmatpush1.msra.mxu0 %v2699
    %2812 = vmatprep.subr.mxu0 %v2704
    %2813 = vmatpush1.msra.mxu0 %v2703
    %2814 = vmatprep.subr.mxu0 %v2708
    %2815 = vmatpush1.msra.mxu0 %v2707
    %2816 = vmatprep.subr.mxu0 %v2712
    %2817 = vmatpush1.msra.mxu0 %v2711
    %2818 = vmatprep.subr.mxu0 %v2716
    %2819 = vmatpush1.msra.mxu0 %v2715
    %2820 = vmatprep.subr.mxu0 0.0
    %2821 = vmatpush1.msra.mxu0 0.0
    %2822 = vmatprep.subr.mxu0 0.0
    %2823 = vmatpush1.msra.mxu0 0.0
    %2824 = vmatprep.subr.mxu0 0.0
    %2825 = vmatpush1.msra.mxu0 0.0
    %2826 = vmatprep.subr.mxu0 0.0
    %2827 = vmatpush1.msra.mxu0 0.0
    %2828 = vmatprep.subr.mxu0 0.0
    %2829 = vmatpush1.msra.mxu0 0.0
    %2830 = vmatprep.subr.mxu0 0.0
    %2831 = vmatpush1.msra.mxu0 0.0
    %2832 = vmatprep.subr.mxu0 0.0
    %2833 = vmatpush1.msra.mxu0 0.0
    %2834 = vmatprep.subr.mxu0 0.0
    %2835 = vmatpush1.msra.mxu0 0.0
    %2836 = vmatprep.subr.mxu0 0.0
    %2837 = vmatpush1.msra.mxu0 0.0
    %2838 = vmatprep.subr.mxu0 0.0
    %2839 = vmatpush1.msra.mxu0 0.0
    %2840 = vmatprep.subr.mxu0 0.0
    %2841 = vmatpush1.msra.mxu0 0.0
    %2842 = vmatprep.subr.mxu0 0.0
    %2843 = vmatpush1.msra.mxu0 0.0
    %2844 = vmatprep.subr.mxu0 0.0
    %2845 = vmatpush1.msra.mxu0 0.0
    %2846 = vmatprep.subr.mxu0 0.0
    %2847 = vmatpush1.msra.mxu0 0.0
    %2848 = vmatprep.subr.mxu0 0.0
    %2849 = vmatpush1.msra.mxu0 0.0
    %2850 = vmatprep.subr.mxu0 0.0
    %2851 = vmatpush1.msra.mxu0 0.0
    %2852 = vmatprep.mubr.f32.mxu0 0.0
    %2853 = vmatmul.mubr.f32.gmra.mrb[0].mxu0 %v2652
    %v2854 = vpop.f32.mrb[0].mxu0
    %v2855 = vadd.f32 0.0, %v2854
    %v2856 = vpop.f32.mrb[0].mxu0
    %v2857 = vadd.f32 0.0, %v2856
    %2858 = vdwg.mxu0
    %v2859 = vadd.f32 %v2648, %v2784
    %v2860 = vadd.f32 %v2649, %v2786
    %v2861 = vadd.f32 %v2650, %v2855
    %v2862 = vadd.f32 %v2651, %v2857
    %v2863 = vxor.u32 %v2859, 2147483648
    %v2864 = vmul.f32 %v2863, 1.442695
    %v2865 = vpow.pop %v2864
    %v2866 = vadd.f32 %v2865, 1.0
    %v2867 = vrcp.pop %v2866
    %v2868 = vmul.f32 1.0, %v2867
    %v2869 = vxor.u32 %v2860, 2147483648
    %v2870 = vmul.f32 %v2869, 1.442695
    %v2871 = vpow.pop %v2870
    %v2872 = vadd.f32 %v2871, 1.0
    %v2873 = vrcp.pop %v2872
    %v2874 = vmul.f32 1.0, %v2873
    %v2875 = vtanh.pop %v2861
    %v2876 = vxor.u32 %v2862, 2147483648
    %v2877 = vmul.f32 %v2876, 1.442695
    %v2878 = vpow.pop %v2877
    %v2879 = vadd.f32 %v2878, 1.0
    %v2880 = vrcp.pop %v2879
    %v2881 = vmul.f32 1.0, %v2880
    %v2882 = vld [vmem:[#allocation4] sm:$0x3]
    %v2883 = vmul.f32 %v2874, %v2882
    %v2884 = vmul.f32 %v2868, %v2875
    %v2885 = vadd.f32 %v2883, %v2884
    %v2886 = vtanh.pop %v2885
    %v2887 = vmul.f32 %v2881, %v2886
    %2888 = vst [vmem:[#allocation4] sm:$0x3] %v2885
    %2889 = vst [vmem:[#allocation3] sm:$0x3] %v2887
    %s2890 = scalar_lea.vmem [#allocation11], 6
    %2891 = vst.msk [vmem:[%s2890] sm:$0x3] %vm2013, %v2887
    %s2892 = scalar_lea.vmem [#allocation11], 8
    %2893 = vst.msk [vmem:[%s2892] sm:$0x3] %vm2016, %v2887
    %v2894 = vld [vmem:[%s1061] sm:$0xff]
    %v2895 = vld [vmem:[%s860] sm:$0xff]
    %v2897 = vcombine.high %v2894, %v2894
    %v2899 = vunpack.c.l.s4 1983009808
    %v2900 = vunpack.c.0.s8 %v2899
    %v2901 = vlaneseq
    %v2902 = vshrl.u32 %v2901, 7
    %v2903 = vsub.s32 %v2900, %v2902
    %v2904 = vrot.slane %v2894, %v2903
    %v2906 = vunpack.c.l.s4 1983009808
    %v2907 = vunpack.c.0.s8 %v2906
    %v2908 = vlaneseq
    %v2909 = vshrl.u32 %v2908, 7
    %v2910 = vsub.s32 %v2907, %v2909
    %v2911 = vrot.slane %v2897, %v2910
    %v2912 = vcombine.high %v2904, %v2904
    %v2913 = vcombine.high %v2911, %v2911
    %v2919 = vcombine.high %v2895, %v2895
    %v2921 = vunpack.c.l.s4 1983009808
    %v2922 = vunpack.c.0.s8 %v2921
    %v2923 = vlaneseq
    %v2924 = vshrl.u32 %v2923, 7
    %v2925 = vsub.s32 %v2922, %v2924
    %v2926 = vrot.slane %v2895, %v2925
    %v2928 = vunpack.c.l.s4 1983009808
    %v2929 = vunpack.c.0.s8 %v2928
    %v2930 = vlaneseq
    %v2931 = vshrl.u32 %v2930, 7
    %v2932 = vsub.s32 %v2929, %v2931
    %v2933 = vrot.slane %v2919, %v2932
    %v2934 = vcombine.high %v2926, %v2926
    %v2935 = vcombine.high %v2933, %v2933
    %v2940 = vsel %vm1721, %v2904, %v2926
    %v2941 = vsel %vm1722, %v2912, %v2934
    %v2942 = vsel %vm1723, %v2911, %v2933
    %v2943 = vsel %vm1724, %v2913, %v2935
    %v2944 = vld [vmem:[#allocation3] sm:$0x3]
    %v2945 = vld [vmem:[#allocation10] sm:$0xff]
    %v2946 = vld [vmem:[#allocation10 + $0x8] sm:$0xff]
    %v2947 = vld [vmem:[#allocation10 + $0x10] sm:$0xff]
    %v2948 = vld [vmem:[#allocation10 + $0x18] sm:$0xff]
    %v2949 = vld [vmem:[#allocation10 + $0x20] sm:$0xff]
    %v2950 = vld [vmem:[#allocation10 + $0x28] sm:$0xff]
    %v2951 = vld [vmem:[#allocation10 + $0x30] sm:$0xff]
    %v2952 = vld [vmem:[#allocation10 + $0x38] sm:$0xff]
    %v2953 = vld [vmem:[#allocation10 + $0x40] sm:$0xff]
    %v2954 = vld [vmem:[#allocation10 + $0x48] sm:$0xff]
    %v2955 = vld [vmem:[#allocation10 + $0x50] sm:$0xff]
    %v2956 = vld [vmem:[#allocation10 + $0x58] sm:$0xff]
    %v2957 = vld [vmem:[#allocation10 + $0x60] sm:$0xff]
    %v2958 = vld [vmem:[#allocation10 + $0x68] sm:$0xff]
    %v2959 = vld [vmem:[#allocation10 + $0x70] sm:$0xff]
    %v2960 = vld [vmem:[#allocation10 + $0x78] sm:$0xff]
    %v2961 = vld [vmem:[#allocation10 + $0x80] sm:$0xff]
    %v2962 = vld [vmem:[#allocation10 + $0x88] sm:$0xff]
    %v2963 = vld [vmem:[#allocation10 + $0x90] sm:$0xff]
    %v2964 = vld [vmem:[#allocation10 + $0x98] sm:$0xff]
    %v2965 = vld [vmem:[#allocation10 + $0xa0] sm:$0xff]
    %v2966 = vld [vmem:[#allocation10 + $0xa8] sm:$0xff]
    %v2967 = vld [vmem:[#allocation10 + $0xb0] sm:$0xff]
    %v2968 = vld [vmem:[#allocation10 + $0xb8] sm:$0xff]
    %v2969 = vld [vmem:[#allocation10 + $0xc0] sm:$0xff]
    %v2970 = vld [vmem:[#allocation10 + $0xc8] sm:$0xff]
    %v2971 = vld [vmem:[#allocation10 + $0xd0] sm:$0xff]
    %v2972 = vld [vmem:[#allocation10 + $0xd8] sm:$0xff]
    %v2973 = vld [vmem:[#allocation10 + $0xe0] sm:$0xff]
    %v2974 = vld [vmem:[#allocation10 + $0xe8] sm:$0xff]
    %v2975 = vld [vmem:[#allocation10 + $0xf0] sm:$0xff]
    %v2976 = vld [vmem:[#allocation10 + $0xf8] sm:$0xff]
    %v2977 = vld [vmem:[#allocation10 + $0x100] sm:$0xff]
    %v2978 = vld [vmem:[#allocation10 + $0x108] sm:$0xff]
    %v2979 = vld [vmem:[#allocation10 + $0x110] sm:$0xff]
    %v2980 = vld [vmem:[#allocation10 + $0x118] sm:$0xff]
    %v2981 = vld [vmem:[#allocation10 + $0x120] sm:$0xff]
    %v2982 = vld [vmem:[#allocation10 + $0x128] sm:$0xff]
    %v2983 = vld [vmem:[#allocation10 + $0x130] sm:$0xff]
    %v2984 = vld [vmem:[#allocation10 + $0x138] sm:$0xff]
    %v2985 = vld [vmem:[#allocation10 + $0x140] sm:$0xff]
    %v2986 = vld [vmem:[#allocation10 + $0x148] sm:$0xff]
    %v2987 = vld [vmem:[#allocation10 + $0x150] sm:$0xff]
    %v2988 = vld [vmem:[#allocation10 + $0x158] sm:$0xff]
    %v2989 = vld [vmem:[#allocation10 + $0x160] sm:$0xff]
    %v2990 = vld [vmem:[#allocation10 + $0x168] sm:$0xff]
    %v2991 = vld [vmem:[#allocation10 + $0x170] sm:$0xff]
    %v2992 = vld [vmem:[#allocation10 + $0x178] sm:$0xff]
    %v2993 = vld [vmem:[#allocation10 + $0x180] sm:$0xff]
    %v2994 = vld [vmem:[#allocation10 + $0x188] sm:$0xff]
    %v2995 = vld [vmem:[#allocation10 + $0x190] sm:$0xff]
    %v2996 = vld [vmem:[#allocation10 + $0x198] sm:$0xff]
    %v2997 = vld [vmem:[#allocation10 + $0x1a0] sm:$0xff]
    %v2998 = vld [vmem:[#allocation10 + $0x1a8] sm:$0xff]
    %v2999 = vld [vmem:[#allocation10 + $0x1b0] sm:$0xff]
    %v3000 = vld [vmem:[#allocation10 + $0x1b8] sm:$0xff]
    %v3001 = vld [vmem:[#allocation10 + $0x1c0] sm:$0xff]
    %v3002 = vld [vmem:[#allocation10 + $0x1c8] sm:$0xff]
    %v3003 = vld [vmem:[#allocation10 + $0x1d0] sm:$0xff]
    %v3004 = vld [vmem:[#allocation10 + $0x1d8] sm:$0xff]
    %v3005 = vld [vmem:[#allocation10 + $0x1e0] sm:$0xff]
    %v3006 = vld [vmem:[#allocation10 + $0x1e8] sm:$0xff]
    %v3007 = vld [vmem:[#allocation10 + $0x1f0] sm:$0xff]
    %v3008 = vld [vmem:[#allocation10 + $0x1f8] sm:$0xff]
    %3009 = vmatprep.subr.mxu0 %v2946
    %3010 = vmatpush1.msra.mxu0 %v2945
    %3011 = vmatprep.subr.mxu0 %v2950
    %3012 = vmatpush1.msra.mxu0 %v2949
    %3013 = vmatprep.subr.mxu0 %v2954
    %3014 = vmatpush1.msra.mxu0 %v2953
    %3015 = vmatprep.subr.mxu0 %v2958
    %3016 = vmatpush1.msra.mxu0 %v2957
    %3017 = vmatprep.subr.mxu0 %v2962
    %3018 = vmatpush1.msra.mxu0 %v2961
    %3019 = vmatprep.subr.mxu0 %v2966
    %3020 = vmatpush1.msra.mxu0 %v2965
    %3021 = vmatprep.subr.mxu0 %v2970
    %3022 = vmatpush1.msra.mxu0 %v2969
    %3023 = vmatprep.subr.mxu0 %v2974
    %3024 = vmatpush1.msra.mxu0 %v2973
    %3025 = vmatprep.subr.mxu0 %v2978
    %3026 = vmatpush1.msra.mxu0 %v2977
    %3027 = vmatprep.subr.mxu0 %v2982
    %3028 = vmatpush1.msra.mxu0 %v2981
    %3029 = vmatprep.subr.mxu0 %v2986
    %3030 = vmatpush1.msra.mxu0 %v2985
    %3031 = vmatprep.subr.mxu0 %v2990
    %3032 = vmatpush1.msra.mxu0 %v2989
    %3033 = vmatprep.subr.mxu0 %v2994
    %3034 = vmatpush1.msra.mxu0 %v2993
    %3035 = vmatprep.subr.mxu0 %v2998
    %3036 = vmatpush1.msra.mxu0 %v2997
    %3037 = vmatprep.subr.mxu0 %v3002
    %3038 = vmatpush1.msra.mxu0 %v3001
    %3039 = vmatprep.subr.mxu0 %v3006
    %3040 = vmatpush1.msra.mxu0 %v3005
    %3041 = vmatprep.subr.mxu0 0.0
    %3042 = vmatpush1.msra.mxu0 0.0
    %3043 = vmatprep.subr.mxu0 0.0
    %3044 = vmatpush1.msra.mxu0 0.0
    %3045 = vmatprep.subr.mxu0 0.0
    %3046 = vmatpush1.msra.mxu0 0.0
    %3047 = vmatprep.subr.mxu0 0.0
    %3048 = vmatpush1.msra.mxu0 0.0
    %3049 = vmatprep.subr.mxu0 0.0
    %3050 = vmatpush1.msra.mxu0 0.0
    %3051 = vmatprep.subr.mxu0 0.0
    %3052 = vmatpush1.msra.mxu0 0.0
    %3053 = vmatprep.subr.mxu0 0.0
    %3054 = vmatpush1.msra.mxu0 0.0
    %3055 = vmatprep.subr.mxu0 0.0
    %3056 = vmatpush1.msra.mxu0 0.0
    %3057 = vmatprep.subr.mxu0 0.0
    %3058 = vmatpush1.msra.mxu0 0.0
    %3059 = vmatprep.subr.mxu0 0.0
    %3060 = vmatpush1.msra.mxu0 0.0
    %3061 = vmatprep.subr.mxu0 0.0
    %3062 = vmatpush1.msra.mxu0 0.0
    %3063 = vmatprep.subr.mxu0 0.0
    %3064 = vmatpush1.msra.mxu0 0.0
    %3065 = vmatprep.subr.mxu0 0.0
    %3066 = vmatpush1.msra.mxu0 0.0
    %3067 = vmatprep.subr.mxu0 0.0
    %3068 = vmatpush1.msra.mxu0 0.0
    %3069 = vmatprep.subr.mxu0 0.0
    %3070 = vmatpush1.msra.mxu0 0.0
    %3071 = vmatprep.subr.mxu0 0.0
    %3072 = vmatpush1.msra.mxu0 0.0
    %3073 = vmatprep.mubr.f32.mxu0 0.0
    %3074 = vmatmul.mubr.f32.gmra.mrb[0].mxu0 %v2944
    %v3075 = vpop.f32.mrb[0].mxu0
    %v3076 = vadd.f32 0.0, %v3075
    %v3077 = vpop.f32.mrb[0].mxu0
    %v3078 = vadd.f32 0.0, %v3077
    %3079 = vdwg.mxu0
    %3080 = vmatprep.subr.mxu0 %v2948
    %3081 = vmatpush1.msra.mxu0 %v2947
    %3082 = vmatprep.subr.mxu0 %v2952
    %3083 = vmatpush1.msra.mxu0 %v2951
    %3084 = vmatprep.subr.mxu0 %v2956
    %3085 = vmatpush1.msra.mxu0 %v2955
    %3086 = vmatprep.subr.mxu0 %v2960
    %3087 = vmatpush1.msra.mxu0 %v2959
    %3088 = vmatprep.subr.mxu0 %v2964
    %3089 = vmatpush1.msra.mxu0 %v2963
    %3090 = vmatprep.subr.mxu0 %v2968
    %3091 = vmatpush1.msra.mxu0 %v2967
    %3092 = vmatprep.subr.mxu0 %v2972
    %3093 = vmatpush1.msra.mxu0 %v2971
    %3094 = vmatprep.subr.mxu0 %v2976
    %3095 = vmatpush1.msra.mxu0 %v2975
    %3096 = vmatprep.subr.mxu0 %v2980
    %3097 = vmatpush1.msra.mxu0 %v2979
    %3098 = vmatprep.subr.mxu0 %v2984
    %3099 = vmatpush1.msra.mxu0 %v2983
    %3100 = vmatprep.subr.mxu0 %v2988
    %3101 = vmatpush1.msra.mxu0 %v2987
    %3102 = vmatprep.subr.mxu0 %v2992
    %3103 = vmatpush1.msra.mxu0 %v2991
    %3104 = vmatprep.subr.mxu0 %v2996
    %3105 = vmatpush1.msra.mxu0 %v2995
    %3106 = vmatprep.subr.mxu0 %v3000
    %3107 = vmatpush1.msra.mxu0 %v2999
    %3108 = vmatprep.subr.mxu0 %v3004
    %3109 = vmatpush1.msra.mxu0 %v3003
    %3110 = vmatprep.subr.mxu0 %v3008
    %3111 = vmatpush1.msra.mxu0 %v3007
    %3112 = vmatprep.subr.mxu0 0.0
    %3113 = vmatpush1.msra.mxu0 0.0
    %3114 = vmatprep.subr.mxu0 0.0
    %3115 = vmatpush1.msra.mxu0 0.0
    %3116 = vmatprep.subr.mxu0 0.0
    %3117 = vmatpush1.msra.mxu0 0.0
    %3118 = vmatprep.subr.mxu0 0.0
    %3119 = vmatpush1.msra.mxu0 0.0
    %3120 = vmatprep.subr.mxu0 0.0
    %3121 = vmatpush1.msra.mxu0 0.0
    %3122 = vmatprep.subr.mxu0 0.0
    %3123 = vmatpush1.msra.mxu0 0.0
    %3124 = vmatprep.subr.mxu0 0.0
    %3125 = vmatpush1.msra.mxu0 0.0
    %3126 = vmatprep.subr.mxu0 0.0
    %3127 = vmatpush1.msra.mxu0 0.0
    %3128 = vmatprep.subr.mxu0 0.0
    %3129 = vmatpush1.msra.mxu0 0.0
    %3130 = vmatprep.subr.mxu0 0.0
    %3131 = vmatpush1.msra.mxu0 0.0
    %3132 = vmatprep.subr.mxu0 0.0
    %3133 = vmatpush1.msra.mxu0 0.0
    %3134 = vmatprep.subr.mxu0 0.0
    %3135 = vmatpush1.msra.mxu0 0.0
    %3136 = vmatprep.subr.mxu0 0.0
    %3137 = vmatpush1.msra.mxu0 0.0
    %3138 = vmatprep.subr.mxu0 0.0
    %3139 = vmatpush1.msra.mxu0 0.0
    %3140 = vmatprep.subr.mxu0 0.0
    %3141 = vmatpush1.msra.mxu0 0.0
    %3142 = vmatprep.subr.mxu0 0.0
    %3143 = vmatpush1.msra.mxu0 0.0
    %3144 = vmatprep.mubr.f32.mxu0 0.0
    %3145 = vmatmul.mubr.f32.gmra.mrb[0].mxu0 %v2944
    %v3146 = vpop.f32.mrb[0].mxu0
    %v3147 = vadd.f32 0.0, %v3146
    %v3148 = vpop.f32.mrb[0].mxu0
    %v3149 = vadd.f32 0.0, %v3148
    %3150 = vdwg.mxu0
    %v3151 = vadd.f32 %v2940, %v3076
    %v3152 = vadd.f32 %v2941, %v3078
    %v3153 = vadd.f32 %v2942, %v3147
    %v3154 = vadd.f32 %v2943, %v3149
    %v3155 = vxor.u32 %v3151, 2147483648
    %v3156 = vmul.f32 %v3155, 1.442695
    %v3157 = vpow.pop %v3156
    %v3158 = vadd.f32 %v3157, 1.0
    %v3159 = vrcp.pop %v3158
    %v3160 = vmul.f32 1.0, %v3159
    %v3161 = vxor.u32 %v3152, 2147483648
    %v3162 = vmul.f32 %v3161, 1.442695
    %v3163 = vpow.pop %v3162
    %v3164 = vadd.f32 %v3163, 1.0
    %v3165 = vrcp.pop %v3164
    %v3166 = vmul.f32 1.0, %v3165
    %v3167 = vtanh.pop %v3153
    %v3168 = vxor.u32 %v3154, 2147483648
    %v3169 = vmul.f32 %v3168, 1.442695
    %v3170 = vpow.pop %v3169
    %v3171 = vadd.f32 %v3170, 1.0
    %v3172 = vrcp.pop %v3171
    %v3173 = vmul.f32 1.0, %v3172
    %v3174 = vld [vmem:[#allocation4] sm:$0x3]
    %v3175 = vmul.f32 %v3166, %v3174
    %v3176 = vmul.f32 %v3160, %v3167
    %v3177 = vadd.f32 %v3175, %v3176
    %v3178 = vtanh.pop %v3177
    %v3179 = vmul.f32 %v3173, %v3178
    %3180 = vst [vmem:[#allocation4] sm:$0x3] %v3177
    %3181 = vst [vmem:[#allocation3] sm:$0x3] %v3179
    %3182 = vst.msk [vmem:[%s2892] sm:$0x3] %vm2013, %v3179
    %3183 = vst.msk [vmem:[%s2890] sm:$0x3] %vm2016, %v3179
    %v3184 = vld [vmem:[%s1262] sm:$0xff]
    %v3185 = vld [vmem:[%s659] sm:$0xff]
    %v3187 = vcombine.high %v3184, %v3184
    %v3189 = vunpack.c.l.s4 1983009808
    %v3190 = vunpack.c.0.s8 %v3189
    %v3191 = vlaneseq
    %v3192 = vshrl.u32 %v3191, 7
    %v3193 = vsub.s32 %v3190, %v3192
    %v3194 = vrot.slane %v3184, %v3193
    %v3196 = vunpack.c.l.s4 1983009808
    %v3197 = vunpack.c.0.s8 %v3196
    %v3198 = vlaneseq
    %v3199 = vshrl.u32 %v3198, 7
    %v3200 = vsub.s32 %v3197, %v3199
    %v3201 = vrot.slane %v3187, %v3200
    %v3202 = vcombine.high %v3194, %v3194
    %v3203 = vcombine.high %v3201, %v3201
    %v3209 = vcombine.high %v3185, %v3185
    %v3211 = vunpack.c.l.s4 1983009808
    %v3212 = vunpack.c.0.s8 %v3211
    %v3213 = vlaneseq
    %v3214 = vshrl.u32 %v3213, 7
    %v3215 = vsub.s32 %v3212, %v3214
    %v3216 = vrot.slane %v3185, %v3215
    %v3218 = vunpack.c.l.s4 1983009808
    %v3219 = vunpack.c.0.s8 %v3218
    %v3220 = vlaneseq
    %v3221 = vshrl.u32 %v3220, 7
    %v3222 = vsub.s32 %v3219, %v3221
    %v3223 = vrot.slane %v3209, %v3222
    %v3224 = vcombine.high %v3216, %v3216
    %v3225 = vcombine.high %v3223, %v3223
    %v3230 = vsel %vm1721, %v3194, %v3216
    %v3231 = vsel %vm1722, %v3202, %v3224
    %v3232 = vsel %vm1723, %v3201, %v3223
    %v3233 = vsel %vm1724, %v3203, %v3225
    %v3234 = vld [vmem:[#allocation3] sm:$0x3]
    %v3235 = vld [vmem:[#allocation10] sm:$0xff]
    %v3236 = vld [vmem:[#allocation10 + $0x8] sm:$0xff]
    %v3237 = vld [vmem:[#allocation10 + $0x10] sm:$0xff]
    %v3238 = vld [vmem:[#allocation10 + $0x18] sm:$0xff]
    %v3239 = vld [vmem:[#allocation10 + $0x20] sm:$0xff]
    %v3240 = vld [vmem:[#allocation10 + $0x28] sm:$0xff]
    %v3241 = vld [vmem:[#allocation10 + $0x30] sm:$0xff]
    %v3242 = vld [vmem:[#allocation10 + $0x38] sm:$0xff]
    %v3243 = vld [vmem:[#allocation10 + $0x40] sm:$0xff]
    %v3244 = vld [vmem:[#allocation10 + $0x48] sm:$0xff]
    %v3245 = vld [vmem:[#allocation10 + $0x50] sm:$0xff]
    %v3246 = vld [vmem:[#allocation10 + $0x58] sm:$0xff]
    %v3247 = vld [vmem:[#allocation10 + $0x60] sm:$0xff]
    %v3248 = vld [vmem:[#allocation10 + $0x68] sm:$0xff]
    %v3249 = vld [vmem:[#allocation10 + $0x70] sm:$0xff]
    %v3250 = vld [vmem:[#allocation10 + $0x78] sm:$0xff]
    %v3251 = vld [vmem:[#allocation10 + $0x80] sm:$0xff]
    %v3252 = vld [vmem:[#allocation10 + $0x88] sm:$0xff]
    %v3253 = vld [vmem:[#allocation10 + $0x90] sm:$0xff]
    %v3254 = vld [vmem:[#allocation10 + $0x98] sm:$0xff]
    %v3255 = vld [vmem:[#allocation10 + $0xa0] sm:$0xff]
    %v3256 = vld [vmem:[#allocation10 + $0xa8] sm:$0xff]
    %v3257 = vld [vmem:[#allocation10 + $0xb0] sm:$0xff]
    %v3258 = vld [vmem:[#allocation10 + $0xb8] sm:$0xff]
    %v3259 = vld [vmem:[#allocation10 + $0xc0] sm:$0xff]
    %v3260 = vld [vmem:[#allocation10 + $0xc8] sm:$0xff]
    %v3261 = vld [vmem:[#allocation10 + $0xd0] sm:$0xff]
    %v3262 = vld [vmem:[#allocation10 + $0xd8] sm:$0xff]
    %v3263 = vld [vmem:[#allocation10 + $0xe0] sm:$0xff]
    %v3264 = vld [vmem:[#allocation10 + $0xe8] sm:$0xff]
    %v3265 = vld [vmem:[#allocation10 + $0xf0] sm:$0xff]
    %v3266 = vld [vmem:[#allocation10 + $0xf8] sm:$0xff]
    %v3267 = vld [vmem:[#allocation10 + $0x100] sm:$0xff]
    %v3268 = vld [vmem:[#allocation10 + $0x108] sm:$0xff]
    %v3269 = vld [vmem:[#allocation10 + $0x110] sm:$0xff]
    %v3270 = vld [vmem:[#allocation10 + $0x118] sm:$0xff]
    %v3271 = vld [vmem:[#allocation10 + $0x120] sm:$0xff]
    %v3272 = vld [vmem:[#allocation10 + $0x128] sm:$0xff]
    %v3273 = vld [vmem:[#allocation10 + $0x130] sm:$0xff]
    %v3274 = vld [vmem:[#allocation10 + $0x138] sm:$0xff]
    %v3275 = vld [vmem:[#allocation10 + $0x140] sm:$0xff]
    %v3276 = vld [vmem:[#allocation10 + $0x148] sm:$0xff]
    %v3277 = vld [vmem:[#allocation10 + $0x150] sm:$0xff]
    %v3278 = vld [vmem:[#allocation10 + $0x158] sm:$0xff]
    %v3279 = vld [vmem:[#allocation10 + $0x160] sm:$0xff]
    %v3280 = vld [vmem:[#allocation10 + $0x168] sm:$0xff]
    %v3281 = vld [vmem:[#allocation10 + $0x170] sm:$0xff]
    %v3282 = vld [vmem:[#allocation10 + $0x178] sm:$0xff]
    %v3283 = vld [vmem:[#allocation10 + $0x180] sm:$0xff]
    %v3284 = vld [vmem:[#allocation10 + $0x188] sm:$0xff]
    %v3285 = vld [vmem:[#allocation10 + $0x190] sm:$0xff]
    %v3286 = vld [vmem:[#allocation10 + $0x198] sm:$0xff]
    %v3287 = vld [vmem:[#allocation10 + $0x1a0] sm:$0xff]
    %v3288 = vld [vmem:[#allocation10 + $0x1a8] sm:$0xff]
    %v3289 = vld [vmem:[#allocation10 + $0x1b0] sm:$0xff]
    %v3290 = vld [vmem:[#allocation10 + $0x1b8] sm:$0xff]
    %v3291 = vld [vmem:[#allocation10 + $0x1c0] sm:$0xff]
    %v3292 = vld [vmem:[#allocation10 + $0x1c8] sm:$0xff]
    %v3293 = vld [vmem:[#allocation10 + $0x1d0] sm:$0xff]
    %v3294 = vld [vmem:[#allocation10 + $0x1d8] sm:$0xff]
    %v3295 = vld [vmem:[#allocation10 + $0x1e0] sm:$0xff]
    %v3296 = vld [vmem:[#allocation10 + $0x1e8] sm:$0xff]
    %v3297 = vld [vmem:[#allocation10 + $0x1f0] sm:$0xff]
    %v3298 = vld [vmem:[#allocation10 + $0x1f8] sm:$0xff]
    %3299 = vmatprep.subr.mxu0 %v3236
    %3300 = vmatpush1.msra.mxu0 %v3235
    %3301 = vmatprep.subr.mxu0 %v3240
    %3302 = vmatpush1.msra.mxu0 %v3239
    %3303 = vmatprep.subr.mxu0 %v3244
    %3304 = vmatpush1.msra.mxu0 %v3243
    %3305 = vmatprep.subr.mxu0 %v3248
    %3306 = vmatpush1.msra.mxu0 %v3247
    %3307 = vmatprep.subr.mxu0 %v3252
    %3308 = vmatpush1.msra.mxu0 %v3251
    %3309 = vmatprep.subr.mxu0 %v3256
    %3310 = vmatpush1.msra.mxu0 %v3255
    %3311 = vmatprep.subr.mxu0 %v3260
    %3312 = vmatpush1.msra.mxu0 %v3259
    %3313 = vmatprep.subr.mxu0 %v3264
    %3314 = vmatpush1.msra.mxu0 %v3263
    %3315 = vmatprep.subr.mxu0 %v3268
    %3316 = vmatpush1.msra.mxu0 %v3267
    %3317 = vmatprep.subr.mxu0 %v3272
    %3318 = vmatpush1.msra.mxu0 %v3271
    %3319 = vmatprep.subr.mxu0 %v3276
    %3320 = vmatpush1.msra.mxu0 %v3275
    %3321 = vmatprep.subr.mxu0 %v3280
    %3322 = vmatpush1.msra.mxu0 %v3279
    %3323 = vmatprep.subr.mxu0 %v3284
    %3324 = vmatpush1.msra.mxu0 %v3283
    %3325 = vmatprep.subr.mxu0 %v3288
    %3326 = vmatpush1.msra.mxu0 %v3287
    %3327 = vmatprep.subr.mxu0 %v3292
    %3328 = vmatpush1.msra.mxu0 %v3291
    %3329 = vmatprep.subr.mxu0 %v3296
    %3330 = vmatpush1.msra.mxu0 %v3295
    %3331 = vmatprep.subr.mxu0 0.0
    %3332 = vmatpush1.msra.mxu0 0.0
    %3333 = vmatprep.subr.mxu0 0.0
    %3334 = vmatpush1.msra.mxu0 0.0
    %3335 = vmatprep.subr.mxu0 0.0
    %3336 = vmatpush1.msra.mxu0 0.0
    %3337 = vmatprep.subr.mxu0 0.0
    %3338 = vmatpush1.msra.mxu0 0.0
    %3339 = vmatprep.subr.mxu0 0.0
    %3340 = vmatpush1.msra.mxu0 0.0
    %3341 = vmatprep.subr.mxu0 0.0
    %3342 = vmatpush1.msra.mxu0 0.0
    %3343 = vmatprep.subr.mxu0 0.0
    %3344 = vmatpush1.msra.mxu0 0.0
    %3345 = vmatprep.subr.mxu0 0.0
    %3346 = vmatpush1.msra.mxu0 0.0
    %3347 = vmatprep.subr.mxu0 0.0
    %3348 = vmatpush1.msra.mxu0 0.0
    %3349 = vmatprep.subr.mxu0 0.0
    %3350 = vmatpush1.msra.mxu0 0.0
    %3351 = vmatprep.subr.mxu0 0.0
    %3352 = vmatpush1.msra.mxu0 0.0
    %3353 = vmatprep.subr.mxu0 0.0
    %3354 = vmatpush1.msra.mxu0 0.0
    %3355 = vmatprep.subr.mxu0 0.0
    %3356 = vmatpush1.msra.mxu0 0.0
    %3357 = vmatprep.subr.mxu0 0.0
    %3358 = vmatpush1.msra.mxu0 0.0
    %3359 = vmatprep.subr.mxu0 0.0
    %3360 = vmatpush1.msra.mxu0 0.0
    %3361 = vmatprep.subr.mxu0 0.0
    %3362 = vmatpush1.msra.mxu0 0.0
    %3363 = vmatprep.mubr.f32.mxu0 0.0
    %3364 = vmatmul.mubr.f32.gmra.mrb[0].mxu0 %v3234
    %v3365 = vpop.f32.mrb[0].mxu0
    %v3366 = vadd.f32 0.0, %v3365
    %v3367 = vpop.f32.mrb[0].mxu0
    %v3368 = vadd.f32 0.0, %v3367
    %3369 = vdwg.mxu0
    %3370 = vmatprep.subr.mxu0 %v3238
    %3371 = vmatpush1.msra.mxu0 %v3237
    %3372 = vmatprep.subr.mxu0 %v3242
    %3373 = vmatpush1.msra.mxu0 %v3241
    %3374 = vmatprep.subr.mxu0 %v3246
    %3375 = vmatpush1.msra.mxu0 %v3245
    %3376 = vmatprep.subr.mxu0 %v3250
    %3377 = vmatpush1.msra.mxu0 %v3249
    %3378 = vmatprep.subr.mxu0 %v3254
    %3379 = vmatpush1.msra.mxu0 %v3253
    %3380 = vmatprep.subr.mxu0 %v3258
    %3381 = vmatpush1.msra.mxu0 %v3257
    %3382 = vmatprep.subr.mxu0 %v3262
    %3383 = vmatpush1.msra.mxu0 %v3261
    %3384 = vmatprep.subr.mxu0 %v3266
    %3385 = vmatpush1.msra.mxu0 %v3265
    %3386 = vmatprep.subr.mxu0 %v3270
    %3387 = vmatpush1.msra.mxu0 %v3269
    %3388 = vmatprep.subr.mxu0 %v3274
    %3389 = vmatpush1.msra.mxu0 %v3273
    %3390 = vmatprep.subr.mxu0 %v3278
    %3391 = vmatpush1.msra.mxu0 %v3277
    %3392 = vmatprep.subr.mxu0 %v3282
    %3393 = vmatpush1.msra.mxu0 %v3281
    %3394 = vmatprep.subr.mxu0 %v3286
    %3395 = vmatpush1.msra.mxu0 %v3285
    %3396 = vmatprep.subr.mxu0 %v3290
    %3397 = vmatpush1.msra.mxu0 %v3289
    %3398 = vmatprep.subr.mxu0 %v3294
    %3399 = vmatpush1.msra.mxu0 %v3293
    %3400 = vmatprep.subr.mxu0 %v3298
    %3401 = vmatpush1.msra.mxu0 %v3297
    %3402 = vmatprep.subr.mxu0 0.0
    %3403 = vmatpush1.msra.mxu0 0.0
    %3404 = vmatprep.subr.mxu0 0.0
    %3405 = vmatpush1.msra.mxu0 0.0
    %3406 = vmatprep.subr.mxu0 0.0
    %3407 = vmatpush1.msra.mxu0 0.0
    %3408 = vmatprep.subr.mxu0 0.0
    %3409 = vmatpush1.msra.mxu0 0.0
    %3410 = vmatprep.subr.mxu0 0.0
    %3411 = vmatpush1.msra.mxu0 0.0
    %3412 = vmatprep.subr.mxu0 0.0
    %3413 = vmatpush1.msra.mxu0 0.0
    %3414 = vmatprep.subr.mxu0 0.0
    %3415 = vmatpush1.msra.mxu0 0.0
    %3416 = vmatprep.subr.mxu0 0.0
    %3417 = vmatpush1.msra.mxu0 0.0
    %3418 = vmatprep.subr.mxu0 0.0
    %3419 = vmatpush1.msra.mxu0 0.0
    %3420 = vmatprep.subr.mxu0 0.0
    %3421 = vmatpush1.msra.mxu0 0.0
    %3422 = vmatprep.subr.mxu0 0.0
    %3423 = vmatpush1.msra.mxu0 0.0
    %3424 = vmatprep.subr.mxu0 0.0
    %3425 = vmatpush1.msra.mxu0 0.0
    %3426 = vmatprep.subr.mxu0 0.0
    %3427 = vmatpush1.msra.mxu0 0.0
    %3428 = vmatprep.subr.mxu0 0.0
    %3429 = vmatpush1.msra.mxu0 0.0
    %3430 = vmatprep.subr.mxu0 0.0
    %3431 = vmatpush1.msra.mxu0 0.0
    %3432 = vmatprep.subr.mxu0 0.0
    %3433 = vmatpush1.msra.mxu0 0.0
    %3434 = vmatprep.mubr.f32.mxu0 0.0
    %3435 = vmatmul.mubr.f32.gmra.mrb[0].mxu0 %v3234
    %v3436 = vpop.f32.mrb[0].mxu0
    %v3437 = vadd.f32 0.0, %v3436
    %v3438 = vpop.f32.mrb[0].mxu0
    %v3439 = vadd.f32 0.0, %v3438
    %3440 = vdwg.mxu0
    %v3441 = vadd.f32 %v3230, %v3366
    %v3442 = vadd.f32 %v3231, %v3368
    %v3443 = vadd.f32 %v3232, %v3437
    %v3444 = vadd.f32 %v3233, %v3439
    %v3445 = vxor.u32 %v3441, 2147483648
    %v3446 = vmul.f32 %v3445, 1.442695
    %v3447 = vpow.pop %v3446
    %v3448 = vadd.f32 %v3447, 1.0
    %v3449 = vrcp.pop %v3448
    %v3450 = vmul.f32 1.0, %v3449
    %v3451 = vxor.u32 %v3442, 2147483648
    %v3452 = vmul.f32 %v3451, 1.442695
    %v3453 = vpow.pop %v3452
    %v3454 = vadd.f32 %v3453, 1.0
    %v3455 = vrcp.pop %v3454
    %v3456 = vmul.f32 1.0, %v3455
    %v3457 = vtanh.pop %v3443
    %v3458 = vxor.u32 %v3444, 2147483648
    %v3459 = vmul.f32 %v3458, 1.442695
    %v3460 = vpow.pop %v3459
    %v3461 = vadd.f32 %v3460, 1.0
    %v3462 = vrcp.pop %v3461
    %v3463 = vmul.f32 1.0, %v3462
    %v3464 = vld [vmem:[#allocation4] sm:$0x3]
    %v3465 = vmul.f32 %v3456, %v3464
    %v3466 = vmul.f32 %v3450, %v3457
    %v3467 = vadd.f32 %v3465, %v3466
    %v3468 = vtanh.pop %v3467
    %v3469 = vmul.f32 %v3463, %v3468
    %3470 = vst [vmem:[#allocation4] sm:$0x3] %v3467
    %3471 = vst [vmem:[#allocation3] sm:$0x3] %v3469
    %3472 = vst.msk [vmem:[%s2600] sm:$0x3] %vm2013, %v3469
    %3473 = vst.msk [vmem:[%s2598] sm:$0x3] %vm2016, %v3469
    %v3474 = vld [vmem:[%s1463] sm:$0xff]
    %v3475 = vld [vmem:[%s458] sm:$0xff]
    %v3477 = vcombine.high %v3474, %v3474
    %v3479 = vunpack.c.l.s4 1983009808
    %v3480 = vunpack.c.0.s8 %v3479
    %v3481 = vlaneseq
    %v3482 = vshrl.u32 %v3481, 7
    %v3483 = vsub.s32 %v3480, %v3482
    %v3484 = vrot.slane %v3474, %v3483
    %v3486 = vunpack.c.l.s4 1983009808
    %v3487 = vunpack.c.0.s8 %v3486
    %v3488 = vlaneseq
    %v3489 = vshrl.u32 %v3488, 7
    %v3490 = vsub.s32 %v3487, %v3489
    %v3491 = vrot.slane %v3477, %v3490
    %v3492 = vcombine.high %v3484, %v3484
    %v3493 = vcombine.high %v3491, %v3491
    %v3499 = vcombine.high %v3475, %v3475
    %v3501 = vunpack.c.l.s4 1983009808
    %v3502 = vunpack.c.0.s8 %v3501
    %v3503 = vlaneseq
    %v3504 = vshrl.u32 %v3503, 7
    %v3505 = vsub.s32 %v3502, %v3504
    %v3506 = vrot.slane %v3475, %v3505
    %v3508 = vunpack.c.l.s4 1983009808
    %v3509 = vunpack.c.0.s8 %v3508
    %v3510 = vlaneseq
    %v3511 = vshrl.u32 %v3510, 7
    %v3512 = vsub.s32 %v3509, %v3511
    %v3513 = vrot.slane %v3499, %v3512
    %v3514 = vcombine.high %v3506, %v3506
    %v3515 = vcombine.high %v3513, %v3513
    %v3520 = vsel %vm1721, %v3484, %v3506
    %v3521 = vsel %vm1722, %v3492, %v3514
    %v3522 = vsel %vm1723, %v3491, %v3513
    %v3523 = vsel %vm1724, %v3493, %v3515
    %v3524 = vld [vmem:[#allocation3] sm:$0x3]
    %v3525 = vld [vmem:[#allocation10] sm:$0xff]
    %v3526 = vld [vmem:[#allocation10 + $0x8] sm:$0xff]
    %v3527 = vld [vmem:[#allocation10 + $0x10] sm:$0xff]
    %v3528 = vld [vmem:[#allocation10 + $0x18] sm:$0xff]
    %v3529 = vld [vmem:[#allocation10 + $0x20] sm:$0xff]
    %v3530 = vld [vmem:[#allocation10 + $0x28] sm:$0xff]
    %v3531 = vld [vmem:[#allocation10 + $0x30] sm:$0xff]
    %v3532 = vld [vmem:[#allocation10 + $0x38] sm:$0xff]
    %v3533 = vld [vmem:[#allocation10 + $0x40] sm:$0xff]
    %v3534 = vld [vmem:[#allocation10 + $0x48] sm:$0xff]
    %v3535 = vld [vmem:[#allocation10 + $0x50] sm:$0xff]
    %v3536 = vld [vmem:[#allocation10 + $0x58] sm:$0xff]
    %v3537 = vld [vmem:[#allocation10 + $0x60] sm:$0xff]
    %v3538 = vld [vmem:[#allocation10 + $0x68] sm:$0xff]
    %v3539 = vld [vmem:[#allocation10 + $0x70] sm:$0xff]
    %v3540 = vld [vmem:[#allocation10 + $0x78] sm:$0xff]
    %v3541 = vld [vmem:[#allocation10 + $0x80] sm:$0xff]
    %v3542 = vld [vmem:[#allocation10 + $0x88] sm:$0xff]
    %v3543 = vld [vmem:[#allocation10 + $0x90] sm:$0xff]
    %v3544 = vld [vmem:[#allocation10 + $0x98] sm:$0xff]
    %v3545 = vld [vmem:[#allocation10 + $0xa0] sm:$0xff]
    %v3546 = vld [vmem:[#allocation10 + $0xa8] sm:$0xff]
    %v3547 = vld [vmem:[#allocation10 + $0xb0] sm:$0xff]
    %v3548 = vld [vmem:[#allocation10 + $0xb8] sm:$0xff]
    %v3549 = vld [vmem:[#allocation10 + $0xc0] sm:$0xff]
    %v3550 = vld [vmem:[#allocation10 + $0xc8] sm:$0xff]
    %v3551 = vld [vmem:[#allocation10 + $0xd0] sm:$0xff]
    %v3552 = vld [vmem:[#allocation10 + $0xd8] sm:$0xff]
    %v3553 = vld [vmem:[#allocation10 + $0xe0] sm:$0xff]
    %v3554 = vld [vmem:[#allocation10 + $0xe8] sm:$0xff]
    %v3555 = vld [vmem:[#allocation10 + $0xf0] sm:$0xff]
    %v3556 = vld [vmem:[#allocation10 + $0xf8] sm:$0xff]
    %v3557 = vld [vmem:[#allocation10 + $0x100] sm:$0xff]
    %v3558 = vld [vmem:[#allocation10 + $0x108] sm:$0xff]
    %v3559 = vld [vmem:[#allocation10 + $0x110] sm:$0xff]
    %v3560 = vld [vmem:[#allocation10 + $0x118] sm:$0xff]
    %v3561 = vld [vmem:[#allocation10 + $0x120] sm:$0xff]
    %v3562 = vld [vmem:[#allocation10 + $0x128] sm:$0xff]
    %v3563 = vld [vmem:[#allocation10 + $0x130] sm:$0xff]
    %v3564 = vld [vmem:[#allocation10 + $0x138] sm:$0xff]
    %v3565 = vld [vmem:[#allocation10 + $0x140] sm:$0xff]
    %v3566 = vld [vmem:[#allocation10 + $0x148] sm:$0xff]
    %v3567 = vld [vmem:[#allocation10 + $0x150] sm:$0xff]
    %v3568 = vld [vmem:[#allocation10 + $0x158] sm:$0xff]
    %v3569 = vld [vmem:[#allocation10 + $0x160] sm:$0xff]
    %v3570 = vld [vmem:[#allocation10 + $0x168] sm:$0xff]
    %v3571 = vld [vmem:[#allocation10 + $0x170] sm:$0xff]
    %v3572 = vld [vmem:[#allocation10 + $0x178] sm:$0xff]
    %v3573 = vld [vmem:[#allocation10 + $0x180] sm:$0xff]
    %v3574 = vld [vmem:[#allocation10 + $0x188] sm:$0xff]
    %v3575 = vld [vmem:[#allocation10 + $0x190] sm:$0xff]
    %v3576 = vld [vmem:[#allocation10 + $0x198] sm:$0xff]
    %v3577 = vld [vmem:[#allocation10 + $0x1a0] sm:$0xff]
    %v3578 = vld [vmem:[#allocation10 + $0x1a8] sm:$0xff]
    %v3579 = vld [vmem:[#allocation10 + $0x1b0] sm:$0xff]
    %v3580 = vld [vmem:[#allocation10 + $0x1b8] sm:$0xff]
    %v3581 = vld [vmem:[#allocation10 + $0x1c0] sm:$0xff]
    %v3582 = vld [vmem:[#allocation10 + $0x1c8] sm:$0xff]
    %v3583 = vld [vmem:[#allocation10 + $0x1d0] sm:$0xff]
    %v3584 = vld [vmem:[#allocation10 + $0x1d8] sm:$0xff]
    %v3585 = vld [vmem:[#allocation10 + $0x1e0] sm:$0xff]
    %v3586 = vld [vmem:[#allocation10 + $0x1e8] sm:$0xff]
    %v3587 = vld [vmem:[#allocation10 + $0x1f0] sm:$0xff]
    %v3588 = vld [vmem:[#allocation10 + $0x1f8] sm:$0xff]
    %3589 = vmatprep.subr.mxu0 %v3526
    %3590 = vmatpush1.msra.mxu0 %v3525
    %3591 = vmatprep.subr.mxu0 %v3530
    %3592 = vmatpush1.msra.mxu0 %v3529
    %3593 = vmatprep.subr.mxu0 %v3534
    %3594 = vmatpush1.msra.mxu0 %v3533
    %3595 = vmatprep.subr.mxu0 %v3538
    %3596 = vmatpush1.msra.mxu0 %v3537
    %3597 = vmatprep.subr.mxu0 %v3542
    %3598 = vmatpush1.msra.mxu0 %v3541
    %3599 = vmatprep.subr.mxu0 %v3546
    %3600 = vmatpush1.msra.mxu0 %v3545
    %3601 = vmatprep.subr.mxu0 %v3550
    %3602 = vmatpush1.msra.mxu0 %v3549
    %3603 = vmatprep.subr.mxu0 %v3554
    %3604 = vmatpush1.msra.mxu0 %v3553
    %3605 = vmatprep.subr.mxu0 %v3558
    %3606 = vmatpush1.msra.mxu0 %v3557
    %3607 = vmatprep.subr.mxu0 %v3562
    %3608 = vmatpush1.msra.mxu0 %v3561
    %3609 = vmatprep.subr.mxu0 %v3566
    %3610 = vmatpush1.msra.mxu0 %v3565
    %3611 = vmatprep.subr.mxu0 %v3570
    %3612 = vmatpush1.msra.mxu0 %v3569
    %3613 = vmatprep.subr.mxu0 %v3574
    %3614 = vmatpush1.msra.mxu0 %v3573
    %3615 = vmatprep.subr.mxu0 %v3578
    %3616 = vmatpush1.msra.mxu0 %v3577
    %3617 = vmatprep.subr.mxu0 %v3582
    %3618 = vmatpush1.msra.mxu0 %v3581
    %3619 = vmatprep.subr.mxu0 %v3586
    %3620 = vmatpush1.msra.mxu0 %v3585
    %3621 = vmatprep.subr.mxu0 0.0
    %3622 = vmatpush1.msra.mxu0 0.0
    %3623 = vmatprep.subr.mxu0 0.0
    %3624 = vmatpush1.msra.mxu0 0.0
    %3625 = vmatprep.subr.mxu0 0.0
    %3626 = vmatpush1.msra.mxu0 0.0
    %3627 = vmatprep.subr.mxu0 0.0
    %3628 = vmatpush1.msra.mxu0 0.0
    %3629 = vmatprep.subr.mxu0 0.0
    %3630 = vmatpush1.msra.mxu0 0.0
    %3631 = vmatprep.subr.mxu0 0.0
    %3632 = vmatpush1.msra.mxu0 0.0
    %3633 = vmatprep.subr.mxu0 0.0
    %3634 = vmatpush1.msra.mxu0 0.0
    %3635 = vmatprep.subr.mxu0 0.0
    %3636 = vmatpush1.msra.mxu0 0.0
    %3637 = vmatprep.subr.mxu0 0.0
    %3638 = vmatpush1.msra.mxu0 0.0
    %3639 = vmatprep.subr.mxu0 0.0
    %3640 = vmatpush1.msra.mxu0 0.0
    %3641 = vmatprep.subr.mxu0 0.0
    %3642 = vmatpush1.msra.mxu0 0.0
    %3643 = vmatprep.subr.mxu0 0.0
    %3644 = vmatpush1.msra.mxu0 0.0
    %3645 = vmatprep.subr.mxu0 0.0
    %3646 = vmatpush1.msra.mxu0 0.0
    %3647 = vmatprep.subr.mxu0 0.0
    %3648 = vmatpush1.msra.mxu0 0.0
    %3649 = vmatprep.subr.mxu0 0.0
    %3650 = vmatpush1.msra.mxu0 0.0
    %3651 = vmatprep.subr.mxu0 0.0
    %3652 = vmatpush1.msra.mxu0 0.0
    %3653 = vmatprep.mubr.f32.mxu0 0.0
    %3654 = vmatmul.mubr.f32.gmra.mrb[0].mxu0 %v3524
    %v3655 = vpop.f32.mrb[0].mxu0
    %v3656 = vadd.f32 0.0, %v3655
    %v3657 = vpop.f32.mrb[0].mxu0
    %v3658 = vadd.f32 0.0, %v3657
    %3659 = vdwg.mxu0
    %3660 = vmatprep.subr.mxu0 %v3528
    %3661 = vmatpush1.msra.mxu0 %v3527
    %3662 = vmatprep.subr.mxu0 %v3532
    %3663 = vmatpush1.msra.mxu0 %v3531
    %3664 = vmatprep.subr.mxu0 %v3536
    %3665 = vmatpush1.msra.mxu0 %v3535
    %3666 = vmatprep.subr.mxu0 %v3540
    %3667 = vmatpush1.msra.mxu0 %v3539
    %3668 = vmatprep.subr.mxu0 %v3544
    %3669 = vmatpush1.msra.mxu0 %v3543
    %3670 = vmatprep.subr.mxu0 %v3548
    %3671 = vmatpush1.msra.mxu0 %v3547
    %3672 = vmatprep.subr.mxu0 %v3552
    %3673 = vmatpush1.msra.mxu0 %v3551
    %3674 = vmatprep.subr.mxu0 %v3556
    %3675 = vmatpush1.msra.mxu0 %v3555
    %3676 = vmatprep.subr.mxu0 %v3560
    %3677 = vmatpush1.msra.mxu0 %v3559
    %3678 = vmatprep.subr.mxu0 %v3564
    %3679 = vmatpush1.msra.mxu0 %v3563
    %3680 = vmatprep.subr.mxu0 %v3568
    %3681 = vmatpush1.msra.mxu0 %v3567
    %3682 = vmatprep.subr.mxu0 %v3572
    %3683 = vmatpush1.msra.mxu0 %v3571
    %3684 = vmatprep.subr.mxu0 %v3576
    %3685 = vmatpush1.msra.mxu0 %v3575
    %3686 = vmatprep.subr.mxu0 %v3580
    %3687 = vmatpush1.msra.mxu0 %v3579
    %3688 = vmatprep.subr.mxu0 %v3584
    %3689 = vmatpush1.msra.mxu0 %v3583
    %3690 = vmatprep.subr.mxu0 %v3588
    %3691 = vmatpush1.msra.mxu0 %v3587
    %3692 = vmatprep.subr.mxu0 0.0
    %3693 = vmatpush1.msra.mxu0 0.0
    %3694 = vmatprep.subr.mxu0 0.0
    %3695 = vmatpush1.msra.mxu0 0.0
    %3696 = vmatprep.subr.mxu0 0.0
    %3697 = vmatpush1.msra.mxu0 0.0
    %3698 = vmatprep.subr.mxu0 0.0
    %3699 = vmatpush1.msra.mxu0 0.0
    %3700 = vmatprep.subr.mxu0 0.0
    %3701 = vmatpush1.msra.mxu0 0.0
    %3702 = vmatprep.subr.mxu0 0.0
    %3703 = vmatpush1.msra.mxu0 0.0
    %3704 = vmatprep.subr.mxu0 0.0
    %3705 = vmatpush1.msra.mxu0 0.0
    %3706 = vmatprep.subr.mxu0 0.0
    %3707 = vmatpush1.msra.mxu0 0.0
    %3708 = vmatprep.subr.mxu0 0.0
    %3709 = vmatpush1.msra.mxu0 0.0
    %3710 = vmatprep.subr.mxu0 0.0
    %3711 = vmatpush1.msra.mxu0 0.0
    %3712 = vmatprep.subr.mxu0 0.0
    %3713 = vmatpush1.msra.mxu0 0.0
    %3714 = vmatprep.subr.mxu0 0.0
    %3715 = vmatpush1.msra.mxu0 0.0
    %3716 = vmatprep.subr.mxu0 0.0
    %3717 = vmatpush1.msra.mxu0 0.0
    %3718 = vmatprep.subr.mxu0 0.0
    %3719 = vmatpush1.msra.mxu0 0.0
    %3720 = vmatprep.subr.mxu0 0.0
    %3721 = vmatpush1.msra.mxu0 0.0
    %3722 = vmatprep.subr.mxu0 0.0
    %3723 = vmatpush1.msra.mxu0 0.0
    %3724 = vmatprep.mubr.f32.mxu0 0.0
    %3725 = vmatmul.mubr.f32.gmra.mrb[0].mxu0 %v3524
    %v3726 = vpop.f32.mrb[0].mxu0
    %v3727 = vadd.f32 0.0, %v3726
    %v3728 = vpop.f32.mrb[0].mxu0
    %v3729 = vadd.f32 0.0, %v3728
    %3730 = vdwg.mxu0
    %v3731 = vadd.f32 %v3520, %v3656
    %v3732 = vadd.f32 %v3521, %v3658
    %v3733 = vadd.f32 %v3522, %v3727
    %v3734 = vadd.f32 %v3523, %v3729
    %v3735 = vxor.u32 %v3731, 2147483648
    %v3736 = vmul.f32 %v3735, 1.442695
    %v3737 = vpow.pop %v3736
    %v3738 = vadd.f32 %v3737, 1.0
    %v3739 = vrcp.pop %v3738
    %v3740 = vmul.f32 1.0, %v3739
    %v3741 = vxor.u32 %v3732, 2147483648
    %v3742 = vmul.f32 %v3741, 1.442695
    %v3743 = vpow.pop %v3742
    %v3744 = vadd.f32 %v3743, 1.0
    %v3745 = vrcp.pop %v3744
    %v3746 = vmul.f32 1.0, %v3745
    %v3747 = vtanh.pop %v3733
    %v3748 = vxor.u32 %v3734, 2147483648
    %v3749 = vmul.f32 %v3748, 1.442695
    %v3750 = vpow.pop %v3749
    %v3751 = vadd.f32 %v3750, 1.0
    %v3752 = vrcp.pop %v3751
    %v3753 = vmul.f32 1.0, %v3752
    %v3754 = vld [vmem:[#allocation4] sm:$0x3]
    %v3755 = vmul.f32 %v3746, %v3754
    %v3756 = vmul.f32 %v3740, %v3747
    %v3757 = vadd.f32 %v3755, %v3756
    %v3758 = vtanh.pop %v3757
    %v3759 = vmul.f32 %v3753, %v3758
    %3760 = vst [vmem:[#allocation4] sm:$0x3] %v3757
    %3761 = vst [vmem:[#allocation3] sm:$0x3] %v3759
    %3762 = vst.msk [vmem:[%s2308] sm:$0x3] %vm2013, %v3759
    %3763 = vst.msk [vmem:[%s2306] sm:$0x3] %vm2016, %v3759
    %v3764 = vld [vmem:[%s1664] sm:$0xff]
    %v3765 = vld [vmem:[#allocation2] sm:$0xff]
    %v3767 = vcombine.high %v3764, %v3764
    %v3769 = vunpack.c.l.s4 1983009808
    %v3770 = vunpack.c.0.s8 %v3769
    %v3771 = vlaneseq
    %v3772 = vshrl.u32 %v3771, 7
    %v3773 = vsub.s32 %v3770, %v3772
    %v3774 = vrot.slane %v3764, %v3773
    %v3776 = vunpack.c.l.s4 1983009808
    %v3777 = vunpack.c.0.s8 %v3776
    %v3778 = vlaneseq
    %v3779 = vshrl.u32 %v3778, 7
    %v3780 = vsub.s32 %v3777, %v3779
    %v3781 = vrot.slane %v3767, %v3780
    %v3782 = vcombine.high %v3774, %v3774
    %v3783 = vcombine.high %v3781, %v3781
    %v3789 = vcombine.high %v3765, %v3765
    %v3791 = vunpack.c.l.s4 1983009808
    %v3792 = vunpack.c.0.s8 %v3791
    %v3793 = vlaneseq
    %v3794 = vshrl.u32 %v3793, 7
    %v3795 = vsub.s32 %v3792, %v3794
    %v3796 = vrot.slane %v3765, %v3795
    %v3798 = vunpack.c.l.s4 1983009808
    %v3799 = vunpack.c.0.s8 %v3798
    %v3800 = vlaneseq
    %v3801 = vshrl.u32 %v3800, 7
    %v3802 = vsub.s32 %v3799, %v3801
    %v3803 = vrot.slane %v3789, %v3802
    %v3804 = vcombine.high %v3796, %v3796
    %v3805 = vcombine.high %v3803, %v3803
    %v3810 = vsel %vm1721, %v3774, %v3796
    %v3811 = vsel %vm1722, %v3782, %v3804
    %v3812 = vsel %vm1723, %v3781, %v3803
    %v3813 = vsel %vm1724, %v3783, %v3805
    %v3814 = vld [vmem:[#allocation3] sm:$0x3]
    %v3815 = vld [vmem:[#allocation10] sm:$0xff]
    %v3816 = vld [vmem:[#allocation10 + $0x8] sm:$0xff]
    %v3817 = vld [vmem:[#allocation10 + $0x10] sm:$0xff]
    %v3818 = vld [vmem:[#allocation10 + $0x18] sm:$0xff]
    %v3819 = vld [vmem:[#allocation10 + $0x20] sm:$0xff]
    %v3820 = vld [vmem:[#allocation10 + $0x28] sm:$0xff]
    %v3821 = vld [vmem:[#allocation10 + $0x30] sm:$0xff]
    %v3822 = vld [vmem:[#allocation10 + $0x38] sm:$0xff]
    %v3823 = vld [vmem:[#allocation10 + $0x40] sm:$0xff]
    %v3824 = vld [vmem:[#allocation10 + $0x48] sm:$0xff]
    %v3825 = vld [vmem:[#allocation10 + $0x50] sm:$0xff]
    %v3826 = vld [vmem:[#allocation10 + $0x58] sm:$0xff]
    %v3827 = vld [vmem:[#allocation10 + $0x60] sm:$0xff]
    %v3828 = vld [vmem:[#allocation10 + $0x68] sm:$0xff]
    %v3829 = vld [vmem:[#allocation10 + $0x70] sm:$0xff]
    %v3830 = vld [vmem:[#allocation10 + $0x78] sm:$0xff]
    %v3831 = vld [vmem:[#allocation10 + $0x80] sm:$0xff]
    %v3832 = vld [vmem:[#allocation10 + $0x88] sm:$0xff]
    %v3833 = vld [vmem:[#allocation10 + $0x90] sm:$0xff]
    %v3834 = vld [vmem:[#allocation10 + $0x98] sm:$0xff]
    %v3835 = vld [vmem:[#allocation10 + $0xa0] sm:$0xff]
    %v3836 = vld [vmem:[#allocation10 + $0xa8] sm:$0xff]
    %v3837 = vld [vmem:[#allocation10 + $0xb0] sm:$0xff]
    %v3838 = vld [vmem:[#allocation10 + $0xb8] sm:$0xff]
    %v3839 = vld [vmem:[#allocation10 + $0xc0] sm:$0xff]
    %v3840 = vld [vmem:[#allocation10 + $0xc8] sm:$0xff]
    %v3841 = vld [vmem:[#allocation10 + $0xd0] sm:$0xff]
    %v3842 = vld [vmem:[#allocation10 + $0xd8] sm:$0xff]
    %v3843 = vld [vmem:[#allocation10 + $0xe0] sm:$0xff]
    %v3844 = vld [vmem:[#allocation10 + $0xe8] sm:$0xff]
    %v3845 = vld [vmem:[#allocation10 + $0xf0] sm:$0xff]
    %v3846 = vld [vmem:[#allocation10 + $0xf8] sm:$0xff]
    %v3847 = vld [vmem:[#allocation10 + $0x100] sm:$0xff]
    %v3848 = vld [vmem:[#allocation10 + $0x108] sm:$0xff]
    %v3849 = vld [vmem:[#allocation10 + $0x110] sm:$0xff]
    %v3850 = vld [vmem:[#allocation10 + $0x118] sm:$0xff]
    %v3851 = vld [vmem:[#allocation10 + $0x120] sm:$0xff]
    %v3852 = vld [vmem:[#allocation10 + $0x128] sm:$0xff]
    %v3853 = vld [vmem:[#allocation10 + $0x130] sm:$0xff]
    %v3854 = vld [vmem:[#allocation10 + $0x138] sm:$0xff]
    %v3855 = vld [vmem:[#allocation10 + $0x140] sm:$0xff]
    %v3856 = vld [vmem:[#allocation10 + $0x148] sm:$0xff]
    %v3857 = vld [vmem:[#allocation10 + $0x150] sm:$0xff]
    %v3858 = vld [vmem:[#allocation10 + $0x158] sm:$0xff]
    %v3859 = vld [vmem:[#allocation10 + $0x160] sm:$0xff]
    %v3860 = vld [vmem:[#allocation10 + $0x168] sm:$0xff]
    %v3861 = vld [vmem:[#allocation10 + $0x170] sm:$0xff]
    %v3862 = vld [vmem:[#allocation10 + $0x178] sm:$0xff]
    %v3863 = vld [vmem:[#allocation10 + $0x180] sm:$0xff]
    %v3864 = vld [vmem:[#allocation10 + $0x188] sm:$0xff]
    %v3865 = vld [vmem:[#allocation10 + $0x190] sm:$0xff]
    %v3866 = vld [vmem:[#allocation10 + $0x198] sm:$0xff]
    %v3867 = vld [vmem:[#allocation10 + $0x1a0] sm:$0xff]
    %v3868 = vld [vmem:[#allocation10 + $0x1a8] sm:$0xff]
    %v3869 = vld [vmem:[#allocation10 + $0x1b0] sm:$0xff]
    %v3870 = vld [vmem:[#allocation10 + $0x1b8] sm:$0xff]
    %v3871 = vld [vmem:[#allocation10 + $0x1c0] sm:$0xff]
    %v3872 = vld [vmem:[#allocation10 + $0x1c8] sm:$0xff]
    %v3873 = vld [vmem:[#allocation10 + $0x1d0] sm:$0xff]
    %v3874 = vld [vmem:[#allocation10 + $0x1d8] sm:$0xff]
    %v3875 = vld [vmem:[#allocation10 + $0x1e0] sm:$0xff]
    %v3876 = vld [vmem:[#allocation10 + $0x1e8] sm:$0xff]
    %v3877 = vld [vmem:[#allocation10 + $0x1f0] sm:$0xff]
    %v3878 = vld [vmem:[#allocation10 + $0x1f8] sm:$0xff]
    %3879 = vmatprep.subr.mxu0 %v3816
    %3880 = vmatpush1.msra.mxu0 %v3815
    %3881 = vmatprep.subr.mxu0 %v3820
    %3882 = vmatpush1.msra.mxu0 %v3819
    %3883 = vmatprep.subr.mxu0 %v3824
    %3884 = vmatpush1.msra.mxu0 %v3823
    %3885 = vmatprep.subr.mxu0 %v3828
    %3886 = vmatpush1.msra.mxu0 %v3827
    %3887 = vmatprep.subr.mxu0 %v3832
    %3888 = vmatpush1.msra.mxu0 %v3831
    %3889 = vmatprep.subr.mxu0 %v3836
    %3890 = vmatpush1.msra.mxu0 %v3835
    %3891 = vmatprep.subr.mxu0 %v3840
    %3892 = vmatpush1.msra.mxu0 %v3839
    %3893 = vmatprep.subr.mxu0 %v3844
    %3894 = vmatpush1.msra.mxu0 %v3843
    %3895 = vmatprep.subr.mxu0 %v3848
    %3896 = vmatpush1.msra.mxu0 %v3847
    %3897 = vmatprep.subr.mxu0 %v3852
    %3898 = vmatpush1.msra.mxu0 %v3851
    %3899 = vmatprep.subr.mxu0 %v3856
    %3900 = vmatpush1.msra.mxu0 %v3855
    %3901 = vmatprep.subr.mxu0 %v3860
    %3902 = vmatpush1.msra.mxu0 %v3859
    %3903 = vmatprep.subr.mxu0 %v3864
    %3904 = vmatpush1.msra.mxu0 %v3863
    %3905 = vmatprep.subr.mxu0 %v3868
    %3906 = vmatpush1.msra.mxu0 %v3867
    %3907 = vmatprep.subr.mxu0 %v3872
    %3908 = vmatpush1.msra.mxu0 %v3871
    %3909 = vmatprep.subr.mxu0 %v3876
    %3910 = vmatpush1.msra.mxu0 %v3875
    %3911 = vmatprep.subr.mxu0 0.0
    %3912 = vmatpush1.msra.mxu0 0.0
    %3913 = vmatprep.subr.mxu0 0.0
    %3914 = vmatpush1.msra.mxu0 0.0
    %3915 = vmatprep.subr.mxu0 0.0
    %3916 = vmatpush1.msra.mxu0 0.0
    %3917 = vmatprep.subr.mxu0 0.0
    %3918 = vmatpush1.msra.mxu0 0.0
    %3919 = vmatprep.subr.mxu0 0.0
    %3920 = vmatpush1.msra.mxu0 0.0
    %3921 = vmatprep.subr.mxu0 0.0
    %3922 = vmatpush1.msra.mxu0 0.0
    %3923 = vmatprep.subr.mxu0 0.0
    %3924 = vmatpush1.msra.mxu0 0.0
    %3925 = vmatprep.subr.mxu0 0.0
    %3926 = vmatpush1.msra.mxu0 0.0
    %3927 = vmatprep.subr.mxu0 0.0
    %3928 = vmatpush1.msra.mxu0 0.0
    %3929 = vmatprep.subr.mxu0 0.0
    %3930 = vmatpush1.msra.mxu0 0.0
    %3931 = vmatprep.subr.mxu0 0.0
    %3932 = vmatpush1.msra.mxu0 0.0
    %3933 = vmatprep.subr.mxu0 0.0
    %3934 = vmatpush1.msra.mxu0 0.0
    %3935 = vmatprep.subr.mxu0 0.0
    %3936 = vmatpush1.msra.mxu0 0.0
    %3937 = vmatprep.subr.mxu0 0.0
    %3938 = vmatpush1.msra.mxu0 0.0
    %3939 = vmatprep.subr.mxu0 0.0
    %3940 = vmatpush1.msra.mxu0 0.0
    %3941 = vmatprep.subr.mxu0 0.0
    %3942 = vmatpush1.msra.mxu0 0.0
    %3943 = vmatprep.mubr.f32.mxu0 0.0
    %3944 = vmatmul.mubr.f32.gmra.mrb[0].mxu0 %v3814
    %v3945 = vpop.f32.mrb[0].mxu0
    %v3946 = vadd.f32 0.0, %v3945
    %v3947 = vpop.f32.mrb[0].mxu0
    %v3948 = vadd.f32 0.0, %v3947
    %3949 = vdwg.mxu0
    %3950 = vmatprep.subr.mxu0 %v3818
    %3951 = vmatpush1.msra.mxu0 %v3817
    %3952 = vmatprep.subr.mxu0 %v3822
    %3953 = vmatpush1.msra.mxu0 %v3821
    %3954 = vmatprep.subr.mxu0 %v3826
    %3955 = vmatpush1.msra.mxu0 %v3825
    %3956 = vmatprep.subr.mxu0 %v3830
    %3957 = vmatpush1.msra.mxu0 %v3829
    %3958 = vmatprep.subr.mxu0 %v3834
    %3959 = vmatpush1.msra.mxu0 %v3833
    %3960 = vmatprep.subr.mxu0 %v3838
    %3961 = vmatpush1.msra.mxu0 %v3837
    %3962 = vmatprep.subr.mxu0 %v3842
    %3963 = vmatpush1.msra.mxu0 %v3841
    %3964 = vmatprep.subr.mxu0 %v3846
    %3965 = vmatpush1.msra.mxu0 %v3845
    %3966 = vmatprep.subr.mxu0 %v3850
    %3967 = vmatpush1.msra.mxu0 %v3849
    %3968 = vmatprep.subr.mxu0 %v3854
    %3969 = vmatpush1.msra.mxu0 %v3853
    %3970 = vmatprep.subr.mxu0 %v3858
    %3971 = vmatpush1.msra.mxu0 %v3857
    %3972 = vmatprep.subr.mxu0 %v3862
    %3973 = vmatpush1.msra.mxu0 %v3861
    %3974 = vmatprep.subr.mxu0 %v3866
    %3975 = vmatpush1.msra.mxu0 %v3865
    %3976 = vmatprep.subr.mxu0 %v3870
    %3977 = vmatpush1.msra.mxu0 %v3869
    %3978 = vmatprep.subr.mxu0 %v3874
    %3979 = vmatpush1.msra.mxu0 %v3873
    %3980 = vmatprep.subr.mxu0 %v3878
    %3981 = vmatpush1.msra.mxu0 %v3877
    %3982 = vmatprep.subr.mxu0 0.0
    %3983 = vmatpush1.msra.mxu0 0.0
    %3984 = vmatprep.subr.mxu0 0.0
    %3985 = vmatpush1.msra.mxu0 0.0
    %3986 = vmatprep.subr.mxu0 0.0
    %3987 = vmatpush1.msra.mxu0 0.0
    %3988 = vmatprep.subr.mxu0 0.0
    %3989 = vmatpush1.msra.mxu0 0.0
    %3990 = vmatprep.subr.mxu0 0.0
    %3991 = vmatpush1.msra.mxu0 0.0
    %3992 = vmatprep.subr.mxu0 0.0
    %3993 = vmatpush1.msra.mxu0 0.0
    %3994 = vmatprep.subr.mxu0 0.0
    %3995 = vmatpush1.msra.mxu0 0.0
    %3996 = vmatprep.subr.mxu0 0.0
    %3997 = vmatpush1.msra.mxu0 0.0
    %3998 = vmatprep.subr.mxu0 0.0
    %3999 = vmatpush1.msra.mxu0 0.0
    %4000 = vmatprep.subr.mxu0 0.0
    %4001 = vmatpush1.msra.mxu0 0.0
    %4002 = vmatprep.subr.mxu0 0.0
    %4003 = vmatpush1.msra.mxu0 0.0
    %4004 = vmatprep.subr.mxu0 0.0
    %4005 = vmatpush1.msra.mxu0 0.0
    %4006 = vmatprep.subr.mxu0 0.0
    %4007 = vmatpush1.msra.mxu0 0.0
    %4008 = vmatprep.subr.mxu0 0.0
    %4009 = vmatpush1.msra.mxu0 0.0
    %4010 = vmatprep.subr.mxu0 0.0
    %4011 = vmatpush1.msra.mxu0 0.0
    %4012 = vmatprep.subr.mxu0 0.0
    %4013 = vmatpush1.msra.mxu0 0.0
    %4014 = vmatprep.mubr.f32.mxu0 0.0
    %4015 = vmatmul.mubr.f32.gmra.mrb[0].mxu0 %v3814
    %v4016 = vpop.f32.mrb[0].mxu0
    %v4017 = vadd.f32 0.0, %v4016
    %v4018 = vpop.f32.mrb[0].mxu0
    %v4019 = vadd.f32 0.0, %v4018
    %4020 = vdwg.mxu0
    %v4021 = vadd.f32 %v3810, %v3946
    %v4022 = vadd.f32 %v3811, %v3948
    %v4023 = vadd.f32 %v3812, %v4017
    %v4024 = vadd.f32 %v3813, %v4019
    %v4025 = vxor.u32 %v4021, 2147483648
    %v4026 = vmul.f32 %v4025, 1.442695
    %v4027 = vpow.pop %v4026
    %v4028 = vadd.f32 %v4027, 1.0
    %v4029 = vrcp.pop %v4028
    %v4030 = vmul.f32 1.0, %v4029
    %v4031 = vxor.u32 %v4022, 2147483648
    %v4032 = vmul.f32 %v4031, 1.442695
    %v4033 = vpow.pop %v4032
    %v4034 = vadd.f32 %v4033, 1.0
    %v4035 = vrcp.pop %v4034
    %v4036 = vmul.f32 1.0, %v4035
    %v4037 = vtanh.pop %v4023
    %v4038 = vxor.u32 %v4024, 2147483648
    %v4039 = vmul.f32 %v4038, 1.442695
    %v4040 = vpow.pop %v4039
    %v4041 = vadd.f32 %v4040, 1.0
    %v4042 = vrcp.pop %v4041
    %v4043 = vmul.f32 1.0, %v4042
    %v4044 = vld [vmem:[#allocation4] sm:$0x3]
    %v4045 = vmul.f32 %v4036, %v4044
    %v4046 = vmul.f32 %v4030, %v4037
    %v4047 = vadd.f32 %v4045, %v4046
    %v4048 = vtanh.pop %v4047
    %v4049 = vmul.f32 %v4043, %v4048
    %4050 = vst [vmem:[#allocation4] sm:$0x3] %v4047
    %4051 = vst [vmem:[#allocation3] sm:$0x3] %v4049
    %4052 = vst.msk [vmem:[%s2015] sm:$0x3] %vm2013, %v4049
    %4053 = vst.msk [vmem:[#allocation11] sm:$0x3] %vm2016, %v4049
    // Predicated region
    $region30: #{tpu_custom_call.1} parent=1 // pred_check
      _
    $region31: #{tpu_custom_call.1} parent=1 // pred_check_branch
      %4055 = sbr.rel (0) target = $region33
    $region32: #{tpu_custom_call.1} parent=1 // pred_region
      %s4057 = ssub.s32 256, 256
      %4058 = vsyncadd [#allocation7], %s4057
      %s4059 = sshll.u32 [#allocation11], 4
      %s4060 = int_to_ptr.vmem [resolvable:$true] %s4059
      %4065 = dma.vmem_to_hbm [thread:$0]  %s4060, 256, %s4, [#allocation7], 32, 32, 2
    $region33: #{tpu_custom_call.1} parent=1 // pred_fallthru
      _
    // Predicated region
    $region34: #{tpu_custom_call.1} parent=1 // pred_check
      _
    $region35: #{tpu_custom_call.1} parent=1 // pred_check_branch
      %4067 = sbr.rel (0) target = $region37
    $region36: #{tpu_custom_call.1} parent=1 // pred_region
      %4068 = dma.done [#allocation7], 256
    $region37: #{tpu_custom_call.1} parent=1 // pred_fallthru
      _
    %4069 = vsyncpa [#allocation6], 1
    %4070 = vsyncpa [#allocation9], 1
    %4071 = vsyncpa [#allocation7], 1

</llo_original>
